<compile_context>
chip_gen: v6e
topology: v6e:2x2x1
jax: 0.10.0
libtpu: 0.0.40
codegen_flags: <defaults>
</compile_context>

<pallas_src>
import functools

import jax
import jax.numpy as jnp
from jax import lax
from jax.experimental import pallas as pl
from jax.experimental.pallas import tpu as pltpu


# ----------------------------------------------------------------------------
# helpers
# ----------------------------------------------------------------------------
def _softplus(v):
    # matches torch.nn.functional.softplus (beta=1, threshold=20)
    return jnp.where(v > 20.0, v, jnp.log1p(jnp.exp(jnp.minimum(v, 20.0))))


def _kld_terms(m1, s1, m2, s2):
    # elementwise body of 0.5 * sum(2 log s2 - 2 log s1 + (s1^2+(m1-m2)^2)/s2^2 - 1)
    # (the 0.5 and the sum are applied once, after accumulation over steps)
    return (2.0 * jnp.log(s2) - 2.0 * jnp.log(s1)
            + (s1 * s1 + (m1 - m2) ** 2) / (s2 * s2) - 1.0)


# ----------------------------------------------------------------------------
# Pallas kernel
# ----------------------------------------------------------------------------
def sisvae_kernel(
    # inputs (time-major, batch-padded)
    x_ref, ez_ref, ex_ref,
    w_x2z_ref, b_x2z_ref,
    w_xh2z_ref, b_xh2z_ref,
    w_zh2x_ref, b_zh2x_ref,
    w_z2_ref, b_z2_ref,          # fused [z_to_x | phi_theta_dec]        (h, 2h)
    w_h5_ref, b_h5_ref,          # fused [z_prior | gru weight_hh]       (h, 5h)
    w_ih_ref, b_ih_ref,          # gru weight_ih                          (h, 3h)
    # outputs
    rec_ref, mse_ref, zkld_ref, skld_ref,
    *,
    T, B, B_real, xd, h, cdt,
):
    f32 = jnp.float32

    def mm(a, w):
        # MXU matmul; optionally bf16 operands, always f32 accumulation.
        return jnp.dot(a.astype(cdt), w, preferred_element_type=jnp.float32)

    # ------- load everything once (all resident in VMEM, tiny) -------
    x_all = x_ref[...]            # (T*B, xd)
    ez_all = ez_ref[...]          # (T*B, h)
    ex_all = ex_ref[...]          # (T*B, xd)

    w_x2z = w_x2z_ref[...]
    w_xh2z = w_xh2z_ref[...]
    w_zh2x = w_zh2x_ref[...]
    w_z2 = w_z2_ref[...]
    w_h5 = w_h5_ref[...]
    w_ih = w_ih_ref[...]

    # ------- hoisted bias broadcasts (JAX does not CSE broadcast_in_dim) -------
    bb_xh2z = jnp.broadcast_to(b_xh2z_ref[...], (B, 2 * h)).astype(f32)
    bb_zh2x = jnp.broadcast_to(b_zh2x_ref[...], (B, 2 * xd)).astype(f32)
    bb_z2 = jnp.broadcast_to(b_z2_ref[...], (B, 2 * h)).astype(f32)
    bb_h5 = jnp.broadcast_to(b_h5_ref[...], (B, 5 * h)).astype(f32)
    bb_ih = jnp.broadcast_to(b_ih_ref[...], (B, 3 * h)).astype(f32)

    # ------- hoisted input projection: whole sequence in one matmul -------
    xz_all = mm(x_all, w_x2z) + jnp.broadcast_to(b_x2z_ref[...], (T * B, h))

    # ------- recurrence, fully unrolled (T is static & small) -------
    h_t = jnp.zeros((B, h), f32)
    recs = []
    mse_acc = jnp.zeros((B, xd), f32)
    zkld_acc = jnp.zeros((B, h), f32)
    skld_acc = jnp.zeros((B, xd), f32)
    prev_mu_xt = None
    prev_th_xt = None

    for t in range(T):
        r0 = t * B                               # sublane-tile aligned (B % 8 == 0)
        x_t = x_all[r0:r0 + B]
        ez_t = ez_all[r0:r0 + B]
        ex_t = ex_all[r0:r0 + B]
        xz_t = xz_all[r0:r0 + B]

        # matmul that depends only on h_t: prior + GRU hidden gates (fused)
        hz = mm(h_t, w_h5) + bb_h5               # (B, 5h)
        mu_z0 = hz[:, :h]
        th_z0 = _softplus(hz[:, h:2 * h])
        gh = hz[:, 2 * h:]

        # encoder q(z_t | x_t, h_t)
        zz = mm(xz_t + h_t, w_xh2z) + bb_xh2z    # (B, 2h)
        mu_zt = zz[:, :h]
        th_zt = _softplus(zz[:, h:])
        z_t = ez_t * th_zt + mu_zt               # reparameterized sample

        # fused z_t projections: decoder hidden + GRU input feature
        zc = mm(z_t, w_z2) + bb_z2               # (B, 2h)
        c = zc[:, :h] + h_t
        dec = zc[:, h:]

        # decoder p(x_t | z_t, h_t)
        xx = mm(c, w_zh2x) + bb_zh2x             # (B, 2*xd)
        mu_xt = xx[:, :xd]
        th_xt = _softplus(xx[:, xd:])
        rec = ex_t * th_xt + mu_xt               # reparameterized sample
        recs.append(rec)

        # GRUCell(dec, h_t)
        gi = mm(dec, w_ih) + bb_ih               # (B, 3h)
        r_g = jax.nn.sigmoid(gi[:, :h] + gh[:, :h])
        z_g = jax.nn.sigmoid(gi[:, h:2 * h] + gh[:, h:2 * h])
        n_g = jnp.tanh(gi[:, 2 * h:] + r_g * gh[:, 2 * h:])
        h_t = (1.0 - z_g) * n_g + z_g * h_t

        # on-the-fly loss accumulation (elementwise; reduced once after loop)
        mse_acc = mse_acc + (rec - x_t) ** 2
        zkld_acc = zkld_acc + _kld_terms(mu_z0, th_z0, mu_zt, th_zt)
        if t > 0:
            skld_acc = skld_acc + _kld_terms(prev_mu_xt, prev_th_xt, mu_xt, th_xt)
        prev_mu_xt, prev_th_xt = mu_xt, th_xt

    # ------- single lane-dense store of the reconstruction -------
    rec_ref[...] = jnp.concatenate(recs, axis=-1)     # (B, T*xd)

    # ------- mask padded batch rows, reduce to scalars (SMEM) -------
    row = lax.broadcasted_iota(jnp.int32, (B, 1), 0)
    mask = (row < B_real).astype(f32)
    mse_ref[0, 0] = jnp.sum(mse_acc * mask) / float(B_real * T * xd)
    zkld_ref[0, 0] = 0.5 * jnp.sum(zkld_acc * mask)
    skld_ref[0, 0] = 0.5 * jnp.sum(skld_acc * mask)


# ----------------------------------------------------------------------------
# wrapper
# ----------------------------------------------------------------------------
@functools.partial(jax.jit, static_argnames=("compute_dtype",))
def sisvae_forward(x, eps_z, eps_x, params, *, compute_dtype=jnp.float32):
    """x: (B, T, x_dim). Returns (rec_xt (B,T,x_dim), mse, z_kld, smooth_kld)."""
    B, T, xd = x.shape
    h = params["w_x2z"].shape[1]
    cdt = compute_dtype

    # pad batch to a sublane multiple (>= 8); padded rows are masked in-kernel
    B_pad = max(8, ((B + 7) // 8) * 8)

    def to_tm(a, feat):
        a = jnp.asarray(a, jnp.float32)
        if B_pad != B:
            a = jnp.pad(a, ((0, B_pad - B), (0, 0), (0, 0)))
        return jnp.transpose(a, (1, 0, 2)).reshape(T * B_pad, feat)

    x_tm = to_tm(x, xd)
    ez_tm = to_tm(eps_z, h)
    ex_tm = to_tm(eps_x, xd)

    # weight fusion (done once, outside the kernel)
    w_x2z = params["w_x2z"].astype(cdt)
    w_xh2z = params["w_xh2z"].astype(cdt)
    w_zh2x = params["w_zh2x"].astype(cdt)
    w_ih = params["w_ih"].astype(cdt)
    w_z2 = jnp.concatenate([params["w_z2x"], params["w_phi"]], axis=1).astype(cdt)
    w_h5 = jnp.concatenate([params["w_zp"], params["w_hh"]], axis=1).astype(cdt)

    b_x2z = params["b_x2z"].astype(jnp.float32)
    b_xh2z = params["b_xh2z"].astype(jnp.float32)
    b_zh2x = params["b_zh2x"].astype(jnp.float32)
    b_ih = params["b_ih"].astype(jnp.float32)
    b_z2 = jnp.concatenate([params["b_z2x"], params["b_phi"]], axis=1).astype(jnp.float32)
    b_h5 = jnp.concatenate([params["b_zp"], params["b_hh"]], axis=1).astype(jnp.float32)

    kernel = functools.partial(
        sisvae_kernel, T=T, B=B_pad, B_real=B, xd=xd, h=h, cdt=cdt)

    vmem = pl.BlockSpec(memory_space=pltpu.MemorySpace.VMEM)
    smem = pl.BlockSpec(memory_space=pltpu.MemorySpace.SMEM)

    out_shapes = (
        jax.ShapeDtypeStruct((B_pad, T * xd), jnp.float32),  # rec (lane-dense slab)
        jax.ShapeDtypeStruct((1, 1), jnp.float32),           # mse
        jax.ShapeDtypeStruct((1, 1), jnp.float32),           # z_kld
        jax.ShapeDtypeStruct((1, 1), jnp.float32),           # smooth_kld
    )

    inputs = (
        x_tm, ez_tm, ex_tm,
        w_x2z, b_x2z,
        w_xh2z, b_xh2z,
        w_zh2x, b_zh2x,
        w_z2, b_z2,
        w_h5, b_h5,
        w_ih, b_ih,
    )

    rec_flat, mse, zkld, skld = pl.pallas_call(
        kernel,
        out_shape=out_shapes,
        in_specs=[vmem] * len(inputs),
        out_specs=(vmem, smem, smem, smem),
    )(*inputs)

    rec = rec_flat[:B].reshape(B, T, xd)
    return rec, mse[0, 0], zkld[0, 0], skld[0, 0]


# ----------------------------------------------------------------------------
# deterministic parameter init (PyTorch-style uniform bounds)
# ----------------------------------------------------------------------------
def init_params(key, x_dim, h_dim):
    def linear(k, fan_in, n_in, n_out):
        bound = 1.0 / (float(fan_in) ** 0.5)
        kw, kb = jax.random.split(k)
        w = jax.random.uniform(kw, (n_in, n_out), jnp.float32, -bound, bound)
        b = jax.random.uniform(kb, (1, n_out), jnp.float32, -bound, bound)
        return w, b

    ks = jax.random.split(key, 8)
    p = {}
    p["w_x2z"], p["b_x2z"] = linear(ks[0], x_dim, x_dim, h_dim)          # x_to_z
    p["w_xh2z"], p["b_xh2z"] = linear(ks[1], h_dim, h_dim, 2 * h_dim)    # xh_to_z
    p["w_z2x"], p["b_z2x"] = linear(ks[2], h_dim, h_dim, h_dim)          # z_to_x
    p["w_zh2x"], p["b_zh2x"] = linear(ks[3], h_dim, h_dim, 2 * x_dim)    # zh_to_x
    p["w_phi"], p["b_phi"] = linear(ks[4], h_dim, h_dim, h_dim)          # phi_theta_dec
    p["w_zp"], p["b_zp"] = linear(ks[5], h_dim, h_dim, 2 * h_dim)        # z_prior
    p["w_ih"], p["b_ih"] = linear(ks[6], h_dim, h_dim, 3 * h_dim)        # GRU weight_ih
    p["w_hh"], p["b_hh"] = linear(ks[7], h_dim, h_dim, 3 * h_dim)        # GRU weight_hh
    return p


# ----------------------------------------------------------------------------
# main
# ----------------------------------------------------------------------------
if __name__ == "__main__":
    B, T, X_DIM, H_DIM = 2, 8, 16, 32

    key = jax.random.PRNGKey(0)
    k_x, k_p, k_ez, k_ex = jax.random.split(key, 4)

    x = jax.random.normal(k_x, (B, T, X_DIM), jnp.float32)
    params = init_params(k_p, X_DIM, H_DIM)

    # deterministic stand-ins for torch.FloatTensor(...).normal_() draws
    eps_z = jax.random.normal(k_ez, (B, T, H_DIM), jnp.float32)
    eps_x = jax.random.normal(k_ex, (B, T, X_DIM), jnp.float32)

    rec_xt, mse_loss, z_kld_loss, smooth_kld_loss = sisvae_forward(
        x, eps_z, eps_x, params
    )
    jax.block_until_ready((rec_xt, mse_loss, z_kld_loss, smooth_kld_loss))

    ok = (
        rec_xt.shape == (B, T, X_DIM)
        and bool(jnp.isfinite(rec_xt).all())
        and bool(jnp.isfinite(mse_loss))
        and bool(jnp.isfinite(z_kld_loss))
        and bool(jnp.isfinite(smooth_kld_loss))
    )
    if not ok:
        raise RuntimeError("SISVAE Pallas kernel produced invalid outputs")
    print("KERNEL_OK")
</pallas_src>

<mosaic_0001>
module attributes {stable_mosaic.version = 11 : i64} {
  func.func @sisvae_kernel(%arg0: memref<64x16xf32, #tpu.memory_space<vmem>>, %arg1: memref<64x32xf32, #tpu.memory_space<vmem>>, %arg2: memref<64x16xf32, #tpu.memory_space<vmem>>, %arg3: memref<16x32xf32, #tpu.memory_space<vmem>>, %arg4: memref<1x32xf32, #tpu.memory_space<vmem>>, %arg5: memref<32x64xf32, #tpu.memory_space<vmem>>, %arg6: memref<1x64xf32, #tpu.memory_space<vmem>>, %arg7: memref<32x32xf32, #tpu.memory_space<vmem>>, %arg8: memref<1x32xf32, #tpu.memory_space<vmem>>, %arg9: memref<32x64xf32, #tpu.memory_space<vmem>>, %arg10: memref<1x64xf32, #tpu.memory_space<vmem>>, %arg11: memref<32x160xf32, #tpu.memory_space<vmem>>, %arg12: memref<1x160xf32, #tpu.memory_space<vmem>>, %arg13: memref<32x96xf32, #tpu.memory_space<vmem>>, %arg14: memref<1x96xf32, #tpu.memory_space<vmem>>, %arg15: memref<8x128xf32, #tpu.memory_space<vmem>>, %arg16: memref<1x1xf32, #tpu.memory_space<smem>>, %arg17: memref<1x1xf32, #tpu.memory_space<smem>>, %arg18: memref<1x1xf32, #tpu.memory_space<smem>>) attributes {dimension_semantics = [], scalar_prefetch = 0 : i64, scratch_operands = 0 : i64, tpu.core_type = #tpu.core_type<tc>} {
    %c0 = arith.constant 0 : index
    %c0_0 = arith.constant 0 : index
    %0 = vector.load %arg0[%c0, %c0_0] : memref<64x16xf32, #tpu.memory_space<vmem>>, vector<64x16xf32>
    %c0_1 = arith.constant 0 : index
    %c0_2 = arith.constant 0 : index
    %1 = vector.load %arg1[%c0_1, %c0_2] : memref<64x32xf32, #tpu.memory_space<vmem>>, vector<64x32xf32>
    %c0_3 = arith.constant 0 : index
    %c0_4 = arith.constant 0 : index
    %2 = vector.load %arg2[%c0_3, %c0_4] : memref<64x16xf32, #tpu.memory_space<vmem>>, vector<64x16xf32>
    %c0_5 = arith.constant 0 : index
    %c0_6 = arith.constant 0 : index
    %3 = vector.load %arg3[%c0_5, %c0_6] : memref<16x32xf32, #tpu.memory_space<vmem>>, vector<16x32xf32>
    %c0_7 = arith.constant 0 : index
    %c0_8 = arith.constant 0 : index
    %4 = vector.load %arg5[%c0_7, %c0_8] : memref<32x64xf32, #tpu.memory_space<vmem>>, vector<32x64xf32>
    %c0_9 = arith.constant 0 : index
    %c0_10 = arith.constant 0 : index
    %5 = vector.load %arg7[%c0_9, %c0_10] : memref<32x32xf32, #tpu.memory_space<vmem>>, vector<32x32xf32>
    %c0_11 = arith.constant 0 : index
    %c0_12 = arith.constant 0 : index
    %6 = vector.load %arg9[%c0_11, %c0_12] : memref<32x64xf32, #tpu.memory_space<vmem>>, vector<32x64xf32>
    %c0_13 = arith.constant 0 : index
    %c0_14 = arith.constant 0 : index
    %7 = vector.load %arg11[%c0_13, %c0_14] : memref<32x160xf32, #tpu.memory_space<vmem>>, vector<32x160xf32>
    %c0_15 = arith.constant 0 : index
    %c0_16 = arith.constant 0 : index
    %8 = vector.load %arg13[%c0_15, %c0_16] : memref<32x96xf32, #tpu.memory_space<vmem>>, vector<32x96xf32>
    %c0_17 = arith.constant 0 : index
    %c0_18 = arith.constant 0 : index
    %9 = vector.load %arg6[%c0_17, %c0_18] : memref<1x64xf32, #tpu.memory_space<vmem>>, vector<1x64xf32>
    %10 = vector.shape_cast %9 : vector<1x64xf32> to vector<1x64xf32>
    %11 = vector.broadcast %10 : vector<1x64xf32> to vector<8x64xf32>
    %c0_19 = arith.constant 0 : index
    %c0_20 = arith.constant 0 : index
    %12 = vector.load %arg8[%c0_19, %c0_20] : memref<1x32xf32, #tpu.memory_space<vmem>>, vector<1x32xf32>
    %13 = vector.shape_cast %12 : vector<1x32xf32> to vector<1x32xf32>
    %14 = vector.broadcast %13 : vector<1x32xf32> to vector<8x32xf32>
    %c0_21 = arith.constant 0 : index
    %c0_22 = arith.constant 0 : index
    %15 = vector.load %arg10[%c0_21, %c0_22] : memref<1x64xf32, #tpu.memory_space<vmem>>, vector<1x64xf32>
    %16 = vector.shape_cast %15 : vector<1x64xf32> to vector<1x64xf32>
    %17 = vector.broadcast %16 : vector<1x64xf32> to vector<8x64xf32>
    %c0_23 = arith.constant 0 : index
    %c0_24 = arith.constant 0 : index
    %18 = vector.load %arg12[%c0_23, %c0_24] : memref<1x160xf32, #tpu.memory_space<vmem>>, vector<1x160xf32>
    %19 = vector.shape_cast %18 : vector<1x160xf32> to vector<1x160xf32>
    %20 = vector.broadcast %19 : vector<1x160xf32> to vector<8x160xf32>
    %c0_25 = arith.constant 0 : index
    %c0_26 = arith.constant 0 : index
    %21 = vector.load %arg14[%c0_25, %c0_26] : memref<1x96xf32, #tpu.memory_space<vmem>>, vector<1x96xf32>
    %22 = vector.shape_cast %21 : vector<1x96xf32> to vector<1x96xf32>
    %23 = vector.broadcast %22 : vector<1x96xf32> to vector<8x96xf32>
    %cst = arith.constant dense<0.000000e+00> : vector<64x32xf32>
    %24 = tpu.matmul %0, %3, %cst {dimension_numbers = #tpu.dot_dimension_numbers<[1], [0], [0], [1], [0, 0, 1, 1], [], []>} : vector<64x16xf32>, vector<16x32xf32>, vector<64x32xf32> -> vector<64x32xf32>
    %c0_27 = arith.constant 0 : index
    %c0_28 = arith.constant 0 : index
    %25 = vector.load %arg4[%c0_27, %c0_28] : memref<1x32xf32, #tpu.memory_space<vmem>>, vector<1x32xf32>
    %26 = vector.shape_cast %25 : vector<1x32xf32> to vector<1x32xf32>
    %27 = vector.broadcast %26 : vector<1x32xf32> to vector<64x32xf32>
    %28 = arith.addf %24, %27 : vector<64x32xf32>
    %cst_29 = arith.constant 0.000000e+00 : f32
    %29 = vector.broadcast %cst_29 : f32 to vector<8x32xf32>
    %cst_30 = arith.constant 0.000000e+00 : f32
    %30 = vector.broadcast %cst_30 : f32 to vector<8x16xf32>
    %cst_31 = arith.constant 0.000000e+00 : f32
    %31 = vector.broadcast %cst_31 : f32 to vector<8x32xf32>
    %cst_32 = arith.constant 0.000000e+00 : f32
    %32 = vector.broadcast %cst_32 : f32 to vector<8x16xf32>
    %33 = vector.extract_strided_slice %0 {offsets = [0, 0], sizes = [8, 16], strides = [1, 1]} : vector<64x16xf32> to vector<8x16xf32>
    %34 = vector.extract_strided_slice %1 {offsets = [0, 0], sizes = [8, 32], strides = [1, 1]} : vector<64x32xf32> to vector<8x32xf32>
    %35 = vector.extract_strided_slice %2 {offsets = [0, 0], sizes = [8, 16], strides = [1, 1]} : vector<64x16xf32> to vector<8x16xf32>
    %36 = vector.extract_strided_slice %28 {offsets = [0, 0], sizes = [8, 32], strides = [1, 1]} : vector<64x32xf32> to vector<8x32xf32>
    %cst_33 = arith.constant dense<0.000000e+00> : vector<8x160xf32>
    %37 = tpu.matmul %29, %7, %cst_33 {dimension_numbers = #tpu.dot_dimension_numbers<[1], [0], [0], [1], [0, 0, 1, 1], [], []>} : vector<8x32xf32>, vector<32x160xf32>, vector<8x160xf32> -> vector<8x160xf32>
    %38 = arith.addf %37, %20 : vector<8x160xf32>
    %39 = vector.extract_strided_slice %38 {offsets = [0, 0], sizes = [8, 32], strides = [1, 1]} : vector<8x160xf32> to vector<8x32xf32>
    %40 = vector.extract_strided_slice %38 {offsets = [0, 32], sizes = [8, 32], strides = [1, 1]} : vector<8x160xf32> to vector<8x32xf32>
    %cst_34 = arith.constant 2.000000e+01 : f32
    %41 = vector.broadcast %cst_34 : f32 to vector<8x32xf32>
    %42 = arith.cmpf ogt, %40, %41 : vector<8x32xf32>
    %cst_35 = arith.constant 2.000000e+01 : f32
    %43 = vector.broadcast %cst_35 : f32 to vector<8x32xf32>
    %44 = arith.minimumf %40, %43 : vector<8x32xf32>
    %45 = math.exp %44 : vector<8x32xf32>
    %46 = math.log1p %45 : vector<8x32xf32>
    %47 = arith.select %42, %40, %46 : vector<8x32xi1>, vector<8x32xf32>
    %48 = vector.extract_strided_slice %38 {offsets = [0, 64], sizes = [8, 96], strides = [1, 1]} : vector<8x160xf32> to vector<8x96xf32>
    %49 = arith.addf %36, %29 : vector<8x32xf32>
    %cst_36 = arith.constant dense<0.000000e+00> : vector<8x64xf32>
    %50 = tpu.matmul %49, %4, %cst_36 {dimension_numbers = #tpu.dot_dimension_numbers<[1], [0], [0], [1], [0, 0, 1, 1], [], []>} : vector<8x32xf32>, vector<32x64xf32>, vector<8x64xf32> -> vector<8x64xf32>
    %51 = arith.addf %50, %11 : vector<8x64xf32>
    %52 = vector.extract_strided_slice %51 {offsets = [0, 0], sizes = [8, 32], strides = [1, 1]} : vector<8x64xf32> to vector<8x32xf32>
    %53 = vector.extract_strided_slice %51 {offsets = [0, 32], sizes = [8, 32], strides = [1, 1]} : vector<8x64xf32> to vector<8x32xf32>
    %cst_37 = arith.constant 2.000000e+01 : f32
    %54 = vector.broadcast %cst_37 : f32 to vector<8x32xf32>
    %55 = arith.cmpf ogt, %53, %54 : vector<8x32xf32>
    %cst_38 = arith.constant 2.000000e+01 : f32
    %56 = vector.broadcast %cst_38 : f32 to vector<8x32xf32>
    %57 = arith.minimumf %53, %56 : vector<8x32xf32>
    %58 = math.exp %57 : vector<8x32xf32>
    %59 = math.log1p %58 : vector<8x32xf32>
    %60 = arith.select %55, %53, %59 : vector<8x32xi1>, vector<8x32xf32>
    %61 = arith.mulf %34, %60 : vector<8x32xf32>
    %62 = arith.addf %61, %52 : vector<8x32xf32>
    %cst_39 = arith.constant dense<0.000000e+00> : vector<8x64xf32>
    %63 = tpu.matmul %62, %6, %cst_39 {dimension_numbers = #tpu.dot_dimension_numbers<[1], [0], [0], [1], [0, 0, 1, 1], [], []>} : vector<8x32xf32>, vector<32x64xf32>, vector<8x64xf32> -> vector<8x64xf32>
    %64 = arith.addf %63, %17 : vector<8x64xf32>
    %65 = vector.extract_strided_slice %64 {offsets = [0, 0], sizes = [8, 32], strides = [1, 1]} : vector<8x64xf32> to vector<8x32xf32>
    %66 = arith.addf %65, %29 : vector<8x32xf32>
    %67 = vector.extract_strided_slice %64 {offsets = [0, 32], sizes = [8, 32], strides = [1, 1]} : vector<8x64xf32> to vector<8x32xf32>
    %cst_40 = arith.constant dense<0.000000e+00> : vector<8x32xf32>
    %68 = tpu.matmul %66, %5, %cst_40 {dimension_numbers = #tpu.dot_dimension_numbers<[1], [0], [0], [1], [0, 0, 1, 1], [], []>} : vector<8x32xf32>, vector<32x32xf32>, vector<8x32xf32> -> vector<8x32xf32>
    %69 = arith.addf %68, %14 : vector<8x32xf32>
    %70 = vector.extract_strided_slice %69 {offsets = [0, 0], sizes = [8, 16], strides = [1, 1]} : vector<8x32xf32> to vector<8x16xf32>
    %71 = vector.extract_strided_slice %69 {offsets = [0, 16], sizes = [8, 16], strides = [1, 1]} : vector<8x32xf32> to vector<8x16xf32>
    %cst_41 = arith.constant 2.000000e+01 : f32
    %72 = vector.broadcast %cst_41 : f32 to vector<8x16xf32>
    %73 = arith.cmpf ogt, %71, %72 : vector<8x16xf32>
    %cst_42 = arith.constant 2.000000e+01 : f32
    %74 = vector.broadcast %cst_42 : f32 to vector<8x16xf32>
    %75 = arith.minimumf %71, %74 : vector<8x16xf32>
    %76 = math.exp %75 : vector<8x16xf32>
    %77 = math.log1p %76 : vector<8x16xf32>
    %78 = arith.select %73, %71, %77 : vector<8x16xi1>, vector<8x16xf32>
    %79 = arith.mulf %35, %78 : vector<8x16xf32>
    %80 = arith.addf %79, %70 : vector<8x16xf32>
    %cst_43 = arith.constant dense<0.000000e+00> : vector<8x96xf32>
    %81 = tpu.matmul %67, %8, %cst_43 {dimension_numbers = #tpu.dot_dimension_numbers<[1], [0], [0], [1], [0, 0, 1, 1], [], []>} : vector<8x32xf32>, vector<32x96xf32>, vector<8x96xf32> -> vector<8x96xf32>
    %82 = arith.addf %81, %23 : vector<8x96xf32>
    %83 = vector.extract_strided_slice %82 {offsets = [0, 0], sizes = [8, 32], strides = [1, 1]} : vector<8x96xf32> to vector<8x32xf32>
    %84 = vector.extract_strided_slice %48 {offsets = [0, 0], sizes = [8, 32], strides = [1, 1]} : vector<8x96xf32> to vector<8x32xf32>
    %85 = arith.addf %83, %84 : vector<8x32xf32>
    %86 = arith.negf %85 : vector<8x32xf32>
    %87 = math.exp %86 : vector<8x32xf32>
    %cst_44 = arith.constant 1.000000e+00 : f32
    %88 = vector.broadcast %cst_44 : f32 to vector<8x32xf32>
    %89 = arith.addf %88, %87 : vector<8x32xf32>
    %90 = arith.divf %88, %89 : vector<8x32xf32>
    %91 = vector.extract_strided_slice %82 {offsets = [0, 32], sizes = [8, 32], strides = [1, 1]} : vector<8x96xf32> to vector<8x32xf32>
    %92 = vector.extract_strided_slice %48 {offsets = [0, 32], sizes = [8, 32], strides = [1, 1]} : vector<8x96xf32> to vector<8x32xf32>
    %93 = arith.addf %91, %92 : vector<8x32xf32>
    %94 = arith.negf %93 : vector<8x32xf32>
    %95 = math.exp %94 : vector<8x32xf32>
    %cst_45 = arith.constant 1.000000e+00 : f32
    %96 = vector.broadcast %cst_45 : f32 to vector<8x32xf32>
    %97 = arith.addf %96, %95 : vector<8x32xf32>
    %98 = arith.divf %96, %97 : vector<8x32xf32>
    %99 = vector.extract_strided_slice %82 {offsets = [0, 64], sizes = [8, 32], strides = [1, 1]} : vector<8x96xf32> to vector<8x32xf32>
    %100 = vector.extract_strided_slice %48 {offsets = [0, 64], sizes = [8, 32], strides = [1, 1]} : vector<8x96xf32> to vector<8x32xf32>
    %101 = arith.mulf %90, %100 : vector<8x32xf32>
    %102 = arith.addf %99, %101 : vector<8x32xf32>
    %103 = math.tanh %102 : vector<8x32xf32>
    %cst_46 = arith.constant 1.000000e+00 : f32
    %104 = vector.broadcast %cst_46 : f32 to vector<8x32xf32>
    %105 = arith.subf %104, %98 : vector<8x32xf32>
    %106 = arith.mulf %105, %103 : vector<8x32xf32>
    %107 = arith.mulf %98, %29 : vector<8x32xf32>
    %108 = arith.addf %106, %107 : vector<8x32xf32>
    %109 = arith.subf %80, %33 : vector<8x16xf32>
    %110 = arith.mulf %109, %109 : vector<8x16xf32>
    %111 = arith.addf %30, %110 : vector<8x16xf32>
    %112 = math.log %60 : vector<8x32xf32>
    %cst_47 = arith.constant 2.000000e+00 : f32
    %113 = vector.broadcast %cst_47 : f32 to vector<8x32xf32>
    %114 = arith.mulf %113, %112 : vector<8x32xf32>
    %115 = math.log %47 : vector<8x32xf32>
    %cst_48 = arith.constant 2.000000e+00 : f32
    %116 = vector.broadcast %cst_48 : f32 to vector<8x32xf32>
    %117 = arith.mulf %116, %115 : vector<8x32xf32>
    %118 = arith.subf %114, %117 : vector<8x32xf32>
    %119 = arith.mulf %47, %47 : vector<8x32xf32>
    %120 = arith.subf %39, %52 : vector<8x32xf32>
    %121 = arith.mulf %120, %120 : vector<8x32xf32>
    %122 = arith.addf %119, %121 : vector<8x32xf32>
    %123 = arith.mulf %60, %60 : vector<8x32xf32>
    %124 = arith.divf %122, %123 : vector<8x32xf32>
    %125 = arith.addf %118, %124 : vector<8x32xf32>
    %cst_49 = arith.constant 1.000000e+00 : f32
    %126 = vector.broadcast %cst_49 : f32 to vector<8x32xf32>
    %127 = arith.subf %125, %126 : vector<8x32xf32>
    %128 = arith.addf %31, %127 : vector<8x32xf32>
    %129 = vector.extract_strided_slice %0 {offsets = [8, 0], sizes = [8, 16], strides = [1, 1]} : vector<64x16xf32> to vector<8x16xf32>
    %130 = vector.extract_strided_slice %1 {offsets = [8, 0], sizes = [8, 32], strides = [1, 1]} : vector<64x32xf32> to vector<8x32xf32>
    %131 = vector.extract_strided_slice %2 {offsets = [8, 0], sizes = [8, 16], strides = [1, 1]} : vector<64x16xf32> to vector<8x16xf32>
    %132 = vector.extract_strided_slice %28 {offsets = [8, 0], sizes = [8, 32], strides = [1, 1]} : vector<64x32xf32> to vector<8x32xf32>
    %cst_50 = arith.constant dense<0.000000e+00> : vector<8x160xf32>
    %133 = tpu.matmul %108, %7, %cst_50 {dimension_numbers = #tpu.dot_dimension_numbers<[1], [0], [0], [1], [0, 0, 1, 1], [], []>} : vector<8x32xf32>, vector<32x160xf32>, vector<8x160xf32> -> vector<8x160xf32>
    %134 = arith.addf %133, %20 : vector<8x160xf32>
    %135 = vector.extract_strided_slice %134 {offsets = [0, 0], sizes = [8, 32], strides = [1, 1]} : vector<8x160xf32> to vector<8x32xf32>
    %136 = vector.extract_strided_slice %134 {offsets = [0, 32], sizes = [8, 32], strides = [1, 1]} : vector<8x160xf32> to vector<8x32xf32>
    %cst_51 = arith.constant 2.000000e+01 : f32
    %137 = vector.broadcast %cst_51 : f32 to vector<8x32xf32>
    %138 = arith.cmpf ogt, %136, %137 : vector<8x32xf32>
    %cst_52 = arith.constant 2.000000e+01 : f32
    %139 = vector.broadcast %cst_52 : f32 to vector<8x32xf32>
    %140 = arith.minimumf %136, %139 : vector<8x32xf32>
    %141 = math.exp %140 : vector<8x32xf32>
    %142 = math.log1p %141 : vector<8x32xf32>
    %143 = arith.select %138, %136, %142 : vector<8x32xi1>, vector<8x32xf32>
    %144 = vector.extract_strided_slice %134 {offsets = [0, 64], sizes = [8, 96], strides = [1, 1]} : vector<8x160xf32> to vector<8x96xf32>
    %145 = arith.addf %132, %108 : vector<8x32xf32>
    %cst_53 = arith.constant dense<0.000000e+00> : vector<8x64xf32>
    %146 = tpu.matmul %145, %4, %cst_53 {dimension_numbers = #tpu.dot_dimension_numbers<[1], [0], [0], [1], [0, 0, 1, 1], [], []>} : vector<8x32xf32>, vector<32x64xf32>, vector<8x64xf32> -> vector<8x64xf32>
    %147 = arith.addf %146, %11 : vector<8x64xf32>
    %148 = vector.extract_strided_slice %147 {offsets = [0, 0], sizes = [8, 32], strides = [1, 1]} : vector<8x64xf32> to vector<8x32xf32>
    %149 = vector.extract_strided_slice %147 {offsets = [0, 32], sizes = [8, 32], strides = [1, 1]} : vector<8x64xf32> to vector<8x32xf32>
    %cst_54 = arith.constant 2.000000e+01 : f32
    %150 = vector.broadcast %cst_54 : f32 to vector<8x32xf32>
    %151 = arith.cmpf ogt, %149, %150 : vector<8x32xf32>
    %cst_55 = arith.constant 2.000000e+01 : f32
    %152 = vector.broadcast %cst_55 : f32 to vector<8x32xf32>
    %153 = arith.minimumf %149, %152 : vector<8x32xf32>
    %154 = math.exp %153 : vector<8x32xf32>
    %155 = math.log1p %154 : vector<8x32xf32>
    %156 = arith.select %151, %149, %155 : vector<8x32xi1>, vector<8x32xf32>
    %157 = arith.mulf %130, %156 : vector<8x32xf32>
    %158 = arith.addf %157, %148 : vector<8x32xf32>
    %cst_56 = arith.constant dense<0.000000e+00> : vector<8x64xf32>
    %159 = tpu.matmul %158, %6, %cst_56 {dimension_numbers = #tpu.dot_dimension_numbers<[1], [0], [0], [1], [0, 0, 1, 1], [], []>} : vector<8x32xf32>, vector<32x64xf32>, vector<8x64xf32> -> vector<8x64xf32>
    %160 = arith.addf %159, %17 : vector<8x64xf32>
    %161 = vector.extract_strided_slice %160 {offsets = [0, 0], sizes = [8, 32], strides = [1, 1]} : vector<8x64xf32> to vector<8x32xf32>
    %162 = arith.addf %161, %108 : vector<8x32xf32>
    %163 = vector.extract_strided_slice %160 {offsets = [0, 32], sizes = [8, 32], strides = [1, 1]} : vector<8x64xf32> to vector<8x32xf32>
    %cst_57 = arith.constant dense<0.000000e+00> : vector<8x32xf32>
    %164 = tpu.matmul %162, %5, %cst_57 {dimension_numbers = #tpu.dot_dimension_numbers<[1], [0], [0], [1], [0, 0, 1, 1], [], []>} : vector<8x32xf32>, vector<32x32xf32>, vector<8x32xf32> -> vector<8x32xf32>
    %165 = arith.addf %164, %14 : vector<8x32xf32>
    %166 = vector.extract_strided_slice %165 {offsets = [0, 0], sizes = [8, 16], strides = [1, 1]} : vector<8x32xf32> to vector<8x16xf32>
    %167 = vector.extract_strided_slice %165 {offsets = [0, 16], sizes = [8, 16], strides = [1, 1]} : vector<8x32xf32> to vector<8x16xf32>
    %cst_58 = arith.constant 2.000000e+01 : f32
    %168 = vector.broadcast %cst_58 : f32 to vector<8x16xf32>
    %169 = arith.cmpf ogt, %167, %168 : vector<8x16xf32>
    %cst_59 = arith.constant 2.000000e+01 : f32
    %170 = vector.broadcast %cst_59 : f32 to vector<8x16xf32>
    %171 = arith.minimumf %167, %170 : vector<8x16xf32>
    %172 = math.exp %171 : vector<8x16xf32>
    %173 = math.log1p %172 : vector<8x16xf32>
    %174 = arith.select %169, %167, %173 : vector<8x16xi1>, vector<8x16xf32>
    %175 = arith.mulf %131, %174 : vector<8x16xf32>
    %176 = arith.addf %175, %166 : vector<8x16xf32>
    %cst_60 = arith.constant dense<0.000000e+00> : vector<8x96xf32>
    %177 = tpu.matmul %163, %8, %cst_60 {dimension_numbers = #tpu.dot_dimension_numbers<[1], [0], [0], [1], [0, 0, 1, 1], [], []>} : vector<8x32xf32>, vector<32x96xf32>, vector<8x96xf32> -> vector<8x96xf32>
    %178 = arith.addf %177, %23 : vector<8x96xf32>
    %179 = vector.extract_strided_slice %178 {offsets = [0, 0], sizes = [8, 32], strides = [1, 1]} : vector<8x96xf32> to vector<8x32xf32>
    %180 = vector.extract_strided_slice %144 {offsets = [0, 0], sizes = [8, 32], strides = [1, 1]} : vector<8x96xf32> to vector<8x32xf32>
    %181 = arith.addf %179, %180 : vector<8x32xf32>
    %182 = arith.negf %181 : vector<8x32xf32>
    %183 = math.exp %182 : vector<8x32xf32>
    %cst_61 = arith.constant 1.000000e+00 : f32
    %184 = vector.broadcast %cst_61 : f32 to vector<8x32xf32>
    %185 = arith.addf %184, %183 : vector<8x32xf32>
    %186 = arith.divf %184, %185 : vector<8x32xf32>
    %187 = vector.extract_strided_slice %178 {offsets = [0, 32], sizes = [8, 32], strides = [1, 1]} : vector<8x96xf32> to vector<8x32xf32>
    %188 = vector.extract_strided_slice %144 {offsets = [0, 32], sizes = [8, 32], strides = [1, 1]} : vector<8x96xf32> to vector<8x32xf32>
    %189 = arith.addf %187, %188 : vector<8x32xf32>
    %190 = arith.negf %189 : vector<8x32xf32>
    %191 = math.exp %190 : vector<8x32xf32>
    %cst_62 = arith.constant 1.000000e+00 : f32
    %192 = vector.broadcast %cst_62 : f32 to vector<8x32xf32>
    %193 = arith.addf %192, %191 : vector<8x32xf32>
    %194 = arith.divf %192, %193 : vector<8x32xf32>
    %195 = vector.extract_strided_slice %178 {offsets = [0, 64], sizes = [8, 32], strides = [1, 1]} : vector<8x96xf32> to vector<8x32xf32>
    %196 = vector.extract_strided_slice %144 {offsets = [0, 64], sizes = [8, 32], strides = [1, 1]} : vector<8x96xf32> to vector<8x32xf32>
    %197 = arith.mulf %186, %196 : vector<8x32xf32>
    %198 = arith.addf %195, %197 : vector<8x32xf32>
    %199 = math.tanh %198 : vector<8x32xf32>
    %cst_63 = arith.constant 1.000000e+00 : f32
    %200 = vector.broadcast %cst_63 : f32 to vector<8x32xf32>
    %201 = arith.subf %200, %194 : vector<8x32xf32>
    %202 = arith.mulf %201, %199 : vector<8x32xf32>
    %203 = arith.mulf %194, %108 : vector<8x32xf32>
    %204 = arith.addf %202, %203 : vector<8x32xf32>
    %205 = arith.subf %176, %129 : vector<8x16xf32>
    %206 = arith.mulf %205, %205 : vector<8x16xf32>
    %207 = arith.addf %111, %206 : vector<8x16xf32>
    %208 = math.log %156 : vector<8x32xf32>
    %cst_64 = arith.constant 2.000000e+00 : f32
    %209 = vector.broadcast %cst_64 : f32 to vector<8x32xf32>
    %210 = arith.mulf %209, %208 : vector<8x32xf32>
    %211 = math.log %143 : vector<8x32xf32>
    %cst_65 = arith.constant 2.000000e+00 : f32
    %212 = vector.broadcast %cst_65 : f32 to vector<8x32xf32>
    %213 = arith.mulf %212, %211 : vector<8x32xf32>
    %214 = arith.subf %210, %213 : vector<8x32xf32>
    %215 = arith.mulf %143, %143 : vector<8x32xf32>
    %216 = arith.subf %135, %148 : vector<8x32xf32>
    %217 = arith.mulf %216, %216 : vector<8x32xf32>
    %218 = arith.addf %215, %217 : vector<8x32xf32>
    %219 = arith.mulf %156, %156 : vector<8x32xf32>
    %220 = arith.divf %218, %219 : vector<8x32xf32>
    %221 = arith.addf %214, %220 : vector<8x32xf32>
    %cst_66 = arith.constant 1.000000e+00 : f32
    %222 = vector.broadcast %cst_66 : f32 to vector<8x32xf32>
    %223 = arith.subf %221, %222 : vector<8x32xf32>
    %224 = arith.addf %128, %223 : vector<8x32xf32>
    %225 = math.log %174 : vector<8x16xf32>
    %cst_67 = arith.constant 2.000000e+00 : f32
    %226 = vector.broadcast %cst_67 : f32 to vector<8x16xf32>
    %227 = arith.mulf %226, %225 : vector<8x16xf32>
    %228 = math.log %78 : vector<8x16xf32>
    %cst_68 = arith.constant 2.000000e+00 : f32
    %229 = vector.broadcast %cst_68 : f32 to vector<8x16xf32>
    %230 = arith.mulf %229, %228 : vector<8x16xf32>
    %231 = arith.subf %227, %230 : vector<8x16xf32>
    %232 = arith.mulf %78, %78 : vector<8x16xf32>
    %233 = arith.subf %70, %166 : vector<8x16xf32>
    %234 = arith.mulf %233, %233 : vector<8x16xf32>
    %235 = arith.addf %232, %234 : vector<8x16xf32>
    %236 = arith.mulf %174, %174 : vector<8x16xf32>
    %237 = arith.divf %235, %236 : vector<8x16xf32>
    %238 = arith.addf %231, %237 : vector<8x16xf32>
    %cst_69 = arith.constant 1.000000e+00 : f32
    %239 = vector.broadcast %cst_69 : f32 to vector<8x16xf32>
    %240 = arith.subf %238, %239 : vector<8x16xf32>
    %241 = arith.addf %32, %240 : vector<8x16xf32>
    %242 = vector.extract_strided_slice %0 {offsets = [16, 0], sizes = [8, 16], strides = [1, 1]} : vector<64x16xf32> to vector<8x16xf32>
    %243 = vector.extract_strided_slice %1 {offsets = [16, 0], sizes = [8, 32], strides = [1, 1]} : vector<64x32xf32> to vector<8x32xf32>
    %244 = vector.extract_strided_slice %2 {offsets = [16, 0], sizes = [8, 16], strides = [1, 1]} : vector<64x16xf32> to vector<8x16xf32>
    %245 = vector.extract_strided_slice %28 {offsets = [16, 0], sizes = [8, 32], strides = [1, 1]} : vector<64x32xf32> to vector<8x32xf32>
    %cst_70 = arith.constant dense<0.000000e+00> : vector<8x160xf32>
    %246 = tpu.matmul %204, %7, %cst_70 {dimension_numbers = #tpu.dot_dimension_numbers<[1], [0], [0], [1], [0, 0, 1, 1], [], []>} : vector<8x32xf32>, vector<32x160xf32>, vector<8x160xf32> -> vector<8x160xf32>
    %247 = arith.addf %246, %20 : vector<8x160xf32>
    %248 = vector.extract_strided_slice %247 {offsets = [0, 0], sizes = [8, 32], strides = [1, 1]} : vector<8x160xf32> to vector<8x32xf32>
    %249 = vector.extract_strided_slice %247 {offsets = [0, 32], sizes = [8, 32], strides = [1, 1]} : vector<8x160xf32> to vector<8x32xf32>
    %cst_71 = arith.constant 2.000000e+01 : f32
    %250 = vector.broadcast %cst_71 : f32 to vector<8x32xf32>
    %251 = arith.cmpf ogt, %249, %250 : vector<8x32xf32>
    %cst_72 = arith.constant 2.000000e+01 : f32
    %252 = vector.broadcast %cst_72 : f32 to vector<8x32xf32>
    %253 = arith.minimumf %249, %252 : vector<8x32xf32>
    %254 = math.exp %253 : vector<8x32xf32>
    %255 = math.log1p %254 : vector<8x32xf32>
    %256 = arith.select %251, %249, %255 : vector<8x32xi1>, vector<8x32xf32>
    %257 = vector.extract_strided_slice %247 {offsets = [0, 64], sizes = [8, 96], strides = [1, 1]} : vector<8x160xf32> to vector<8x96xf32>
    %258 = arith.addf %245, %204 : vector<8x32xf32>
    %cst_73 = arith.constant dense<0.000000e+00> : vector<8x64xf32>
    %259 = tpu.matmul %258, %4, %cst_73 {dimension_numbers = #tpu.dot_dimension_numbers<[1], [0], [0], [1], [0, 0, 1, 1], [], []>} : vector<8x32xf32>, vector<32x64xf32>, vector<8x64xf32> -> vector<8x64xf32>
    %260 = arith.addf %259, %11 : vector<8x64xf32>
    %261 = vector.extract_strided_slice %260 {offsets = [0, 0], sizes = [8, 32], strides = [1, 1]} : vector<8x64xf32> to vector<8x32xf32>
    %262 = vector.extract_strided_slice %260 {offsets = [0, 32], sizes = [8, 32], strides = [1, 1]} : vector<8x64xf32> to vector<8x32xf32>
    %cst_74 = arith.constant 2.000000e+01 : f32
    %263 = vector.broadcast %cst_74 : f32 to vector<8x32xf32>
    %264 = arith.cmpf ogt, %262, %263 : vector<8x32xf32>
    %cst_75 = arith.constant 2.000000e+01 : f32
    %265 = vector.broadcast %cst_75 : f32 to vector<8x32xf32>
    %266 = arith.minimumf %262, %265 : vector<8x32xf32>
    %267 = math.exp %266 : vector<8x32xf32>
    %268 = math.log1p %267 : vector<8x32xf32>
    %269 = arith.select %264, %262, %268 : vector<8x32xi1>, vector<8x32xf32>
    %270 = arith.mulf %243, %269 : vector<8x32xf32>
    %271 = arith.addf %270, %261 : vector<8x32xf32>
    %cst_76 = arith.constant dense<0.000000e+00> : vector<8x64xf32>
    %272 = tpu.matmul %271, %6, %cst_76 {dimension_numbers = #tpu.dot_dimension_numbers<[1], [0], [0], [1], [0, 0, 1, 1], [], []>} : vector<8x32xf32>, vector<32x64xf32>, vector<8x64xf32> -> vector<8x64xf32>
    %273 = arith.addf %272, %17 : vector<8x64xf32>
    %274 = vector.extract_strided_slice %273 {offsets = [0, 0], sizes = [8, 32], strides = [1, 1]} : vector<8x64xf32> to vector<8x32xf32>
    %275 = arith.addf %274, %204 : vector<8x32xf32>
    %276 = vector.extract_strided_slice %273 {offsets = [0, 32], sizes = [8, 32], strides = [1, 1]} : vector<8x64xf32> to vector<8x32xf32>
    %cst_77 = arith.constant dense<0.000000e+00> : vector<8x32xf32>
    %277 = tpu.matmul %275, %5, %cst_77 {dimension_numbers = #tpu.dot_dimension_numbers<[1], [0], [0], [1], [0, 0, 1, 1], [], []>} : vector<8x32xf32>, vector<32x32xf32>, vector<8x32xf32> -> vector<8x32xf32>
    %278 = arith.addf %277, %14 : vector<8x32xf32>
    %279 = vector.extract_strided_slice %278 {offsets = [0, 0], sizes = [8, 16], strides = [1, 1]} : vector<8x32xf32> to vector<8x16xf32>
    %280 = vector.extract_strided_slice %278 {offsets = [0, 16], sizes = [8, 16], strides = [1, 1]} : vector<8x32xf32> to vector<8x16xf32>
    %cst_78 = arith.constant 2.000000e+01 : f32
    %281 = vector.broadcast %cst_78 : f32 to vector<8x16xf32>
    %282 = arith.cmpf ogt, %280, %281 : vector<8x16xf32>
    %cst_79 = arith.constant 2.000000e+01 : f32
    %283 = vector.broadcast %cst_79 : f32 to vector<8x16xf32>
    %284 = arith.minimumf %280, %283 : vector<8x16xf32>
    %285 = math.exp %284 : vector<8x16xf32>
    %286 = math.log1p %285 : vector<8x16xf32>
    %287 = arith.select %282, %280, %286 : vector<8x16xi1>, vector<8x16xf32>
    %288 = arith.mulf %244, %287 : vector<8x16xf32>
    %289 = arith.addf %288, %279 : vector<8x16xf32>
    %cst_80 = arith.constant dense<0.000000e+00> : vector<8x96xf32>
    %290 = tpu.matmul %276, %8, %cst_80 {dimension_numbers = #tpu.dot_dimension_numbers<[1], [0], [0], [1], [0, 0, 1, 1], [], []>} : vector<8x32xf32>, vector<32x96xf32>, vector<8x96xf32> -> vector<8x96xf32>
    %291 = arith.addf %290, %23 : vector<8x96xf32>
    %292 = vector.extract_strided_slice %291 {offsets = [0, 0], sizes = [8, 32], strides = [1, 1]} : vector<8x96xf32> to vector<8x32xf32>
    %293 = vector.extract_strided_slice %257 {offsets = [0, 0], sizes = [8, 32], strides = [1, 1]} : vector<8x96xf32> to vector<8x32xf32>
    %294 = arith.addf %292, %293 : vector<8x32xf32>
    %295 = arith.negf %294 : vector<8x32xf32>
    %296 = math.exp %295 : vector<8x32xf32>
    %cst_81 = arith.constant 1.000000e+00 : f32
    %297 = vector.broadcast %cst_81 : f32 to vector<8x32xf32>
    %298 = arith.addf %297, %296 : vector<8x32xf32>
    %299 = arith.divf %297, %298 : vector<8x32xf32>
    %300 = vector.extract_strided_slice %291 {offsets = [0, 32], sizes = [8, 32], strides = [1, 1]} : vector<8x96xf32> to vector<8x32xf32>
    %301 = vector.extract_strided_slice %257 {offsets = [0, 32], sizes = [8, 32], strides = [1, 1]} : vector<8x96xf32> to vector<8x32xf32>
    %302 = arith.addf %300, %301 : vector<8x32xf32>
    %303 = arith.negf %302 : vector<8x32xf32>
    %304 = math.exp %303 : vector<8x32xf32>
    %cst_82 = arith.constant 1.000000e+00 : f32
    %305 = vector.broadcast %cst_82 : f32 to vector<8x32xf32>
    %306 = arith.addf %305, %304 : vector<8x32xf32>
    %307 = arith.divf %305, %306 : vector<8x32xf32>
    %308 = vector.extract_strided_slice %291 {offsets = [0, 64], sizes = [8, 32], strides = [1, 1]} : vector<8x96xf32> to vector<8x32xf32>
    %309 = vector.extract_strided_slice %257 {offsets = [0, 64], sizes = [8, 32], strides = [1, 1]} : vector<8x96xf32> to vector<8x32xf32>
    %310 = arith.mulf %299, %309 : vector<8x32xf32>
    %311 = arith.addf %308, %310 : vector<8x32xf32>
    %312 = math.tanh %311 : vector<8x32xf32>
    %cst_83 = arith.constant 1.000000e+00 : f32
    %313 = vector.broadcast %cst_83 : f32 to vector<8x32xf32>
    %314 = arith.subf %313, %307 : vector<8x32xf32>
    %315 = arith.mulf %314, %312 : vector<8x32xf32>
    %316 = arith.mulf %307, %204 : vector<8x32xf32>
    %317 = arith.addf %315, %316 : vector<8x32xf32>
    %318 = arith.subf %289, %242 : vector<8x16xf32>
    %319 = arith.mulf %318, %318 : vector<8x16xf32>
    %320 = arith.addf %207, %319 : vector<8x16xf32>
    %321 = math.log %269 : vector<8x32xf32>
    %cst_84 = arith.constant 2.000000e+00 : f32
    %322 = vector.broadcast %cst_84 : f32 to vector<8x32xf32>
    %323 = arith.mulf %322, %321 : vector<8x32xf32>
    %324 = math.log %256 : vector<8x32xf32>
    %cst_85 = arith.constant 2.000000e+00 : f32
    %325 = vector.broadcast %cst_85 : f32 to vector<8x32xf32>
    %326 = arith.mulf %325, %324 : vector<8x32xf32>
    %327 = arith.subf %323, %326 : vector<8x32xf32>
    %328 = arith.mulf %256, %256 : vector<8x32xf32>
    %329 = arith.subf %248, %261 : vector<8x32xf32>
    %330 = arith.mulf %329, %329 : vector<8x32xf32>
    %331 = arith.addf %328, %330 : vector<8x32xf32>
    %332 = arith.mulf %269, %269 : vector<8x32xf32>
    %333 = arith.divf %331, %332 : vector<8x32xf32>
    %334 = arith.addf %327, %333 : vector<8x32xf32>
    %cst_86 = arith.constant 1.000000e+00 : f32
    %335 = vector.broadcast %cst_86 : f32 to vector<8x32xf32>
    %336 = arith.subf %334, %335 : vector<8x32xf32>
    %337 = arith.addf %224, %336 : vector<8x32xf32>
    %338 = math.log %287 : vector<8x16xf32>
    %cst_87 = arith.constant 2.000000e+00 : f32
    %339 = vector.broadcast %cst_87 : f32 to vector<8x16xf32>
    %340 = arith.mulf %339, %338 : vector<8x16xf32>
    %341 = math.log %174 : vector<8x16xf32>
    %cst_88 = arith.constant 2.000000e+00 : f32
    %342 = vector.broadcast %cst_88 : f32 to vector<8x16xf32>
    %343 = arith.mulf %342, %341 : vector<8x16xf32>
    %344 = arith.subf %340, %343 : vector<8x16xf32>
    %345 = arith.mulf %174, %174 : vector<8x16xf32>
    %346 = arith.subf %166, %279 : vector<8x16xf32>
    %347 = arith.mulf %346, %346 : vector<8x16xf32>
    %348 = arith.addf %345, %347 : vector<8x16xf32>
    %349 = arith.mulf %287, %287 : vector<8x16xf32>
    %350 = arith.divf %348, %349 : vector<8x16xf32>
    %351 = arith.addf %344, %350 : vector<8x16xf32>
    %cst_89 = arith.constant 1.000000e+00 : f32
    %352 = vector.broadcast %cst_89 : f32 to vector<8x16xf32>
    %353 = arith.subf %351, %352 : vector<8x16xf32>
    %354 = arith.addf %241, %353 : vector<8x16xf32>
    %355 = vector.extract_strided_slice %0 {offsets = [24, 0], sizes = [8, 16], strides = [1, 1]} : vector<64x16xf32> to vector<8x16xf32>
    %356 = vector.extract_strided_slice %1 {offsets = [24, 0], sizes = [8, 32], strides = [1, 1]} : vector<64x32xf32> to vector<8x32xf32>
    %357 = vector.extract_strided_slice %2 {offsets = [24, 0], sizes = [8, 16], strides = [1, 1]} : vector<64x16xf32> to vector<8x16xf32>
    %358 = vector.extract_strided_slice %28 {offsets = [24, 0], sizes = [8, 32], strides = [1, 1]} : vector<64x32xf32> to vector<8x32xf32>
    %cst_90 = arith.constant dense<0.000000e+00> : vector<8x160xf32>
    %359 = tpu.matmul %317, %7, %cst_90 {dimension_numbers = #tpu.dot_dimension_numbers<[1], [0], [0], [1], [0, 0, 1, 1], [], []>} : vector<8x32xf32>, vector<32x160xf32>, vector<8x160xf32> -> vector<8x160xf32>
    %360 = arith.addf %359, %20 : vector<8x160xf32>
    %361 = vector.extract_strided_slice %360 {offsets = [0, 0], sizes = [8, 32], strides = [1, 1]} : vector<8x160xf32> to vector<8x32xf32>
    %362 = vector.extract_strided_slice %360 {offsets = [0, 32], sizes = [8, 32], strides = [1, 1]} : vector<8x160xf32> to vector<8x32xf32>
    %cst_91 = arith.constant 2.000000e+01 : f32
    %363 = vector.broadcast %cst_91 : f32 to vector<8x32xf32>
    %364 = arith.cmpf ogt, %362, %363 : vector<8x32xf32>
    %cst_92 = arith.constant 2.000000e+01 : f32
    %365 = vector.broadcast %cst_92 : f32 to vector<8x32xf32>
    %366 = arith.minimumf %362, %365 : vector<8x32xf32>
    %367 = math.exp %366 : vector<8x32xf32>
    %368 = math.log1p %367 : vector<8x32xf32>
    %369 = arith.select %364, %362, %368 : vector<8x32xi1>, vector<8x32xf32>
    %370 = vector.extract_strided_slice %360 {offsets = [0, 64], sizes = [8, 96], strides = [1, 1]} : vector<8x160xf32> to vector<8x96xf32>
    %371 = arith.addf %358, %317 : vector<8x32xf32>
    %cst_93 = arith.constant dense<0.000000e+00> : vector<8x64xf32>
    %372 = tpu.matmul %371, %4, %cst_93 {dimension_numbers = #tpu.dot_dimension_numbers<[1], [0], [0], [1], [0, 0, 1, 1], [], []>} : vector<8x32xf32>, vector<32x64xf32>, vector<8x64xf32> -> vector<8x64xf32>
    %373 = arith.addf %372, %11 : vector<8x64xf32>
    %374 = vector.extract_strided_slice %373 {offsets = [0, 0], sizes = [8, 32], strides = [1, 1]} : vector<8x64xf32> to vector<8x32xf32>
    %375 = vector.extract_strided_slice %373 {offsets = [0, 32], sizes = [8, 32], strides = [1, 1]} : vector<8x64xf32> to vector<8x32xf32>
    %cst_94 = arith.constant 2.000000e+01 : f32
    %376 = vector.broadcast %cst_94 : f32 to vector<8x32xf32>
    %377 = arith.cmpf ogt, %375, %376 : vector<8x32xf32>
    %cst_95 = arith.constant 2.000000e+01 : f32
    %378 = vector.broadcast %cst_95 : f32 to vector<8x32xf32>
    %379 = arith.minimumf %375, %378 : vector<8x32xf32>
    %380 = math.exp %379 : vector<8x32xf32>
    %381 = math.log1p %380 : vector<8x32xf32>
    %382 = arith.select %377, %375, %381 : vector<8x32xi1>, vector<8x32xf32>
    %383 = arith.mulf %356, %382 : vector<8x32xf32>
    %384 = arith.addf %383, %374 : vector<8x32xf32>
    %cst_96 = arith.constant dense<0.000000e+00> : vector<8x64xf32>
    %385 = tpu.matmul %384, %6, %cst_96 {dimension_numbers = #tpu.dot_dimension_numbers<[1], [0], [0], [1], [0, 0, 1, 1], [], []>} : vector<8x32xf32>, vector<32x64xf32>, vector<8x64xf32> -> vector<8x64xf32>
    %386 = arith.addf %385, %17 : vector<8x64xf32>
    %387 = vector.extract_strided_slice %386 {offsets = [0, 0], sizes = [8, 32], strides = [1, 1]} : vector<8x64xf32> to vector<8x32xf32>
    %388 = arith.addf %387, %317 : vector<8x32xf32>
    %389 = vector.extract_strided_slice %386 {offsets = [0, 32], sizes = [8, 32], strides = [1, 1]} : vector<8x64xf32> to vector<8x32xf32>
    %cst_97 = arith.constant dense<0.000000e+00> : vector<8x32xf32>
    %390 = tpu.matmul %388, %5, %cst_97 {dimension_numbers = #tpu.dot_dimension_numbers<[1], [0], [0], [1], [0, 0, 1, 1], [], []>} : vector<8x32xf32>, vector<32x32xf32>, vector<8x32xf32> -> vector<8x32xf32>
    %391 = arith.addf %390, %14 : vector<8x32xf32>
    %392 = vector.extract_strided_slice %391 {offsets = [0, 0], sizes = [8, 16], strides = [1, 1]} : vector<8x32xf32> to vector<8x16xf32>
    %393 = vector.extract_strided_slice %391 {offsets = [0, 16], sizes = [8, 16], strides = [1, 1]} : vector<8x32xf32> to vector<8x16xf32>
    %cst_98 = arith.constant 2.000000e+01 : f32
    %394 = vector.broadcast %cst_98 : f32 to vector<8x16xf32>
    %395 = arith.cmpf ogt, %393, %394 : vector<8x16xf32>
    %cst_99 = arith.constant 2.000000e+01 : f32
    %396 = vector.broadcast %cst_99 : f32 to vector<8x16xf32>
    %397 = arith.minimumf %393, %396 : vector<8x16xf32>
    %398 = math.exp %397 : vector<8x16xf32>
    %399 = math.log1p %398 : vector<8x16xf32>
    %400 = arith.select %395, %393, %399 : vector<8x16xi1>, vector<8x16xf32>
    %401 = arith.mulf %357, %400 : vector<8x16xf32>
    %402 = arith.addf %401, %392 : vector<8x16xf32>
    %cst_100 = arith.constant dense<0.000000e+00> : vector<8x96xf32>
    %403 = tpu.matmul %389, %8, %cst_100 {dimension_numbers = #tpu.dot_dimension_numbers<[1], [0], [0], [1], [0, 0, 1, 1], [], []>} : vector<8x32xf32>, vector<32x96xf32>, vector<8x96xf32> -> vector<8x96xf32>
    %404 = arith.addf %403, %23 : vector<8x96xf32>
    %405 = vector.extract_strided_slice %404 {offsets = [0, 0], sizes = [8, 32], strides = [1, 1]} : vector<8x96xf32> to vector<8x32xf32>
    %406 = vector.extract_strided_slice %370 {offsets = [0, 0], sizes = [8, 32], strides = [1, 1]} : vector<8x96xf32> to vector<8x32xf32>
    %407 = arith.addf %405, %406 : vector<8x32xf32>
    %408 = arith.negf %407 : vector<8x32xf32>
    %409 = math.exp %408 : vector<8x32xf32>
    %cst_101 = arith.constant 1.000000e+00 : f32
    %410 = vector.broadcast %cst_101 : f32 to vector<8x32xf32>
    %411 = arith.addf %410, %409 : vector<8x32xf32>
    %412 = arith.divf %410, %411 : vector<8x32xf32>
    %413 = vector.extract_strided_slice %404 {offsets = [0, 32], sizes = [8, 32], strides = [1, 1]} : vector<8x96xf32> to vector<8x32xf32>
    %414 = vector.extract_strided_slice %370 {offsets = [0, 32], sizes = [8, 32], strides = [1, 1]} : vector<8x96xf32> to vector<8x32xf32>
    %415 = arith.addf %413, %414 : vector<8x32xf32>
    %416 = arith.negf %415 : vector<8x32xf32>
    %417 = math.exp %416 : vector<8x32xf32>
    %cst_102 = arith.constant 1.000000e+00 : f32
    %418 = vector.broadcast %cst_102 : f32 to vector<8x32xf32>
    %419 = arith.addf %418, %417 : vector<8x32xf32>
    %420 = arith.divf %418, %419 : vector<8x32xf32>
    %421 = vector.extract_strided_slice %404 {offsets = [0, 64], sizes = [8, 32], strides = [1, 1]} : vector<8x96xf32> to vector<8x32xf32>
    %422 = vector.extract_strided_slice %370 {offsets = [0, 64], sizes = [8, 32], strides = [1, 1]} : vector<8x96xf32> to vector<8x32xf32>
    %423 = arith.mulf %412, %422 : vector<8x32xf32>
    %424 = arith.addf %421, %423 : vector<8x32xf32>
    %425 = math.tanh %424 : vector<8x32xf32>
    %cst_103 = arith.constant 1.000000e+00 : f32
    %426 = vector.broadcast %cst_103 : f32 to vector<8x32xf32>
    %427 = arith.subf %426, %420 : vector<8x32xf32>
    %428 = arith.mulf %427, %425 : vector<8x32xf32>
    %429 = arith.mulf %420, %317 : vector<8x32xf32>
    %430 = arith.addf %428, %429 : vector<8x32xf32>
    %431 = arith.subf %402, %355 : vector<8x16xf32>
    %432 = arith.mulf %431, %431 : vector<8x16xf32>
    %433 = arith.addf %320, %432 : vector<8x16xf32>
    %434 = math.log %382 : vector<8x32xf32>
    %cst_104 = arith.constant 2.000000e+00 : f32
    %435 = vector.broadcast %cst_104 : f32 to vector<8x32xf32>
    %436 = arith.mulf %435, %434 : vector<8x32xf32>
    %437 = math.log %369 : vector<8x32xf32>
    %cst_105 = arith.constant 2.000000e+00 : f32
    %438 = vector.broadcast %cst_105 : f32 to vector<8x32xf32>
    %439 = arith.mulf %438, %437 : vector<8x32xf32>
    %440 = arith.subf %436, %439 : vector<8x32xf32>
    %441 = arith.mulf %369, %369 : vector<8x32xf32>
    %442 = arith.subf %361, %374 : vector<8x32xf32>
    %443 = arith.mulf %442, %442 : vector<8x32xf32>
    %444 = arith.addf %441, %443 : vector<8x32xf32>
    %445 = arith.mulf %382, %382 : vector<8x32xf32>
    %446 = arith.divf %444, %445 : vector<8x32xf32>
    %447 = arith.addf %440, %446 : vector<8x32xf32>
    %cst_106 = arith.constant 1.000000e+00 : f32
    %448 = vector.broadcast %cst_106 : f32 to vector<8x32xf32>
    %449 = arith.subf %447, %448 : vector<8x32xf32>
    %450 = arith.addf %337, %449 : vector<8x32xf32>
    %451 = math.log %400 : vector<8x16xf32>
    %cst_107 = arith.constant 2.000000e+00 : f32
    %452 = vector.broadcast %cst_107 : f32 to vector<8x16xf32>
    %453 = arith.mulf %452, %451 : vector<8x16xf32>
    %454 = math.log %287 : vector<8x16xf32>
    %cst_108 = arith.constant 2.000000e+00 : f32
    %455 = vector.broadcast %cst_108 : f32 to vector<8x16xf32>
    %456 = arith.mulf %455, %454 : vector<8x16xf32>
    %457 = arith.subf %453, %456 : vector<8x16xf32>
    %458 = arith.mulf %287, %287 : vector<8x16xf32>
    %459 = arith.subf %279, %392 : vector<8x16xf32>
    %460 = arith.mulf %459, %459 : vector<8x16xf32>
    %461 = arith.addf %458, %460 : vector<8x16xf32>
    %462 = arith.mulf %400, %400 : vector<8x16xf32>
    %463 = arith.divf %461, %462 : vector<8x16xf32>
    %464 = arith.addf %457, %463 : vector<8x16xf32>
    %cst_109 = arith.constant 1.000000e+00 : f32
    %465 = vector.broadcast %cst_109 : f32 to vector<8x16xf32>
    %466 = arith.subf %464, %465 : vector<8x16xf32>
    %467 = arith.addf %354, %466 : vector<8x16xf32>
    %468 = vector.extract_strided_slice %0 {offsets = [32, 0], sizes = [8, 16], strides = [1, 1]} : vector<64x16xf32> to vector<8x16xf32>
    %469 = vector.extract_strided_slice %1 {offsets = [32, 0], sizes = [8, 32], strides = [1, 1]} : vector<64x32xf32> to vector<8x32xf32>
    %470 = vector.extract_strided_slice %2 {offsets = [32, 0], sizes = [8, 16], strides = [1, 1]} : vector<64x16xf32> to vector<8x16xf32>
    %471 = vector.extract_strided_slice %28 {offsets = [32, 0], sizes = [8, 32], strides = [1, 1]} : vector<64x32xf32> to vector<8x32xf32>
    %cst_110 = arith.constant dense<0.000000e+00> : vector<8x160xf32>
    %472 = tpu.matmul %430, %7, %cst_110 {dimension_numbers = #tpu.dot_dimension_numbers<[1], [0], [0], [1], [0, 0, 1, 1], [], []>} : vector<8x32xf32>, vector<32x160xf32>, vector<8x160xf32> -> vector<8x160xf32>
    %473 = arith.addf %472, %20 : vector<8x160xf32>
    %474 = vector.extract_strided_slice %473 {offsets = [0, 0], sizes = [8, 32], strides = [1, 1]} : vector<8x160xf32> to vector<8x32xf32>
    %475 = vector.extract_strided_slice %473 {offsets = [0, 32], sizes = [8, 32], strides = [1, 1]} : vector<8x160xf32> to vector<8x32xf32>
    %cst_111 = arith.constant 2.000000e+01 : f32
    %476 = vector.broadcast %cst_111 : f32 to vector<8x32xf32>
    %477 = arith.cmpf ogt, %475, %476 : vector<8x32xf32>
    %cst_112 = arith.constant 2.000000e+01 : f32
    %478 = vector.broadcast %cst_112 : f32 to vector<8x32xf32>
    %479 = arith.minimumf %475, %478 : vector<8x32xf32>
    %480 = math.exp %479 : vector<8x32xf32>
    %481 = math.log1p %480 : vector<8x32xf32>
    %482 = arith.select %477, %475, %481 : vector<8x32xi1>, vector<8x32xf32>
    %483 = vector.extract_strided_slice %473 {offsets = [0, 64], sizes = [8, 96], strides = [1, 1]} : vector<8x160xf32> to vector<8x96xf32>
    %484 = arith.addf %471, %430 : vector<8x32xf32>
    %cst_113 = arith.constant dense<0.000000e+00> : vector<8x64xf32>
    %485 = tpu.matmul %484, %4, %cst_113 {dimension_numbers = #tpu.dot_dimension_numbers<[1], [0], [0], [1], [0, 0, 1, 1], [], []>} : vector<8x32xf32>, vector<32x64xf32>, vector<8x64xf32> -> vector<8x64xf32>
    %486 = arith.addf %485, %11 : vector<8x64xf32>
    %487 = vector.extract_strided_slice %486 {offsets = [0, 0], sizes = [8, 32], strides = [1, 1]} : vector<8x64xf32> to vector<8x32xf32>
    %488 = vector.extract_strided_slice %486 {offsets = [0, 32], sizes = [8, 32], strides = [1, 1]} : vector<8x64xf32> to vector<8x32xf32>
    %cst_114 = arith.constant 2.000000e+01 : f32
    %489 = vector.broadcast %cst_114 : f32 to vector<8x32xf32>
    %490 = arith.cmpf ogt, %488, %489 : vector<8x32xf32>
    %cst_115 = arith.constant 2.000000e+01 : f32
    %491 = vector.broadcast %cst_115 : f32 to vector<8x32xf32>
    %492 = arith.minimumf %488, %491 : vector<8x32xf32>
    %493 = math.exp %492 : vector<8x32xf32>
    %494 = math.log1p %493 : vector<8x32xf32>
    %495 = arith.select %490, %488, %494 : vector<8x32xi1>, vector<8x32xf32>
    %496 = arith.mulf %469, %495 : vector<8x32xf32>
    %497 = arith.addf %496, %487 : vector<8x32xf32>
    %cst_116 = arith.constant dense<0.000000e+00> : vector<8x64xf32>
    %498 = tpu.matmul %497, %6, %cst_116 {dimension_numbers = #tpu.dot_dimension_numbers<[1], [0], [0], [1], [0, 0, 1, 1], [], []>} : vector<8x32xf32>, vector<32x64xf32>, vector<8x64xf32> -> vector<8x64xf32>
    %499 = arith.addf %498, %17 : vector<8x64xf32>
    %500 = vector.extract_strided_slice %499 {offsets = [0, 0], sizes = [8, 32], strides = [1, 1]} : vector<8x64xf32> to vector<8x32xf32>
    %501 = arith.addf %500, %430 : vector<8x32xf32>
    %502 = vector.extract_strided_slice %499 {offsets = [0, 32], sizes = [8, 32], strides = [1, 1]} : vector<8x64xf32> to vector<8x32xf32>
    %cst_117 = arith.constant dense<0.000000e+00> : vector<8x32xf32>
    %503 = tpu.matmul %501, %5, %cst_117 {dimension_numbers = #tpu.dot_dimension_numbers<[1], [0], [0], [1], [0, 0, 1, 1], [], []>} : vector<8x32xf32>, vector<32x32xf32>, vector<8x32xf32> -> vector<8x32xf32>
    %504 = arith.addf %503, %14 : vector<8x32xf32>
    %505 = vector.extract_strided_slice %504 {offsets = [0, 0], sizes = [8, 16], strides = [1, 1]} : vector<8x32xf32> to vector<8x16xf32>
    %506 = vector.extract_strided_slice %504 {offsets = [0, 16], sizes = [8, 16], strides = [1, 1]} : vector<8x32xf32> to vector<8x16xf32>
    %cst_118 = arith.constant 2.000000e+01 : f32
    %507 = vector.broadcast %cst_118 : f32 to vector<8x16xf32>
    %508 = arith.cmpf ogt, %506, %507 : vector<8x16xf32>
    %cst_119 = arith.constant 2.000000e+01 : f32
    %509 = vector.broadcast %cst_119 : f32 to vector<8x16xf32>
    %510 = arith.minimumf %506, %509 : vector<8x16xf32>
    %511 = math.exp %510 : vector<8x16xf32>
    %512 = math.log1p %511 : vector<8x16xf32>
    %513 = arith.select %508, %506, %512 : vector<8x16xi1>, vector<8x16xf32>
    %514 = arith.mulf %470, %513 : vector<8x16xf32>
    %515 = arith.addf %514, %505 : vector<8x16xf32>
    %cst_120 = arith.constant dense<0.000000e+00> : vector<8x96xf32>
    %516 = tpu.matmul %502, %8, %cst_120 {dimension_numbers = #tpu.dot_dimension_numbers<[1], [0], [0], [1], [0, 0, 1, 1], [], []>} : vector<8x32xf32>, vector<32x96xf32>, vector<8x96xf32> -> vector<8x96xf32>
    %517 = arith.addf %516, %23 : vector<8x96xf32>
    %518 = vector.extract_strided_slice %517 {offsets = [0, 0], sizes = [8, 32], strides = [1, 1]} : vector<8x96xf32> to vector<8x32xf32>
    %519 = vector.extract_strided_slice %483 {offsets = [0, 0], sizes = [8, 32], strides = [1, 1]} : vector<8x96xf32> to vector<8x32xf32>
    %520 = arith.addf %518, %519 : vector<8x32xf32>
    %521 = arith.negf %520 : vector<8x32xf32>
    %522 = math.exp %521 : vector<8x32xf32>
    %cst_121 = arith.constant 1.000000e+00 : f32
    %523 = vector.broadcast %cst_121 : f32 to vector<8x32xf32>
    %524 = arith.addf %523, %522 : vector<8x32xf32>
    %525 = arith.divf %523, %524 : vector<8x32xf32>
    %526 = vector.extract_strided_slice %517 {offsets = [0, 32], sizes = [8, 32], strides = [1, 1]} : vector<8x96xf32> to vector<8x32xf32>
    %527 = vector.extract_strided_slice %483 {offsets = [0, 32], sizes = [8, 32], strides = [1, 1]} : vector<8x96xf32> to vector<8x32xf32>
    %528 = arith.addf %526, %527 : vector<8x32xf32>
    %529 = arith.negf %528 : vector<8x32xf32>
    %530 = math.exp %529 : vector<8x32xf32>
    %cst_122 = arith.constant 1.000000e+00 : f32
    %531 = vector.broadcast %cst_122 : f32 to vector<8x32xf32>
    %532 = arith.addf %531, %530 : vector<8x32xf32>
    %533 = arith.divf %531, %532 : vector<8x32xf32>
    %534 = vector.extract_strided_slice %517 {offsets = [0, 64], sizes = [8, 32], strides = [1, 1]} : vector<8x96xf32> to vector<8x32xf32>
    %535 = vector.extract_strided_slice %483 {offsets = [0, 64], sizes = [8, 32], strides = [1, 1]} : vector<8x96xf32> to vector<8x32xf32>
    %536 = arith.mulf %525, %535 : vector<8x32xf32>
    %537 = arith.addf %534, %536 : vector<8x32xf32>
    %538 = math.tanh %537 : vector<8x32xf32>
    %cst_123 = arith.constant 1.000000e+00 : f32
    %539 = vector.broadcast %cst_123 : f32 to vector<8x32xf32>
    %540 = arith.subf %539, %533 : vector<8x32xf32>
    %541 = arith.mulf %540, %538 : vector<8x32xf32>
    %542 = arith.mulf %533, %430 : vector<8x32xf32>
    %543 = arith.addf %541, %542 : vector<8x32xf32>
    %544 = arith.subf %515, %468 : vector<8x16xf32>
    %545 = arith.mulf %544, %544 : vector<8x16xf32>
    %546 = arith.addf %433, %545 : vector<8x16xf32>
    %547 = math.log %495 : vector<8x32xf32>
    %cst_124 = arith.constant 2.000000e+00 : f32
    %548 = vector.broadcast %cst_124 : f32 to vector<8x32xf32>
    %549 = arith.mulf %548, %547 : vector<8x32xf32>
    %550 = math.log %482 : vector<8x32xf32>
    %cst_125 = arith.constant 2.000000e+00 : f32
    %551 = vector.broadcast %cst_125 : f32 to vector<8x32xf32>
    %552 = arith.mulf %551, %550 : vector<8x32xf32>
    %553 = arith.subf %549, %552 : vector<8x32xf32>
    %554 = arith.mulf %482, %482 : vector<8x32xf32>
    %555 = arith.subf %474, %487 : vector<8x32xf32>
    %556 = arith.mulf %555, %555 : vector<8x32xf32>
    %557 = arith.addf %554, %556 : vector<8x32xf32>
    %558 = arith.mulf %495, %495 : vector<8x32xf32>
    %559 = arith.divf %557, %558 : vector<8x32xf32>
    %560 = arith.addf %553, %559 : vector<8x32xf32>
    %cst_126 = arith.constant 1.000000e+00 : f32
    %561 = vector.broadcast %cst_126 : f32 to vector<8x32xf32>
    %562 = arith.subf %560, %561 : vector<8x32xf32>
    %563 = arith.addf %450, %562 : vector<8x32xf32>
    %564 = math.log %513 : vector<8x16xf32>
    %cst_127 = arith.constant 2.000000e+00 : f32
    %565 = vector.broadcast %cst_127 : f32 to vector<8x16xf32>
    %566 = arith.mulf %565, %564 : vector<8x16xf32>
    %567 = math.log %400 : vector<8x16xf32>
    %cst_128 = arith.constant 2.000000e+00 : f32
    %568 = vector.broadcast %cst_128 : f32 to vector<8x16xf32>
    %569 = arith.mulf %568, %567 : vector<8x16xf32>
    %570 = arith.subf %566, %569 : vector<8x16xf32>
    %571 = arith.mulf %400, %400 : vector<8x16xf32>
    %572 = arith.subf %392, %505 : vector<8x16xf32>
    %573 = arith.mulf %572, %572 : vector<8x16xf32>
    %574 = arith.addf %571, %573 : vector<8x16xf32>
    %575 = arith.mulf %513, %513 : vector<8x16xf32>
    %576 = arith.divf %574, %575 : vector<8x16xf32>
    %577 = arith.addf %570, %576 : vector<8x16xf32>
    %cst_129 = arith.constant 1.000000e+00 : f32
    %578 = vector.broadcast %cst_129 : f32 to vector<8x16xf32>
    %579 = arith.subf %577, %578 : vector<8x16xf32>
    %580 = arith.addf %467, %579 : vector<8x16xf32>
    %581 = vector.extract_strided_slice %0 {offsets = [40, 0], sizes = [8, 16], strides = [1, 1]} : vector<64x16xf32> to vector<8x16xf32>
    %582 = vector.extract_strided_slice %1 {offsets = [40, 0], sizes = [8, 32], strides = [1, 1]} : vector<64x32xf32> to vector<8x32xf32>
    %583 = vector.extract_strided_slice %2 {offsets = [40, 0], sizes = [8, 16], strides = [1, 1]} : vector<64x16xf32> to vector<8x16xf32>
    %584 = vector.extract_strided_slice %28 {offsets = [40, 0], sizes = [8, 32], strides = [1, 1]} : vector<64x32xf32> to vector<8x32xf32>
    %cst_130 = arith.constant dense<0.000000e+00> : vector<8x160xf32>
    %585 = tpu.matmul %543, %7, %cst_130 {dimension_numbers = #tpu.dot_dimension_numbers<[1], [0], [0], [1], [0, 0, 1, 1], [], []>} : vector<8x32xf32>, vector<32x160xf32>, vector<8x160xf32> -> vector<8x160xf32>
    %586 = arith.addf %585, %20 : vector<8x160xf32>
    %587 = vector.extract_strided_slice %586 {offsets = [0, 0], sizes = [8, 32], strides = [1, 1]} : vector<8x160xf32> to vector<8x32xf32>
    %588 = vector.extract_strided_slice %586 {offsets = [0, 32], sizes = [8, 32], strides = [1, 1]} : vector<8x160xf32> to vector<8x32xf32>
    %cst_131 = arith.constant 2.000000e+01 : f32
    %589 = vector.broadcast %cst_131 : f32 to vector<8x32xf32>
    %590 = arith.cmpf ogt, %588, %589 : vector<8x32xf32>
    %cst_132 = arith.constant 2.000000e+01 : f32
    %591 = vector.broadcast %cst_132 : f32 to vector<8x32xf32>
    %592 = arith.minimumf %588, %591 : vector<8x32xf32>
    %593 = math.exp %592 : vector<8x32xf32>
    %594 = math.log1p %593 : vector<8x32xf32>
    %595 = arith.select %590, %588, %594 : vector<8x32xi1>, vector<8x32xf32>
    %596 = vector.extract_strided_slice %586 {offsets = [0, 64], sizes = [8, 96], strides = [1, 1]} : vector<8x160xf32> to vector<8x96xf32>
    %597 = arith.addf %584, %543 : vector<8x32xf32>
    %cst_133 = arith.constant dense<0.000000e+00> : vector<8x64xf32>
    %598 = tpu.matmul %597, %4, %cst_133 {dimension_numbers = #tpu.dot_dimension_numbers<[1], [0], [0], [1], [0, 0, 1, 1], [], []>} : vector<8x32xf32>, vector<32x64xf32>, vector<8x64xf32> -> vector<8x64xf32>
    %599 = arith.addf %598, %11 : vector<8x64xf32>
    %600 = vector.extract_strided_slice %599 {offsets = [0, 0], sizes = [8, 32], strides = [1, 1]} : vector<8x64xf32> to vector<8x32xf32>
    %601 = vector.extract_strided_slice %599 {offsets = [0, 32], sizes = [8, 32], strides = [1, 1]} : vector<8x64xf32> to vector<8x32xf32>
    %cst_134 = arith.constant 2.000000e+01 : f32
    %602 = vector.broadcast %cst_134 : f32 to vector<8x32xf32>
    %603 = arith.cmpf ogt, %601, %602 : vector<8x32xf32>
    %cst_135 = arith.constant 2.000000e+01 : f32
    %604 = vector.broadcast %cst_135 : f32 to vector<8x32xf32>
    %605 = arith.minimumf %601, %604 : vector<8x32xf32>
    %606 = math.exp %605 : vector<8x32xf32>
    %607 = math.log1p %606 : vector<8x32xf32>
    %608 = arith.select %603, %601, %607 : vector<8x32xi1>, vector<8x32xf32>
    %609 = arith.mulf %582, %608 : vector<8x32xf32>
    %610 = arith.addf %609, %600 : vector<8x32xf32>
    %cst_136 = arith.constant dense<0.000000e+00> : vector<8x64xf32>
    %611 = tpu.matmul %610, %6, %cst_136 {dimension_numbers = #tpu.dot_dimension_numbers<[1], [0], [0], [1], [0, 0, 1, 1], [], []>} : vector<8x32xf32>, vector<32x64xf32>, vector<8x64xf32> -> vector<8x64xf32>
    %612 = arith.addf %611, %17 : vector<8x64xf32>
    %613 = vector.extract_strided_slice %612 {offsets = [0, 0], sizes = [8, 32], strides = [1, 1]} : vector<8x64xf32> to vector<8x32xf32>
    %614 = arith.addf %613, %543 : vector<8x32xf32>
    %615 = vector.extract_strided_slice %612 {offsets = [0, 32], sizes = [8, 32], strides = [1, 1]} : vector<8x64xf32> to vector<8x32xf32>
    %cst_137 = arith.constant dense<0.000000e+00> : vector<8x32xf32>
    %616 = tpu.matmul %614, %5, %cst_137 {dimension_numbers = #tpu.dot_dimension_numbers<[1], [0], [0], [1], [0, 0, 1, 1], [], []>} : vector<8x32xf32>, vector<32x32xf32>, vector<8x32xf32> -> vector<8x32xf32>
    %617 = arith.addf %616, %14 : vector<8x32xf32>
    %618 = vector.extract_strided_slice %617 {offsets = [0, 0], sizes = [8, 16], strides = [1, 1]} : vector<8x32xf32> to vector<8x16xf32>
    %619 = vector.extract_strided_slice %617 {offsets = [0, 16], sizes = [8, 16], strides = [1, 1]} : vector<8x32xf32> to vector<8x16xf32>
    %cst_138 = arith.constant 2.000000e+01 : f32
    %620 = vector.broadcast %cst_138 : f32 to vector<8x16xf32>
    %621 = arith.cmpf ogt, %619, %620 : vector<8x16xf32>
    %cst_139 = arith.constant 2.000000e+01 : f32
    %622 = vector.broadcast %cst_139 : f32 to vector<8x16xf32>
    %623 = arith.minimumf %619, %622 : vector<8x16xf32>
    %624 = math.exp %623 : vector<8x16xf32>
    %625 = math.log1p %624 : vector<8x16xf32>
    %626 = arith.select %621, %619, %625 : vector<8x16xi1>, vector<8x16xf32>
    %627 = arith.mulf %583, %626 : vector<8x16xf32>
    %628 = arith.addf %627, %618 : vector<8x16xf32>
    %cst_140 = arith.constant dense<0.000000e+00> : vector<8x96xf32>
    %629 = tpu.matmul %615, %8, %cst_140 {dimension_numbers = #tpu.dot_dimension_numbers<[1], [0], [0], [1], [0, 0, 1, 1], [], []>} : vector<8x32xf32>, vector<32x96xf32>, vector<8x96xf32> -> vector<8x96xf32>
    %630 = arith.addf %629, %23 : vector<8x96xf32>
    %631 = vector.extract_strided_slice %630 {offsets = [0, 0], sizes = [8, 32], strides = [1, 1]} : vector<8x96xf32> to vector<8x32xf32>
    %632 = vector.extract_strided_slice %596 {offsets = [0, 0], sizes = [8, 32], strides = [1, 1]} : vector<8x96xf32> to vector<8x32xf32>
    %633 = arith.addf %631, %632 : vector<8x32xf32>
    %634 = arith.negf %633 : vector<8x32xf32>
    %635 = math.exp %634 : vector<8x32xf32>
    %cst_141 = arith.constant 1.000000e+00 : f32
    %636 = vector.broadcast %cst_141 : f32 to vector<8x32xf32>
    %637 = arith.addf %636, %635 : vector<8x32xf32>
    %638 = arith.divf %636, %637 : vector<8x32xf32>
    %639 = vector.extract_strided_slice %630 {offsets = [0, 32], sizes = [8, 32], strides = [1, 1]} : vector<8x96xf32> to vector<8x32xf32>
    %640 = vector.extract_strided_slice %596 {offsets = [0, 32], sizes = [8, 32], strides = [1, 1]} : vector<8x96xf32> to vector<8x32xf32>
    %641 = arith.addf %639, %640 : vector<8x32xf32>
    %642 = arith.negf %641 : vector<8x32xf32>
    %643 = math.exp %642 : vector<8x32xf32>
    %cst_142 = arith.constant 1.000000e+00 : f32
    %644 = vector.broadcast %cst_142 : f32 to vector<8x32xf32>
    %645 = arith.addf %644, %643 : vector<8x32xf32>
    %646 = arith.divf %644, %645 : vector<8x32xf32>
    %647 = vector.extract_strided_slice %630 {offsets = [0, 64], sizes = [8, 32], strides = [1, 1]} : vector<8x96xf32> to vector<8x32xf32>
    %648 = vector.extract_strided_slice %596 {offsets = [0, 64], sizes = [8, 32], strides = [1, 1]} : vector<8x96xf32> to vector<8x32xf32>
    %649 = arith.mulf %638, %648 : vector<8x32xf32>
    %650 = arith.addf %647, %649 : vector<8x32xf32>
    %651 = math.tanh %650 : vector<8x32xf32>
    %cst_143 = arith.constant 1.000000e+00 : f32
    %652 = vector.broadcast %cst_143 : f32 to vector<8x32xf32>
    %653 = arith.subf %652, %646 : vector<8x32xf32>
    %654 = arith.mulf %653, %651 : vector<8x32xf32>
    %655 = arith.mulf %646, %543 : vector<8x32xf32>
    %656 = arith.addf %654, %655 : vector<8x32xf32>
    %657 = arith.subf %628, %581 : vector<8x16xf32>
    %658 = arith.mulf %657, %657 : vector<8x16xf32>
    %659 = arith.addf %546, %658 : vector<8x16xf32>
    %660 = math.log %608 : vector<8x32xf32>
    %cst_144 = arith.constant 2.000000e+00 : f32
    %661 = vector.broadcast %cst_144 : f32 to vector<8x32xf32>
    %662 = arith.mulf %661, %660 : vector<8x32xf32>
    %663 = math.log %595 : vector<8x32xf32>
    %cst_145 = arith.constant 2.000000e+00 : f32
    %664 = vector.broadcast %cst_145 : f32 to vector<8x32xf32>
    %665 = arith.mulf %664, %663 : vector<8x32xf32>
    %666 = arith.subf %662, %665 : vector<8x32xf32>
    %667 = arith.mulf %595, %595 : vector<8x32xf32>
    %668 = arith.subf %587, %600 : vector<8x32xf32>
    %669 = arith.mulf %668, %668 : vector<8x32xf32>
    %670 = arith.addf %667, %669 : vector<8x32xf32>
    %671 = arith.mulf %608, %608 : vector<8x32xf32>
    %672 = arith.divf %670, %671 : vector<8x32xf32>
    %673 = arith.addf %666, %672 : vector<8x32xf32>
    %cst_146 = arith.constant 1.000000e+00 : f32
    %674 = vector.broadcast %cst_146 : f32 to vector<8x32xf32>
    %675 = arith.subf %673, %674 : vector<8x32xf32>
    %676 = arith.addf %563, %675 : vector<8x32xf32>
    %677 = math.log %626 : vector<8x16xf32>
    %cst_147 = arith.constant 2.000000e+00 : f32
    %678 = vector.broadcast %cst_147 : f32 to vector<8x16xf32>
    %679 = arith.mulf %678, %677 : vector<8x16xf32>
    %680 = math.log %513 : vector<8x16xf32>
    %cst_148 = arith.constant 2.000000e+00 : f32
    %681 = vector.broadcast %cst_148 : f32 to vector<8x16xf32>
    %682 = arith.mulf %681, %680 : vector<8x16xf32>
    %683 = arith.subf %679, %682 : vector<8x16xf32>
    %684 = arith.mulf %513, %513 : vector<8x16xf32>
    %685 = arith.subf %505, %618 : vector<8x16xf32>
    %686 = arith.mulf %685, %685 : vector<8x16xf32>
    %687 = arith.addf %684, %686 : vector<8x16xf32>
    %688 = arith.mulf %626, %626 : vector<8x16xf32>
    %689 = arith.divf %687, %688 : vector<8x16xf32>
    %690 = arith.addf %683, %689 : vector<8x16xf32>
    %cst_149 = arith.constant 1.000000e+00 : f32
    %691 = vector.broadcast %cst_149 : f32 to vector<8x16xf32>
    %692 = arith.subf %690, %691 : vector<8x16xf32>
    %693 = arith.addf %580, %692 : vector<8x16xf32>
    %694 = vector.extract_strided_slice %0 {offsets = [48, 0], sizes = [8, 16], strides = [1, 1]} : vector<64x16xf32> to vector<8x16xf32>
    %695 = vector.extract_strided_slice %1 {offsets = [48, 0], sizes = [8, 32], strides = [1, 1]} : vector<64x32xf32> to vector<8x32xf32>
    %696 = vector.extract_strided_slice %2 {offsets = [48, 0], sizes = [8, 16], strides = [1, 1]} : vector<64x16xf32> to vector<8x16xf32>
    %697 = vector.extract_strided_slice %28 {offsets = [48, 0], sizes = [8, 32], strides = [1, 1]} : vector<64x32xf32> to vector<8x32xf32>
    %cst_150 = arith.constant dense<0.000000e+00> : vector<8x160xf32>
    %698 = tpu.matmul %656, %7, %cst_150 {dimension_numbers = #tpu.dot_dimension_numbers<[1], [0], [0], [1], [0, 0, 1, 1], [], []>} : vector<8x32xf32>, vector<32x160xf32>, vector<8x160xf32> -> vector<8x160xf32>
    %699 = arith.addf %698, %20 : vector<8x160xf32>
    %700 = vector.extract_strided_slice %699 {offsets = [0, 0], sizes = [8, 32], strides = [1, 1]} : vector<8x160xf32> to vector<8x32xf32>
    %701 = vector.extract_strided_slice %699 {offsets = [0, 32], sizes = [8, 32], strides = [1, 1]} : vector<8x160xf32> to vector<8x32xf32>
    %cst_151 = arith.constant 2.000000e+01 : f32
    %702 = vector.broadcast %cst_151 : f32 to vector<8x32xf32>
    %703 = arith.cmpf ogt, %701, %702 : vector<8x32xf32>
    %cst_152 = arith.constant 2.000000e+01 : f32
    %704 = vector.broadcast %cst_152 : f32 to vector<8x32xf32>
    %705 = arith.minimumf %701, %704 : vector<8x32xf32>
    %706 = math.exp %705 : vector<8x32xf32>
    %707 = math.log1p %706 : vector<8x32xf32>
    %708 = arith.select %703, %701, %707 : vector<8x32xi1>, vector<8x32xf32>
    %709 = vector.extract_strided_slice %699 {offsets = [0, 64], sizes = [8, 96], strides = [1, 1]} : vector<8x160xf32> to vector<8x96xf32>
    %710 = arith.addf %697, %656 : vector<8x32xf32>
    %cst_153 = arith.constant dense<0.000000e+00> : vector<8x64xf32>
    %711 = tpu.matmul %710, %4, %cst_153 {dimension_numbers = #tpu.dot_dimension_numbers<[1], [0], [0], [1], [0, 0, 1, 1], [], []>} : vector<8x32xf32>, vector<32x64xf32>, vector<8x64xf32> -> vector<8x64xf32>
    %712 = arith.addf %711, %11 : vector<8x64xf32>
    %713 = vector.extract_strided_slice %712 {offsets = [0, 0], sizes = [8, 32], strides = [1, 1]} : vector<8x64xf32> to vector<8x32xf32>
    %714 = vector.extract_strided_slice %712 {offsets = [0, 32], sizes = [8, 32], strides = [1, 1]} : vector<8x64xf32> to vector<8x32xf32>
    %cst_154 = arith.constant 2.000000e+01 : f32
    %715 = vector.broadcast %cst_154 : f32 to vector<8x32xf32>
    %716 = arith.cmpf ogt, %714, %715 : vector<8x32xf32>
    %cst_155 = arith.constant 2.000000e+01 : f32
    %717 = vector.broadcast %cst_155 : f32 to vector<8x32xf32>
    %718 = arith.minimumf %714, %717 : vector<8x32xf32>
    %719 = math.exp %718 : vector<8x32xf32>
    %720 = math.log1p %719 : vector<8x32xf32>
    %721 = arith.select %716, %714, %720 : vector<8x32xi1>, vector<8x32xf32>
    %722 = arith.mulf %695, %721 : vector<8x32xf32>
    %723 = arith.addf %722, %713 : vector<8x32xf32>
    %cst_156 = arith.constant dense<0.000000e+00> : vector<8x64xf32>
    %724 = tpu.matmul %723, %6, %cst_156 {dimension_numbers = #tpu.dot_dimension_numbers<[1], [0], [0], [1], [0, 0, 1, 1], [], []>} : vector<8x32xf32>, vector<32x64xf32>, vector<8x64xf32> -> vector<8x64xf32>
    %725 = arith.addf %724, %17 : vector<8x64xf32>
    %726 = vector.extract_strided_slice %725 {offsets = [0, 0], sizes = [8, 32], strides = [1, 1]} : vector<8x64xf32> to vector<8x32xf32>
    %727 = arith.addf %726, %656 : vector<8x32xf32>
    %728 = vector.extract_strided_slice %725 {offsets = [0, 32], sizes = [8, 32], strides = [1, 1]} : vector<8x64xf32> to vector<8x32xf32>
    %cst_157 = arith.constant dense<0.000000e+00> : vector<8x32xf32>
    %729 = tpu.matmul %727, %5, %cst_157 {dimension_numbers = #tpu.dot_dimension_numbers<[1], [0], [0], [1], [0, 0, 1, 1], [], []>} : vector<8x32xf32>, vector<32x32xf32>, vector<8x32xf32> -> vector<8x32xf32>
    %730 = arith.addf %729, %14 : vector<8x32xf32>
    %731 = vector.extract_strided_slice %730 {offsets = [0, 0], sizes = [8, 16], strides = [1, 1]} : vector<8x32xf32> to vector<8x16xf32>
    %732 = vector.extract_strided_slice %730 {offsets = [0, 16], sizes = [8, 16], strides = [1, 1]} : vector<8x32xf32> to vector<8x16xf32>
    %cst_158 = arith.constant 2.000000e+01 : f32
    %733 = vector.broadcast %cst_158 : f32 to vector<8x16xf32>
    %734 = arith.cmpf ogt, %732, %733 : vector<8x16xf32>
    %cst_159 = arith.constant 2.000000e+01 : f32
    %735 = vector.broadcast %cst_159 : f32 to vector<8x16xf32>
    %736 = arith.minimumf %732, %735 : vector<8x16xf32>
    %737 = math.exp %736 : vector<8x16xf32>
    %738 = math.log1p %737 : vector<8x16xf32>
    %739 = arith.select %734, %732, %738 : vector<8x16xi1>, vector<8x16xf32>
    %740 = arith.mulf %696, %739 : vector<8x16xf32>
    %741 = arith.addf %740, %731 : vector<8x16xf32>
    %cst_160 = arith.constant dense<0.000000e+00> : vector<8x96xf32>
    %742 = tpu.matmul %728, %8, %cst_160 {dimension_numbers = #tpu.dot_dimension_numbers<[1], [0], [0], [1], [0, 0, 1, 1], [], []>} : vector<8x32xf32>, vector<32x96xf32>, vector<8x96xf32> -> vector<8x96xf32>
    %743 = arith.addf %742, %23 : vector<8x96xf32>
    %744 = vector.extract_strided_slice %743 {offsets = [0, 0], sizes = [8, 32], strides = [1, 1]} : vector<8x96xf32> to vector<8x32xf32>
    %745 = vector.extract_strided_slice %709 {offsets = [0, 0], sizes = [8, 32], strides = [1, 1]} : vector<8x96xf32> to vector<8x32xf32>
    %746 = arith.addf %744, %745 : vector<8x32xf32>
    %747 = arith.negf %746 : vector<8x32xf32>
    %748 = math.exp %747 : vector<8x32xf32>
    %cst_161 = arith.constant 1.000000e+00 : f32
    %749 = vector.broadcast %cst_161 : f32 to vector<8x32xf32>
    %750 = arith.addf %749, %748 : vector<8x32xf32>
    %751 = arith.divf %749, %750 : vector<8x32xf32>
    %752 = vector.extract_strided_slice %743 {offsets = [0, 32], sizes = [8, 32], strides = [1, 1]} : vector<8x96xf32> to vector<8x32xf32>
    %753 = vector.extract_strided_slice %709 {offsets = [0, 32], sizes = [8, 32], strides = [1, 1]} : vector<8x96xf32> to vector<8x32xf32>
    %754 = arith.addf %752, %753 : vector<8x32xf32>
    %755 = arith.negf %754 : vector<8x32xf32>
    %756 = math.exp %755 : vector<8x32xf32>
    %cst_162 = arith.constant 1.000000e+00 : f32
    %757 = vector.broadcast %cst_162 : f32 to vector<8x32xf32>
    %758 = arith.addf %757, %756 : vector<8x32xf32>
    %759 = arith.divf %757, %758 : vector<8x32xf32>
    %760 = vector.extract_strided_slice %743 {offsets = [0, 64], sizes = [8, 32], strides = [1, 1]} : vector<8x96xf32> to vector<8x32xf32>
    %761 = vector.extract_strided_slice %709 {offsets = [0, 64], sizes = [8, 32], strides = [1, 1]} : vector<8x96xf32> to vector<8x32xf32>
    %762 = arith.mulf %751, %761 : vector<8x32xf32>
    %763 = arith.addf %760, %762 : vector<8x32xf32>
    %764 = math.tanh %763 : vector<8x32xf32>
    %cst_163 = arith.constant 1.000000e+00 : f32
    %765 = vector.broadcast %cst_163 : f32 to vector<8x32xf32>
    %766 = arith.subf %765, %759 : vector<8x32xf32>
    %767 = arith.mulf %766, %764 : vector<8x32xf32>
    %768 = arith.mulf %759, %656 : vector<8x32xf32>
    %769 = arith.addf %767, %768 : vector<8x32xf32>
    %770 = arith.subf %741, %694 : vector<8x16xf32>
    %771 = arith.mulf %770, %770 : vector<8x16xf32>
    %772 = arith.addf %659, %771 : vector<8x16xf32>
    %773 = math.log %721 : vector<8x32xf32>
    %cst_164 = arith.constant 2.000000e+00 : f32
    %774 = vector.broadcast %cst_164 : f32 to vector<8x32xf32>
    %775 = arith.mulf %774, %773 : vector<8x32xf32>
    %776 = math.log %708 : vector<8x32xf32>
    %cst_165 = arith.constant 2.000000e+00 : f32
    %777 = vector.broadcast %cst_165 : f32 to vector<8x32xf32>
    %778 = arith.mulf %777, %776 : vector<8x32xf32>
    %779 = arith.subf %775, %778 : vector<8x32xf32>
    %780 = arith.mulf %708, %708 : vector<8x32xf32>
    %781 = arith.subf %700, %713 : vector<8x32xf32>
    %782 = arith.mulf %781, %781 : vector<8x32xf32>
    %783 = arith.addf %780, %782 : vector<8x32xf32>
    %784 = arith.mulf %721, %721 : vector<8x32xf32>
    %785 = arith.divf %783, %784 : vector<8x32xf32>
    %786 = arith.addf %779, %785 : vector<8x32xf32>
    %cst_166 = arith.constant 1.000000e+00 : f32
    %787 = vector.broadcast %cst_166 : f32 to vector<8x32xf32>
    %788 = arith.subf %786, %787 : vector<8x32xf32>
    %789 = arith.addf %676, %788 : vector<8x32xf32>
    %790 = math.log %739 : vector<8x16xf32>
    %cst_167 = arith.constant 2.000000e+00 : f32
    %791 = vector.broadcast %cst_167 : f32 to vector<8x16xf32>
    %792 = arith.mulf %791, %790 : vector<8x16xf32>
    %793 = math.log %626 : vector<8x16xf32>
    %cst_168 = arith.constant 2.000000e+00 : f32
    %794 = vector.broadcast %cst_168 : f32 to vector<8x16xf32>
    %795 = arith.mulf %794, %793 : vector<8x16xf32>
    %796 = arith.subf %792, %795 : vector<8x16xf32>
    %797 = arith.mulf %626, %626 : vector<8x16xf32>
    %798 = arith.subf %618, %731 : vector<8x16xf32>
    %799 = arith.mulf %798, %798 : vector<8x16xf32>
    %800 = arith.addf %797, %799 : vector<8x16xf32>
    %801 = arith.mulf %739, %739 : vector<8x16xf32>
    %802 = arith.divf %800, %801 : vector<8x16xf32>
    %803 = arith.addf %796, %802 : vector<8x16xf32>
    %cst_169 = arith.constant 1.000000e+00 : f32
    %804 = vector.broadcast %cst_169 : f32 to vector<8x16xf32>
    %805 = arith.subf %803, %804 : vector<8x16xf32>
    %806 = arith.addf %693, %805 : vector<8x16xf32>
    %807 = vector.extract_strided_slice %0 {offsets = [56, 0], sizes = [8, 16], strides = [1, 1]} : vector<64x16xf32> to vector<8x16xf32>
    %808 = vector.extract_strided_slice %1 {offsets = [56, 0], sizes = [8, 32], strides = [1, 1]} : vector<64x32xf32> to vector<8x32xf32>
    %809 = vector.extract_strided_slice %2 {offsets = [56, 0], sizes = [8, 16], strides = [1, 1]} : vector<64x16xf32> to vector<8x16xf32>
    %810 = vector.extract_strided_slice %28 {offsets = [56, 0], sizes = [8, 32], strides = [1, 1]} : vector<64x32xf32> to vector<8x32xf32>
    %cst_170 = arith.constant dense<0.000000e+00> : vector<8x160xf32>
    %811 = tpu.matmul %769, %7, %cst_170 {dimension_numbers = #tpu.dot_dimension_numbers<[1], [0], [0], [1], [0, 0, 1, 1], [], []>} : vector<8x32xf32>, vector<32x160xf32>, vector<8x160xf32> -> vector<8x160xf32>
    %812 = arith.addf %811, %20 : vector<8x160xf32>
    %813 = vector.extract_strided_slice %812 {offsets = [0, 0], sizes = [8, 32], strides = [1, 1]} : vector<8x160xf32> to vector<8x32xf32>
    %814 = vector.extract_strided_slice %812 {offsets = [0, 32], sizes = [8, 32], strides = [1, 1]} : vector<8x160xf32> to vector<8x32xf32>
    %cst_171 = arith.constant 2.000000e+01 : f32
    %815 = vector.broadcast %cst_171 : f32 to vector<8x32xf32>
    %816 = arith.cmpf ogt, %814, %815 : vector<8x32xf32>
    %cst_172 = arith.constant 2.000000e+01 : f32
    %817 = vector.broadcast %cst_172 : f32 to vector<8x32xf32>
    %818 = arith.minimumf %814, %817 : vector<8x32xf32>
    %819 = math.exp %818 : vector<8x32xf32>
    %820 = math.log1p %819 : vector<8x32xf32>
    %821 = arith.select %816, %814, %820 : vector<8x32xi1>, vector<8x32xf32>
    %822 = arith.addf %810, %769 : vector<8x32xf32>
    %cst_173 = arith.constant dense<0.000000e+00> : vector<8x64xf32>
    %823 = tpu.matmul %822, %4, %cst_173 {dimension_numbers = #tpu.dot_dimension_numbers<[1], [0], [0], [1], [0, 0, 1, 1], [], []>} : vector<8x32xf32>, vector<32x64xf32>, vector<8x64xf32> -> vector<8x64xf32>
    %824 = arith.addf %823, %11 : vector<8x64xf32>
    %825 = vector.extract_strided_slice %824 {offsets = [0, 0], sizes = [8, 32], strides = [1, 1]} : vector<8x64xf32> to vector<8x32xf32>
    %826 = vector.extract_strided_slice %824 {offsets = [0, 32], sizes = [8, 32], strides = [1, 1]} : vector<8x64xf32> to vector<8x32xf32>
    %cst_174 = arith.constant 2.000000e+01 : f32
    %827 = vector.broadcast %cst_174 : f32 to vector<8x32xf32>
    %828 = arith.cmpf ogt, %826, %827 : vector<8x32xf32>
    %cst_175 = arith.constant 2.000000e+01 : f32
    %829 = vector.broadcast %cst_175 : f32 to vector<8x32xf32>
    %830 = arith.minimumf %826, %829 : vector<8x32xf32>
    %831 = math.exp %830 : vector<8x32xf32>
    %832 = math.log1p %831 : vector<8x32xf32>
    %833 = arith.select %828, %826, %832 : vector<8x32xi1>, vector<8x32xf32>
    %834 = arith.mulf %808, %833 : vector<8x32xf32>
    %835 = arith.addf %834, %825 : vector<8x32xf32>
    %cst_176 = arith.constant dense<0.000000e+00> : vector<8x64xf32>
    %836 = tpu.matmul %835, %6, %cst_176 {dimension_numbers = #tpu.dot_dimension_numbers<[1], [0], [0], [1], [0, 0, 1, 1], [], []>} : vector<8x32xf32>, vector<32x64xf32>, vector<8x64xf32> -> vector<8x64xf32>
    %837 = arith.addf %836, %17 : vector<8x64xf32>
    %838 = vector.extract_strided_slice %837 {offsets = [0, 0], sizes = [8, 32], strides = [1, 1]} : vector<8x64xf32> to vector<8x32xf32>
    %839 = arith.addf %838, %769 : vector<8x32xf32>
    %cst_177 = arith.constant dense<0.000000e+00> : vector<8x32xf32>
    %840 = tpu.matmul %839, %5, %cst_177 {dimension_numbers = #tpu.dot_dimension_numbers<[1], [0], [0], [1], [0, 0, 1, 1], [], []>} : vector<8x32xf32>, vector<32x32xf32>, vector<8x32xf32> -> vector<8x32xf32>
    %841 = arith.addf %840, %14 : vector<8x32xf32>
    %842 = vector.extract_strided_slice %841 {offsets = [0, 0], sizes = [8, 16], strides = [1, 1]} : vector<8x32xf32> to vector<8x16xf32>
    %843 = vector.extract_strided_slice %841 {offsets = [0, 16], sizes = [8, 16], strides = [1, 1]} : vector<8x32xf32> to vector<8x16xf32>
    %cst_178 = arith.constant 2.000000e+01 : f32
    %844 = vector.broadcast %cst_178 : f32 to vector<8x16xf32>
    %845 = arith.cmpf ogt, %843, %844 : vector<8x16xf32>
    %cst_179 = arith.constant 2.000000e+01 : f32
    %846 = vector.broadcast %cst_179 : f32 to vector<8x16xf32>
    %847 = arith.minimumf %843, %846 : vector<8x16xf32>
    %848 = math.exp %847 : vector<8x16xf32>
    %849 = math.log1p %848 : vector<8x16xf32>
    %850 = arith.select %845, %843, %849 : vector<8x16xi1>, vector<8x16xf32>
    %851 = arith.mulf %809, %850 : vector<8x16xf32>
    %852 = arith.addf %851, %842 : vector<8x16xf32>
    %853 = arith.subf %852, %807 : vector<8x16xf32>
    %854 = arith.mulf %853, %853 : vector<8x16xf32>
    %855 = arith.addf %772, %854 : vector<8x16xf32>
    %856 = math.log %833 : vector<8x32xf32>
    %cst_180 = arith.constant 2.000000e+00 : f32
    %857 = vector.broadcast %cst_180 : f32 to vector<8x32xf32>
    %858 = arith.mulf %857, %856 : vector<8x32xf32>
    %859 = math.log %821 : vector<8x32xf32>
    %cst_181 = arith.constant 2.000000e+00 : f32
    %860 = vector.broadcast %cst_181 : f32 to vector<8x32xf32>
    %861 = arith.mulf %860, %859 : vector<8x32xf32>
    %862 = arith.subf %858, %861 : vector<8x32xf32>
    %863 = arith.mulf %821, %821 : vector<8x32xf32>
    %864 = arith.subf %813, %825 : vector<8x32xf32>
    %865 = arith.mulf %864, %864 : vector<8x32xf32>
    %866 = arith.addf %863, %865 : vector<8x32xf32>
    %867 = arith.mulf %833, %833 : vector<8x32xf32>
    %868 = arith.divf %866, %867 : vector<8x32xf32>
    %869 = arith.addf %862, %868 : vector<8x32xf32>
    %cst_182 = arith.constant 1.000000e+00 : f32
    %870 = vector.broadcast %cst_182 : f32 to vector<8x32xf32>
    %871 = arith.subf %869, %870 : vector<8x32xf32>
    %872 = arith.addf %789, %871 : vector<8x32xf32>
    %873 = math.log %850 : vector<8x16xf32>
    %cst_183 = arith.constant 2.000000e+00 : f32
    %874 = vector.broadcast %cst_183 : f32 to vector<8x16xf32>
    %875 = arith.mulf %874, %873 : vector<8x16xf32>
    %876 = math.log %739 : vector<8x16xf32>
    %cst_184 = arith.constant 2.000000e+00 : f32
    %877 = vector.broadcast %cst_184 : f32 to vector<8x16xf32>
    %878 = arith.mulf %877, %876 : vector<8x16xf32>
    %879 = arith.subf %875, %878 : vector<8x16xf32>
    %880 = arith.mulf %739, %739 : vector<8x16xf32>
    %881 = arith.subf %731, %842 : vector<8x16xf32>
    %882 = arith.mulf %881, %881 : vector<8x16xf32>
    %883 = arith.addf %880, %882 : vector<8x16xf32>
    %884 = arith.mulf %850, %850 : vector<8x16xf32>
    %885 = arith.divf %883, %884 : vector<8x16xf32>
    %886 = arith.addf %879, %885 : vector<8x16xf32>
    %cst_185 = arith.constant 1.000000e+00 : f32
    %887 = vector.broadcast %cst_185 : f32 to vector<8x16xf32>
    %888 = arith.subf %886, %887 : vector<8x16xf32>
    %889 = arith.addf %806, %888 : vector<8x16xf32>
    %890 = tpu.concatenate %80, %176, %289, %402, %515, %628, %741, %852 in 1 : vector<8x16xf32>, vector<8x16xf32>, vector<8x16xf32>, vector<8x16xf32>, vector<8x16xf32>, vector<8x16xf32>, vector<8x16xf32>, vector<8x16xf32> -> vector<8x128xf32>
    %c0_186 = arith.constant 0 : index
    %c0_187 = arith.constant 0 : index
    %891 = vector.load %arg15[%c0_186, %c0_187] : memref<8x128xf32, #tpu.memory_space<vmem>>, vector<8x128xf32>
    tpu.vector_store %arg15[%c0_186, %c0_187], %890 {strides = array<i32>} : memref<8x128xf32, #tpu.memory_space<vmem>>, vector<8x128xf32>,
    %892 = tpu.iota {dimensions = array<i32: 0>} : vector<8x1xi32>
    %c2_i32 = arith.constant 2 : i32
    %893 = vector.broadcast %c2_i32 : i32 to vector<8x1xi32>
    %894 = arith.cmpi slt, %892, %893 : vector<8x1xi32>
    %895 = arith.extui %894 : vector<8x1xi1> to vector<8x1xi32>
    %896 = arith.sitofp %895 : vector<8x1xi32> to vector<8x1xf32>
    %897 = vector.broadcast %896 : vector<8x1xf32> to vector<8x16xf32>
    %898 = arith.mulf %855, %897 : vector<8x16xf32>
    %899 = vector.shape_cast %898 : vector<8x16xf32> to vector<1x8x16xf32>
    %cst_188 = arith.constant dense<0.000000e+00> : vector<1xf32>
    %900 = vector.multi_reduction <add>, %899, %cst_188 [1, 2] : vector<1x8x16xf32> to vector<1xf32>
    %901 = vector.shape_cast %900 : vector<1xf32> to vector<1x1x1xf32>
    %902 = vector.extract %901[0, 0, 0] : f32 from vector<1x1x1xf32>
    %cst_189 = arith.constant 2.560000e+02 : f32
    %903 = arith.divf %902, %cst_189 : f32
    %c0_190 = arith.constant 0 : index
    %c0_191 = arith.constant 0 : index
    %904 = memref.load %arg16[%c0_190, %c0_191] : memref<1x1xf32, #tpu.memory_space<smem>>
    memref.store %903, %arg16[%c0_190, %c0_191] : memref<1x1xf32, #tpu.memory_space<smem>>
    %905 = vector.broadcast %896 : vector<8x1xf32> to vector<8x32xf32>
    %906 = arith.mulf %872, %905 : vector<8x32xf32>
    %907 = vector.shape_cast %906 : vector<8x32xf32> to vector<1x8x32xf32>
    %cst_192 = arith.constant dense<0.000000e+00> : vector<1xf32>
    %908 = vector.multi_reduction <add>, %907, %cst_192 [1, 2] : vector<1x8x32xf32> to vector<1xf32>
    %909 = vector.shape_cast %908 : vector<1xf32> to vector<1x1x1xf32>
    %910 = vector.extract %909[0, 0, 0] : f32 from vector<1x1x1xf32>
    %cst_193 = arith.constant 5.000000e-01 : f32
    %911 = arith.mulf %cst_193, %910 : f32
    %c0_194 = arith.constant 0 : index
    %c0_195 = arith.constant 0 : index
    %912 = memref.load %arg17[%c0_194, %c0_195] : memref<1x1xf32, #tpu.memory_space<smem>>
    memref.store %911, %arg17[%c0_194, %c0_195] : memref<1x1xf32, #tpu.memory_space<smem>>
    %913 = vector.broadcast %896 : vector<8x1xf32> to vector<8x16xf32>
    %914 = arith.mulf %889, %913 : vector<8x16xf32>
    %915 = vector.shape_cast %914 : vector<8x16xf32> to vector<1x8x16xf32>
    %cst_196 = arith.constant dense<0.000000e+00> : vector<1xf32>
    %916 = vector.multi_reduction <add>, %915, %cst_196 [1, 2] : vector<1x8x16xf32> to vector<1xf32>
    %917 = vector.shape_cast %916 : vector<1xf32> to vector<1x1x1xf32>
    %918 = vector.extract %917[0, 0, 0] : f32 from vector<1x1x1xf32>
    %cst_197 = arith.constant 5.000000e-01 : f32
    %919 = arith.mulf %cst_197, %918 : f32
    %c0_198 = arith.constant 0 : index
    %c0_199 = arith.constant 0 : index
    %920 = memref.load %arg18[%c0_198, %c0_199] : memref<1x1xf32, #tpu.memory_space<smem>>
    memref.store %919, %arg18[%c0_198, %c0_199] : memref<1x1xf32, #tpu.memory_space<smem>>
    return
  }
}

</mosaic_0001>

<llo_original>
// kernel: sisvae_forward.1
$region0: #{sisvae_forward.1}
  #allocation0 [shape = 'u32[]', space=smem, size = 0x4, offset = 0x4, fixed_abs, tag = 'smem constant byte address 0x4 - core index']
  #allocation1 [shape = 'u32[144,128]{1,0:T(1,128)}', space=vmem, size = 0x12000, scoped, tag = 'internal scratch']
  %s0 = inlined_call_operand.vmem [shape: f32[64,16], index: 0, kind: input, shape index: {}]
  %s1 = inlined_call_operand.vmem [shape: f32[64,32], index: 1, kind: input, shape index: {}]
  %s2 = inlined_call_operand.vmem [shape: f32[64,16], index: 2, kind: input, shape index: {}]
  %s3 = inlined_call_operand.vmem [shape: f32[16,32], index: 3, kind: input, shape index: {}]
  %s4 = inlined_call_operand.vmem [shape: f32[1,32], index: 4, kind: input, shape index: {}]
  %s5 = inlined_call_operand.vmem [shape: f32[32,64], index: 5, kind: input, shape index: {}]
  %s6 = inlined_call_operand.vmem [shape: f32[1,64], index: 6, kind: input, shape index: {}]
  %s7 = inlined_call_operand.vmem [shape: f32[32,32], index: 7, kind: input, shape index: {}]
  %s8 = inlined_call_operand.vmem [shape: f32[1,32], index: 8, kind: input, shape index: {}]
  %s9 = inlined_call_operand.vmem [shape: f32[32,64], index: 9, kind: input, shape index: {}]
  %s10 = inlined_call_operand.vmem [shape: f32[1,64], index: 10, kind: input, shape index: {}]
  %s11 = inlined_call_operand.vmem [shape: f32[32,160], index: 11, kind: input, shape index: {}]
  %s12 = inlined_call_operand.vmem [shape: f32[1,160], index: 12, kind: input, shape index: {}]
  %s13 = inlined_call_operand.vmem [shape: f32[32,96], index: 13, kind: input, shape index: {}]
  %s14 = inlined_call_operand.vmem [shape: f32[1,96], index: 14, kind: input, shape index: {}]
  %s15 = inlined_call_operand.vmem [shape: f32[8,128], index: 15, kind: output, shape index: {0}]
  %s16 = inlined_call_operand.hbm [shape: f32[1,1], index: 16, kind: output, shape index: {1}]
  %s17 = inlined_call_operand.hbm [shape: f32[1,1], index: 17, kind: output, shape index: {2}]
  %s18 = inlined_call_operand.hbm [shape: f32[1,1], index: 18, kind: output, shape index: {3}]
  %19 = xla_tuple %s15, %s16, %s17, %s18
  %s20 = sld [smem:[#allocation0]]
  $region94: #{sisvae_forward.1} parent=0
    _
  %s22 = ssub.s32 1, %s20
  %s23 = scalar_select 0, %s22, %s20
  $region1: #{sisvae_forward.1} parent=0
    #allocation2 [shape = 'u8[512]{0}', space=smem, size = 0x200, scoped, tag = 'output window, operand 1, single buffered']
    #allocation3 [shape = 's32[1]{0}', space=sflag, size = 0x4, scoped, tag = 'scoped memory for sisvae_forward.1']
    #allocation4 [shape = 'u8[512]{0}', space=smem, size = 0x200, scoped, tag = 'output window, operand 2, single buffered']
    #allocation5 [shape = 's32[1]{0}', space=sflag, size = 0x4, scoped, tag = 'scoped memory for sisvae_forward.1']
    #allocation6 [shape = 'u8[512]{0}', space=smem, size = 0x200, scoped, tag = 'output window, operand 3, single buffered']
    %24 = vsyncpa [#allocation3], 0
    %25 = vsyncpa [#allocation5], 0
    // Predicated region
    $region2: #{sisvae_forward.1} parent=1 // pred_check
      _
    $region3: #{sisvae_forward.1} parent=1 // pred_check_branch
      %27 = sbr.rel (0) target = $region5
    $region4: #{sisvae_forward.1} parent=1 // pred_region
      _
    $region5: #{sisvae_forward.1} parent=1 // pred_fallthru
      _
    // Predicated region
    $region6: #{sisvae_forward.1} parent=1 // pred_check
      _
    $region7: #{sisvae_forward.1} parent=1 // pred_check_branch
      %29 = sbr.rel (0) target = $region9
    $region8: #{sisvae_forward.1} parent=1 // pred_region
      _
    $region9: #{sisvae_forward.1} parent=1 // pred_fallthru
      _
    // Predicated region
    $region10: #{sisvae_forward.1} parent=1 // pred_check
      _
    $region11: #{sisvae_forward.1} parent=1 // pred_check_branch
      %31 = sbr.rel (0) target = $region13
    $region12: #{sisvae_forward.1} parent=1 // pred_region
      _
    $region13: #{sisvae_forward.1} parent=1 // pred_fallthru
      _
    // Predicated region
    $region14: #{sisvae_forward.1} parent=1 // pred_check
      _
    $region15: #{sisvae_forward.1} parent=1 // pred_check_branch
      %33 = sbr.rel (0) target = $region17
    $region16: #{sisvae_forward.1} parent=1 // pred_region
      _
    $region17: #{sisvae_forward.1} parent=1 // pred_fallthru
      _
    // Predicated region
    $region18: #{sisvae_forward.1} parent=1 // pred_check
      _
    $region19: #{sisvae_forward.1} parent=1 // pred_check_branch
      %35 = sbr.rel (0) target = $region21
    $region20: #{sisvae_forward.1} parent=1 // pred_region
      _
    $region21: #{sisvae_forward.1} parent=1 // pred_fallthru
      _
    // Predicated region
    $region22: #{sisvae_forward.1} parent=1 // pred_check
      _
    $region23: #{sisvae_forward.1} parent=1 // pred_check_branch
      %37 = sbr.rel (0) target = $region25
    $region24: #{sisvae_forward.1} parent=1 // pred_region
      _
    $region25: #{sisvae_forward.1} parent=1 // pred_fallthru
      _
    // Predicated region
    $region26: #{sisvae_forward.1} parent=1 // pred_check
      _
    $region27: #{sisvae_forward.1} parent=1 // pred_check_branch
      %39 = sbr.rel (0) target = $region29
    $region28: #{sisvae_forward.1} parent=1 // pred_region
      _
    $region29: #{sisvae_forward.1} parent=1 // pred_fallthru
      _
    // Predicated region
    $region30: #{sisvae_forward.1} parent=1 // pred_check
      _
    $region31: #{sisvae_forward.1} parent=1 // pred_check_branch
      %41 = sbr.rel (0) target = $region33
    $region32: #{sisvae_forward.1} parent=1 // pred_region
      _
    $region33: #{sisvae_forward.1} parent=1 // pred_fallthru
      _
    // Predicated region
    $region34: #{sisvae_forward.1} parent=1 // pred_check
      _
    $region35: #{sisvae_forward.1} parent=1 // pred_check_branch
      %43 = sbr.rel (0) target = $region37
    $region36: #{sisvae_forward.1} parent=1 // pred_region
      _
    $region37: #{sisvae_forward.1} parent=1 // pred_fallthru
      _
    // Predicated region
    $region38: #{sisvae_forward.1} parent=1 // pred_check
      _
    $region39: #{sisvae_forward.1} parent=1 // pred_check_branch
      %45 = sbr.rel (0) target = $region41
    $region40: #{sisvae_forward.1} parent=1 // pred_region
      _
    $region41: #{sisvae_forward.1} parent=1 // pred_fallthru
      _
    // Predicated region
    $region42: #{sisvae_forward.1} parent=1 // pred_check
      _
    $region43: #{sisvae_forward.1} parent=1 // pred_check_branch
      %47 = sbr.rel (0) target = $region45
    $region44: #{sisvae_forward.1} parent=1 // pred_region
      _
    $region45: #{sisvae_forward.1} parent=1 // pred_fallthru
      _
    // Predicated region
    $region46: #{sisvae_forward.1} parent=1 // pred_check
      _
    $region47: #{sisvae_forward.1} parent=1 // pred_check_branch
      %49 = sbr.rel (0) target = $region49
    $region48: #{sisvae_forward.1} parent=1 // pred_region
      _
    $region49: #{sisvae_forward.1} parent=1 // pred_fallthru
      _
    // Predicated region
    $region50: #{sisvae_forward.1} parent=1 // pred_check
      _
    $region51: #{sisvae_forward.1} parent=1 // pred_check_branch
      %51 = sbr.rel (0) target = $region53
    $region52: #{sisvae_forward.1} parent=1 // pred_region
      _
    $region53: #{sisvae_forward.1} parent=1 // pred_fallthru
      _
    // Predicated region
    $region54: #{sisvae_forward.1} parent=1 // pred_check
      _
    $region55: #{sisvae_forward.1} parent=1 // pred_check_branch
      %53 = sbr.rel (0) target = $region57
    $region56: #{sisvae_forward.1} parent=1 // pred_region
      _
    $region57: #{sisvae_forward.1} parent=1 // pred_fallthru
      _
    // Predicated region
    $region58: #{sisvae_forward.1} parent=1 // pred_check
      _
    $region59: #{sisvae_forward.1} parent=1 // pred_check_branch
      %55 = sbr.rel (0) target = $region61
    $region60: #{sisvae_forward.1} parent=1 // pred_region
      _
    $region61: #{sisvae_forward.1} parent=1 // pred_fallthru
      _
    %v56 = vld [vmem:[%s0] sm:$0xff]
    %v57 = vld [vmem:[%s0 + $0x8] sm:$0xff]
    %v58 = vld [vmem:[%s0 + $0x10] sm:$0xff]
    %v59 = vld [vmem:[%s0 + $0x18] sm:$0xff]
    %v60 = vld [vmem:[%s0 + $0x20] sm:$0xff]
    %v61 = vld [vmem:[%s0 + $0x28] sm:$0xff]
    %v62 = vld [vmem:[%s0 + $0x30] sm:$0xff]
    %v63 = vld [vmem:[%s0 + $0x38] sm:$0xff]
    %v64 = vld [vmem:[%s1] sm:$0xff]
    %v65 = vld [vmem:[%s1 + $0x8] sm:$0xff]
    %v66 = vld [vmem:[%s1 + $0x10] sm:$0xff]
    %v67 = vld [vmem:[%s1 + $0x18] sm:$0xff]
    %v68 = vld [vmem:[%s1 + $0x20] sm:$0xff]
    %v69 = vld [vmem:[%s1 + $0x28] sm:$0xff]
    %v70 = vld [vmem:[%s1 + $0x30] sm:$0xff]
    %v71 = vld [vmem:[%s1 + $0x38] sm:$0xff]
    %v72 = vld [vmem:[%s2] sm:$0xff]
    %v73 = vld [vmem:[%s2 + $0x8] sm:$0xff]
    %v74 = vld [vmem:[%s2 + $0x10] sm:$0xff]
    %v75 = vld [vmem:[%s2 + $0x18] sm:$0xff]
    %v76 = vld [vmem:[%s2 + $0x20] sm:$0xff]
    %v77 = vld [vmem:[%s2 + $0x28] sm:$0xff]
    %v78 = vld [vmem:[%s2 + $0x30] sm:$0xff]
    %v79 = vld [vmem:[%s2 + $0x38] sm:$0xff]
    %v80 = vld [vmem:[%s3] sm:$0xff]
    %v81 = vld [vmem:[%s3 + $0x8] sm:$0xff]
    %v82 = vld [vmem:[%s5] sm:$0xff]
    %v83 = vld [vmem:[%s5 + $0x8] sm:$0xff]
    %v84 = vld [vmem:[%s5 + $0x10] sm:$0xff]
    %v85 = vld [vmem:[%s5 + $0x18] sm:$0xff]
    %v86 = vld [vmem:[%s7] sm:$0xff]
    %v87 = vld [vmem:[%s7 + $0x8] sm:$0xff]
    %v88 = vld [vmem:[%s7 + $0x10] sm:$0xff]
    %v89 = vld [vmem:[%s7 + $0x18] sm:$0xff]
    %v90 = vld [vmem:[%s9] sm:$0xff]
    %v91 = vld [vmem:[%s9 + $0x8] sm:$0xff]
    %v92 = vld [vmem:[%s9 + $0x10] sm:$0xff]
    %v93 = vld [vmem:[%s9 + $0x18] sm:$0xff]
    %v94 = vld [vmem:[%s11] sm:$0xff]
    %v95 = vld [vmem:[%s11 + $0x8] sm:$0xff]
    %v96 = vld [vmem:[%s11 + $0x10] sm:$0xff]
    %v97 = vld [vmem:[%s11 + $0x18] sm:$0xff]
    %v98 = vld [vmem:[%s11 + $0x20] sm:$0xff]
    %v99 = vld [vmem:[%s11 + $0x28] sm:$0xff]
    %v100 = vld [vmem:[%s11 + $0x30] sm:$0xff]
    %v101 = vld [vmem:[%s11 + $0x38] sm:$0xff]
    %v102 = vld [vmem:[%s13] sm:$0xff]
    %v103 = vld [vmem:[%s13 + $0x8] sm:$0xff]
    %v104 = vld [vmem:[%s13 + $0x10] sm:$0xff]
    %v105 = vld [vmem:[%s13 + $0x18] sm:$0xff]
    %v106 = vld [vmem:[%s6] sm:$0x1]
    %v108 = vlaneseq
    %v109 = vshrl.u32 %v108, 7
    %v110 = vsub.s32 0, %v109
    %v111 = vrot.slane %v106, %v110
    %v113 = vld [vmem:[%s8] sm:$0x1]
    %v115 = vlaneseq
    %v116 = vshrl.u32 %v115, 7
    %v117 = vsub.s32 0, %v116
    %v118 = vrot.slane %v113, %v117
    %v120 = vld [vmem:[%s10] sm:$0x1]
    %v122 = vlaneseq
    %v123 = vshrl.u32 %v122, 7
    %v124 = vsub.s32 0, %v123
    %v125 = vrot.slane %v120, %v124
    %v127 = vld [vmem:[%s12] sm:$0x3]
    %v129 = vlaneseq
    %v130 = vshrl.u32 %v129, 7
    %v131 = vsub.s32 0, %v130
    %v132 = vrot.slane %v127, %v131
    %v133 = vlaneseq
    %v134 = vshrl.u32 %v133, 7
    %v135 = vsub.s32 1, %v134
    %v136 = vrot.slane %v127, %v135
    %v139 = vld [vmem:[%s14] sm:$0x1]
    %v141 = vlaneseq
    %v142 = vshrl.u32 %v141, 7
    %v143 = vsub.s32 0, %v142
    %v144 = vrot.slane %v139, %v143
    %v146 = vld [vmem:[%s4] sm:$0x1]
    %v148 = vlaneseq
    %v149 = vshrl.u32 %v148, 7
    %v150 = vsub.s32 0, %v149
    %v151 = vrot.slane %v146, %v150
    %vm153 = vcmask 130048
    %v155 = vsel %vm153, %v56, 0
    %v158 = vsel %vm153, %v57, 0
    %v161 = vsel %vm153, %v58, 0
    %v164 = vsel %vm153, %v59, 0
    %v167 = vsel %vm153, %v60, 0
    %v170 = vsel %vm153, %v61, 0
    %v173 = vsel %vm153, %v62, 0
    %v176 = vsel %vm153, %v63, 0
    %178 = vmatprep.subr.mxu0 0.0
    %179 = vmatpush1.msra.mxu0 0.0
    %180 = vmatprep.subr.mxu0 0.0
    %181 = vmatpush1.msra.mxu0 0.0
    %182 = vmatprep.subr.mxu0 0.0
    %183 = vmatpush1.msra.mxu0 0.0
    %184 = vmatprep.subr.mxu0 0.0
    %185 = vmatpush1.msra.mxu0 0.0
    %186 = vmatprep.subr.mxu0 0.0
    %187 = vmatpush1.msra.mxu0 0.0
    %188 = vmatprep.subr.mxu0 0.0
    %189 = vmatpush1.msra.mxu0 0.0
    %190 = vmatprep.subr.mxu0 0.0
    %191 = vmatpush1.msra.mxu0 0.0
    %192 = vmatprep.subr.mxu0 0.0
    %193 = vmatpush1.msra.mxu0 0.0
    %194 = vmatprep.subr.mxu0 0.0
    %195 = vmatpush1.msra.mxu0 0.0
    %196 = vmatprep.subr.mxu0 0.0
    %197 = vmatpush1.msra.mxu0 0.0
    %198 = vmatprep.subr.mxu0 0.0
    %199 = vmatpush1.msra.mxu0 0.0
    %200 = vmatprep.subr.mxu0 0.0
    %201 = vmatpush1.msra.mxu0 0.0
    %202 = vmatprep.subr.mxu0 0.0
    %203 = vmatpush1.msra.mxu0 0.0
    %204 = vmatprep.subr.mxu0 0.0
    %205 = vmatpush1.msra.mxu0 0.0
    %206 = vmatprep.subr.mxu0 0.0
    %207 = vmatpush1.msra.mxu0 %v81
    %208 = vmatprep.subr.mxu0 0.0
    %209 = vmatpush1.msra.mxu0 %v80
    %210 = vmatprep.subr.mxu0 0.0
    %211 = vmatpush2.msra.mxu0 0.0
    %212 = vmatprep.subr.mxu0 0.0
    %213 = vmatpush2.msra.mxu0 0.0
    %214 = vmatprep.subr.mxu0 0.0
    %215 = vmatpush2.msra.mxu0 0.0
    %216 = vmatprep.subr.mxu0 0.0
    %217 = vmatpush2.msra.mxu0 0.0
    %218 = vmatprep.subr.mxu0 0.0
    %219 = vmatpush2.msra.mxu0 0.0
    %220 = vmatprep.subr.mxu0 0.0
    %221 = vmatpush2.msra.mxu0 0.0
    %222 = vmatprep.subr.mxu0 0.0
    %223 = vmatpush2.msra.mxu0 0.0
    %224 = vmatprep.subr.mxu0 0.0
    %225 = vmatpush2.msra.mxu0 0.0
    %226 = vmatprep.subr.mxu0 0.0
    %227 = vmatpush2.msra.mxu0 0.0
    %228 = vmatprep.subr.mxu0 0.0
    %229 = vmatpush2.msra.mxu0 0.0
    %230 = vmatprep.subr.mxu0 0.0
    %231 = vmatpush2.msra.mxu0 0.0
    %232 = vmatprep.subr.mxu0 0.0
    %233 = vmatpush2.msra.mxu0 0.0
    %234 = vmatprep.subr.mxu0 0.0
    %235 = vmatpush2.msra.mxu0 0.0
    %236 = vmatprep.subr.mxu0 0.0
    %237 = vmatpush2.msra.mxu0 0.0
    %238 = vmatprep.subr.mxu0 0.0
    %239 = vmatpush2.msra.mxu0 0.0
    %240 = vmatprep.subr.mxu0 0.0
    %241 = vmatpush2.msra.mxu0 0.0
    %242 = vmatprep.mubr.f32.mxu0 0.0
    %243 = vmatmul.mubr.f32.gmra.mxu0 %v155
    %v244 = vpop.f32.mrf.mxu0
    %v245 = vadd.f32 %v151, %v244
    %v246 = vpop.f32.mrf.mxu0
    %247 = vmatprep.mubr.f32.mxu0 0.0
    %248 = vmatmul.mubr.f32.gmra.mxu0 %v158
    %v249 = vpop.f32.mrf.mxu0
    %v250 = vadd.f32 %v151, %v249
    %v251 = vpop.f32.mrf.mxu0
    %252 = vmatprep.mubr.f32.mxu0 0.0
    %253 = vmatmul.mubr.f32.gmra.mxu0 %v161
    %v254 = vpop.f32.mrf.mxu0
    %v255 = vadd.f32 %v151, %v254
    %v256 = vpop.f32.mrf.mxu0
    %257 = vmatprep.mubr.f32.mxu0 0.0
    %258 = vmatmul.mubr.f32.gmra.mxu0 %v164
    %v259 = vpop.f32.mrf.mxu0
    %v260 = vadd.f32 %v151, %v259
    %v261 = vpop.f32.mrf.mxu0
    %262 = vmatprep.mubr.f32.mxu0 0.0
    %263 = vmatmul.mubr.f32.gmra.mxu0 %v167
    %v264 = vpop.f32.mrf.mxu0
    %v265 = vadd.f32 %v151, %v264
    %v266 = vpop.f32.mrf.mxu0
    %267 = vmatprep.mubr.f32.mxu0 0.0
    %268 = vmatmul.mubr.f32.gmra.mxu0 %v170
    %v269 = vpop.f32.mrf.mxu0
    %v270 = vadd.f32 %v151, %v269
    %v271 = vpop.f32.mrf.mxu0
    %272 = vmatprep.mubr.f32.mxu0 0.0
    %273 = vmatmul.mubr.f32.gmra.mxu0 %v173
    %v274 = vpop.f32.mrf.mxu0
    %v275 = vadd.f32 %v151, %v274
    %v276 = vpop.f32.mrf.mxu0
    %277 = vmatprep.mubr.f32.mxu0 0.0
    %278 = vmatmul.mubr.f32.gmra.mxu0 %v176
    %v279 = vpop.f32.mrf.mxu0
    %v280 = vadd.f32 %v151, %v279
    %v281 = vpop.f32.mrf.mxu0
    %282 = vdwg.mxu0
    %vm283 = vcmask 261120
    %v285 = vsel %vm283, 0.0, 0
    %287 = vmatprep.subr.mxu0 0.0
    %288 = vmatpush1.msra.mxu0 0.0
    %289 = vmatprep.subr.mxu0 0.0
    %290 = vmatpush1.msra.mxu0 0.0
    %291 = vmatprep.subr.mxu0 0.0
    %292 = vmatpush1.msra.mxu0 0.0
    %293 = vmatprep.subr.mxu0 0.0
    %294 = vmatpush1.msra.mxu0 0.0
    %295 = vmatprep.subr.mxu0 0.0
    %296 = vmatpush1.msra.mxu0 0.0
    %297 = vmatprep.subr.mxu0 0.0
    %298 = vmatpush1.msra.mxu0 0.0
    %299 = vmatprep.subr.mxu0 0.0
    %300 = vmatpush1.msra.mxu0 0.0
    %301 = vmatprep.subr.mxu0 0.0
    %302 = vmatpush1.msra.mxu0 0.0
    %303 = vmatprep.subr.mxu0 0.0
    %304 = vmatpush1.msra.mxu0 0.0
    %305 = vmatprep.subr.mxu0 0.0
    %306 = vmatpush1.msra.mxu0 0.0
    %307 = vmatprep.subr.mxu0 0.0
    %308 = vmatpush1.msra.mxu0 0.0
    %309 = vmatprep.subr.mxu0 0.0
    %310 = vmatpush1.msra.mxu0 0.0
    %311 = vmatprep.subr.mxu0 %v101
    %312 = vmatpush1.msra.mxu0 %v100
    %313 = vmatprep.subr.mxu0 %v99
    %314 = vmatpush1.msra.mxu0 %v98
    %315 = vmatprep.subr.mxu0 %v97
    %316 = vmatpush1.msra.mxu0 %v96
    %317 = vmatprep.subr.mxu0 %v95
    %318 = vmatpush1.msra.mxu0 %v94
    %319 = vmatprep.subr.mxu0 0.0
    %320 = vmatpush2.msra.mxu0 0.0
    %321 = vmatprep.subr.mxu0 0.0
    %322 = vmatpush2.msra.mxu0 0.0
    %323 = vmatprep.subr.mxu0 0.0
    %324 = vmatpush2.msra.mxu0 0.0
    %325 = vmatprep.subr.mxu0 0.0
    %326 = vmatpush2.msra.mxu0 0.0
    %327 = vmatprep.subr.mxu0 0.0
    %328 = vmatpush2.msra.mxu0 0.0
    %329 = vmatprep.subr.mxu0 0.0
    %330 = vmatpush2.msra.mxu0 0.0
    %331 = vmatprep.subr.mxu0 0.0
    %332 = vmatpush2.msra.mxu0 0.0
    %333 = vmatprep.subr.mxu0 0.0
    %334 = vmatpush2.msra.mxu0 0.0
    %335 = vmatprep.subr.mxu0 0.0
    %336 = vmatpush2.msra.mxu0 0.0
    %337 = vmatprep.subr.mxu0 0.0
    %338 = vmatpush2.msra.mxu0 0.0
    %339 = vmatprep.subr.mxu0 0.0
    %340 = vmatpush2.msra.mxu0 0.0
    %341 = vmatprep.subr.mxu0 0.0
    %342 = vmatpush2.msra.mxu0 0.0
    %343 = vmatprep.subr.mxu0 0.0
    %344 = vmatpush2.msra.mxu0 0.0
    %345 = vmatprep.subr.mxu0 0.0
    %346 = vmatpush2.msra.mxu0 0.0
    %347 = vmatprep.subr.mxu0 0.0
    %348 = vmatpush2.msra.mxu0 0.0
    %349 = vmatprep.subr.mxu0 0.0
    %350 = vmatpush2.msra.mxu0 0.0
    %351 = vmatprep.mubr.f32.mxu0 0.0
    %352 = vmatmul.mubr.f32.gmra.mxu0 %v285
    %v353 = vpop.f32.mrf.mxu0
    %v354 = vadd.f32 %v132, %v353
    %v355 = vpop.f32.mrf.mxu0
    %v356 = vadd.f32 %v136, %v355
    %357 = vdwg.mxu0
    %vm358 = vcmp.gt.f32.partialorder %v354, 20.0
    %v359 = vmin.f32 %v354, 20.0
    %v360 = vmul.f32 %v359, 1.442695
    %v361 = vpow.pop %v360
    %v362 = vadd.f32 %v361, 1.0
    %v363 = vlog2.pop %v362
    %v364 = vmul.f32 %v363, 0.6931472
    %v365 = vmul.f32 -0.5, %v361
    %v366 = vadd.f32 %v365, 1.0
    %v367 = vmul.f32 %v366, %v361
    %v368 = vand.u32 2147483647, %v361
    %vm369 = vcmp.lt.f32.partialorder %v368, 0.0004427343
    %v370 = vsel %vm369, %v367, %v364
    %v371 = vsel %vm358, %v354, %v370
    %v372 = vadd.f32 %v245, 0.0
    %v374 = vsel %vm283, %v372, 0
    %376 = vmatprep.subr.mxu0 0.0
    %377 = vmatpush1.msra.mxu0 0.0
    %378 = vmatprep.subr.mxu0 0.0
    %379 = vmatpush1.msra.mxu0 0.0
    %380 = vmatprep.subr.mxu0 0.0
    %381 = vmatpush1.msra.mxu0 0.0
    %382 = vmatprep.subr.mxu0 0.0
    %383 = vmatpush1.msra.mxu0 0.0
    %384 = vmatprep.subr.mxu0 0.0
    %385 = vmatpush1.msra.mxu0 0.0
    %386 = vmatprep.subr.mxu0 0.0
    %387 = vmatpush1.msra.mxu0 0.0
    %388 = vmatprep.subr.mxu0 0.0
    %389 = vmatpush1.msra.mxu0 0.0
    %390 = vmatprep.subr.mxu0 0.0
    %391 = vmatpush1.msra.mxu0 0.0
    %392 = vmatprep.subr.mxu0 0.0
    %393 = vmatpush1.msra.mxu0 0.0
    %394 = vmatprep.subr.mxu0 0.0
    %395 = vmatpush1.msra.mxu0 0.0
    %396 = vmatprep.subr.mxu0 0.0
    %397 = vmatpush1.msra.mxu0 0.0
    %398 = vmatprep.subr.mxu0 0.0
    %399 = vmatpush1.msra.mxu0 0.0
    %400 = vmatprep.subr.mxu0 0.0
    %401 = vmatpush1.msra.mxu0 %v85
    %402 = vmatprep.subr.mxu0 0.0
    %403 = vmatpush1.msra.mxu0 %v84
    %404 = vmatprep.subr.mxu0 0.0
    %405 = vmatpush1.msra.mxu0 %v83
    %406 = vmatprep.subr.mxu0 0.0
    %407 = vmatpush1.msra.mxu0 %v82
    %408 = vmatprep.subr.mxu0 0.0
    %409 = vmatpush2.msra.mxu0 0.0
    %410 = vmatprep.subr.mxu0 0.0
    %411 = vmatpush2.msra.mxu0 0.0
    %412 = vmatprep.subr.mxu0 0.0
    %413 = vmatpush2.msra.mxu0 0.0
    %414 = vmatprep.subr.mxu0 0.0
    %415 = vmatpush2.msra.mxu0 0.0
    %416 = vmatprep.subr.mxu0 0.0
    %417 = vmatpush2.msra.mxu0 0.0
    %418 = vmatprep.subr.mxu0 0.0
    %419 = vmatpush2.msra.mxu0 0.0
    %420 = vmatprep.subr.mxu0 0.0
    %421 = vmatpush2.msra.mxu0 0.0
    %422 = vmatprep.subr.mxu0 0.0
    %423 = vmatpush2.msra.mxu0 0.0
    %424 = vmatprep.subr.mxu0 0.0
    %425 = vmatpush2.msra.mxu0 0.0
    %426 = vmatprep.subr.mxu0 0.0
    %427 = vmatpush2.msra.mxu0 0.0
    %428 = vmatprep.subr.mxu0 0.0
    %429 = vmatpush2.msra.mxu0 0.0
    %430 = vmatprep.subr.mxu0 0.0
    %431 = vmatpush2.msra.mxu0 0.0
    %432 = vmatprep.subr.mxu0 0.0
    %433 = vmatpush2.msra.mxu0 0.0
    %434 = vmatprep.subr.mxu0 0.0
    %435 = vmatpush2.msra.mxu0 0.0
    %436 = vmatprep.subr.mxu0 0.0
    %437 = vmatpush2.msra.mxu0 0.0
    %438 = vmatprep.subr.mxu0 0.0
    %439 = vmatpush2.msra.mxu0 0.0
    %440 = vmatprep.mubr.f32.mxu0 0.0
    %441 = vmatmul.mubr.f32.gmra.mxu0 %v374
    %v442 = vpop.f32.mrf.mxu0
    %v443 = vadd.f32 %v111, %v442
    %v444 = vpop.f32.mrf.mxu0
    %445 = vdwg.mxu0
    %vm446 = vcmp.gt.f32.partialorder %v443, 20.0
    %v447 = vmin.f32 %v443, 20.0
    %v448 = vmul.f32 %v447, 1.442695
    %v449 = vpow.pop %v448
    %v450 = vadd.f32 %v449, 1.0
    %v451 = vlog2.pop %v450
    %v452 = vmul.f32 %v451, 0.6931472
    %v453 = vmul.f32 -0.5, %v449
    %v454 = vadd.f32 %v453, 1.0
    %v455 = vmul.f32 %v454, %v449
    %v456 = vand.u32 2147483647, %v449
    %vm457 = vcmp.lt.f32.partialorder %v456, 0.0004427343
    %v458 = vsel %vm457, %v455, %v452
    %v459 = vsel %vm446, %v443, %v458
    %461 = vrot.lane.b32.xlu0 %v459, 96
    %v462 = vpop.permute.xlu0 %461
    %v464 = vmul.f32 %v64, %v462
    %v465 = vadd.f32 %v464, %v443
    %v467 = vsel %vm283, %v465, 0
    %469 = vmatprep.subr.mxu0 0.0
    %470 = vmatpush1.msra.mxu0 0.0
    %471 = vmatprep.subr.mxu0 0.0
    %472 = vmatpush1.msra.mxu0 0.0
    %473 = vmatprep.subr.mxu0 0.0
    %474 = vmatpush1.msra.mxu0 0.0
    %475 = vmatprep.subr.mxu0 0.0
    %476 = vmatpush1.msra.mxu0 0.0
    %477 = vmatprep.subr.mxu0 0.0
    %478 = vmatpush1.msra.mxu0 0.0
    %479 = vmatprep.subr.mxu0 0.0
    %480 = vmatpush1.msra.mxu0 0.0
    %481 = vmatprep.subr.mxu0 0.0
    %482 = vmatpush1.msra.mxu0 0.0
    %483 = vmatprep.subr.mxu0 0.0
    %484 = vmatpush1.msra.mxu0 0.0
    %485 = vmatprep.subr.mxu0 0.0
    %486 = vmatpush1.msra.mxu0 0.0
    %487 = vmatprep.subr.mxu0 0.0
    %488 = vmatpush1.msra.mxu0 0.0
    %489 = vmatprep.subr.mxu0 0.0
    %490 = vmatpush1.msra.mxu0 0.0
    %491 = vmatprep.subr.mxu0 0.0
    %492 = vmatpush1.msra.mxu0 0.0
    %493 = vmatprep.subr.mxu0 0.0
    %494 = vmatpush1.msra.mxu0 %v93
    %495 = vmatprep.subr.mxu0 0.0
    %496 = vmatpush1.msra.mxu0 %v92
    %497 = vmatprep.subr.mxu0 0.0
    %498 = vmatpush1.msra.mxu0 %v91
    %499 = vmatprep.subr.mxu0 0.0
    %500 = vmatpush1.msra.mxu0 %v90
    %501 = vmatprep.subr.mxu0 0.0
    %502 = vmatpush2.msra.mxu0 0.0
    %503 = vmatprep.subr.mxu0 0.0
    %504 = vmatpush2.msra.mxu0 0.0
    %505 = vmatprep.subr.mxu0 0.0
    %506 = vmatpush2.msra.mxu0 0.0
    %507 = vmatprep.subr.mxu0 0.0
    %508 = vmatpush2.msra.mxu0 0.0
    %509 = vmatprep.subr.mxu0 0.0
    %510 = vmatpush2.msra.mxu0 0.0
    %511 = vmatprep.subr.mxu0 0.0
    %512 = vmatpush2.msra.mxu0 0.0
    %513 = vmatprep.subr.mxu0 0.0
    %514 = vmatpush2.msra.mxu0 0.0
    %515 = vmatprep.subr.mxu0 0.0
    %516 = vmatpush2.msra.mxu0 0.0
    %517 = vmatprep.subr.mxu0 0.0
    %518 = vmatpush2.msra.mxu0 0.0
    %519 = vmatprep.subr.mxu0 0.0
    %520 = vmatpush2.msra.mxu0 0.0
    %521 = vmatprep.subr.mxu0 0.0
    %522 = vmatpush2.msra.mxu0 0.0
    %523 = vmatprep.subr.mxu0 0.0
    %524 = vmatpush2.msra.mxu0 0.0
    %525 = vmatprep.subr.mxu0 0.0
    %526 = vmatpush2.msra.mxu0 0.0
    %527 = vmatprep.subr.mxu0 0.0
    %528 = vmatpush2.msra.mxu0 0.0
    %529 = vmatprep.subr.mxu0 0.0
    %530 = vmatpush2.msra.mxu0 0.0
    %531 = vmatprep.subr.mxu0 0.0
    %532 = vmatpush2.msra.mxu0 0.0
    %533 = vmatprep.mubr.f32.mxu0 0.0
    %534 = vmatmul.mubr.f32.gmra.mxu0 %v467
    %v535 = vpop.f32.mrf.mxu0
    %v536 = vadd.f32 %v125, %v535
    %v537 = vpop.f32.mrf.mxu0
    %538 = vdwg.mxu0
    %v539 = vadd.f32 %v536, 0.0
    %v541 = vsel %vm283, %v539, 0
    %543 = vmatprep.subr.mxu0 0.0
    %544 = vmatpush1.msra.mxu0 0.0
    %545 = vmatprep.subr.mxu0 0.0
    %546 = vmatpush1.msra.mxu0 0.0
    %547 = vmatprep.subr.mxu0 0.0
    %548 = vmatpush1.msra.mxu0 0.0
    %549 = vmatprep.subr.mxu0 0.0
    %550 = vmatpush1.msra.mxu0 0.0
    %551 = vmatprep.subr.mxu0 0.0
    %552 = vmatpush1.msra.mxu0 0.0
    %553 = vmatprep.subr.mxu0 0.0
    %554 = vmatpush1.msra.mxu0 0.0
    %555 = vmatprep.subr.mxu0 0.0
    %556 = vmatpush1.msra.mxu0 0.0
    %557 = vmatprep.subr.mxu0 0.0
    %558 = vmatpush1.msra.mxu0 0.0
    %559 = vmatprep.subr.mxu0 0.0
    %560 = vmatpush1.msra.mxu0 0.0
    %561 = vmatprep.subr.mxu0 0.0
    %562 = vmatpush1.msra.mxu0 0.0
    %563 = vmatprep.subr.mxu0 0.0
    %564 = vmatpush1.msra.mxu0 0.0
    %565 = vmatprep.subr.mxu0 0.0
    %566 = vmatpush1.msra.mxu0 0.0
    %567 = vmatprep.subr.mxu0 0.0
    %568 = vmatpush1.msra.mxu0 %v89
    %569 = vmatprep.subr.mxu0 0.0
    %570 = vmatpush1.msra.mxu0 %v88
    %571 = vmatprep.subr.mxu0 0.0
    %572 = vmatpush1.msra.mxu0 %v87
    %573 = vmatprep.subr.mxu0 0.0
    %574 = vmatpush1.msra.mxu0 %v86
    %575 = vmatprep.subr.mxu0 0.0
    %576 = vmatpush2.msra.mxu0 0.0
    %577 = vmatprep.subr.mxu0 0.0
    %578 = vmatpush2.msra.mxu0 0.0
    %579 = vmatprep.subr.mxu0 0.0
    %580 = vmatpush2.msra.mxu0 0.0
    %581 = vmatprep.subr.mxu0 0.0
    %582 = vmatpush2.msra.mxu0 0.0
    %583 = vmatprep.subr.mxu0 0.0
    %584 = vmatpush2.msra.mxu0 0.0
    %585 = vmatprep.subr.mxu0 0.0
    %586 = vmatpush2.msra.mxu0 0.0
    %587 = vmatprep.subr.mxu0 0.0
    %588 = vmatpush2.msra.mxu0 0.0
    %589 = vmatprep.subr.mxu0 0.0
    %590 = vmatpush2.msra.mxu0 0.0
    %591 = vmatprep.subr.mxu0 0.0
    %592 = vmatpush2.msra.mxu0 0.0
    %593 = vmatprep.subr.mxu0 0.0
    %594 = vmatpush2.msra.mxu0 0.0
    %595 = vmatprep.subr.mxu0 0.0
    %596 = vmatpush2.msra.mxu0 0.0
    %597 = vmatprep.subr.mxu0 0.0
    %598 = vmatpush2.msra.mxu0 0.0
    %599 = vmatprep.subr.mxu0 0.0
    %600 = vmatpush2.msra.mxu0 0.0
    %601 = vmatprep.subr.mxu0 0.0
    %602 = vmatpush2.msra.mxu0 0.0
    %603 = vmatprep.subr.mxu0 0.0
    %604 = vmatpush2.msra.mxu0 0.0
    %605 = vmatprep.subr.mxu0 0.0
    %606 = vmatpush2.msra.mxu0 0.0
    %607 = vmatprep.mubr.f32.mxu0 0.0
    %608 = vmatmul.mubr.f32.gmra.mxu0 %v541
    %v609 = vpop.f32.mrf.mxu0
    %v610 = vadd.f32 %v118, %v609
    %v611 = vpop.f32.mrf.mxu0
    %612 = vdwg.mxu0
    %vm613 = vcmp.gt.f32.partialorder %v610, 20.0
    %v614 = vmin.f32 %v610, 20.0
    %v615 = vmul.f32 %v614, 1.442695
    %v616 = vpow.pop %v615
    %v617 = vadd.f32 %v616, 1.0
    %v618 = vlog2.pop %v617
    %v619 = vmul.f32 %v618, 0.6931472
    %v620 = vmul.f32 -0.5, %v616
    %v621 = vadd.f32 %v620, 1.0
    %v622 = vmul.f32 %v621, %v616
    %v623 = vand.u32 2147483647, %v616
    %vm624 = vcmp.lt.f32.partialorder %v623, 0.0004427343
    %v625 = vsel %vm624, %v622, %v619
    %v626 = vsel %vm613, %v610, %v625
    %628 = vrot.lane.b32.xlu0 %v626, 112
    %v629 = vpop.permute.xlu0 %628
    %v631 = vmul.f32 %v72, %v629
    %v632 = vadd.f32 %v631, %v610
    %634 = vrot.lane.b32.xlu0 %v536, 96
    %v635 = vpop.permute.xlu0 %634
    %v636 = vsel %vm283, %v635, 0
    %638 = vmatprep.subr.mxu0 0.0
    %639 = vmatpush1.msra.mxu0 0.0
    %640 = vmatprep.subr.mxu0 0.0
    %641 = vmatpush1.msra.mxu0 0.0
    %642 = vmatprep.subr.mxu0 0.0
    %643 = vmatpush1.msra.mxu0 0.0
    %644 = vmatprep.subr.mxu0 0.0
    %645 = vmatpush1.msra.mxu0 0.0
    %646 = vmatprep.subr.mxu0 0.0
    %647 = vmatpush1.msra.mxu0 0.0
    %648 = vmatprep.subr.mxu0 0.0
    %649 = vmatpush1.msra.mxu0 0.0
    %650 = vmatprep.subr.mxu0 0.0
    %651 = vmatpush1.msra.mxu0 0.0
    %652 = vmatprep.subr.mxu0 0.0
    %653 = vmatpush1.msra.mxu0 0.0
    %654 = vmatprep.subr.mxu0 0.0
    %655 = vmatpush1.msra.mxu0 0.0
    %656 = vmatprep.subr.mxu0 0.0
    %657 = vmatpush1.msra.mxu0 0.0
    %658 = vmatprep.subr.mxu0 0.0
    %659 = vmatpush1.msra.mxu0 0.0
    %660 = vmatprep.subr.mxu0 0.0
    %661 = vmatpush1.msra.mxu0 0.0
    %662 = vmatprep.subr.mxu0 0.0
    %663 = vmatpush1.msra.mxu0 %v105
    %664 = vmatprep.subr.mxu0 0.0
    %665 = vmatpush1.msra.mxu0 %v104
    %666 = vmatprep.subr.mxu0 0.0
    %667 = vmatpush1.msra.mxu0 %v103
    %668 = vmatprep.subr.mxu0 0.0
    %669 = vmatpush1.msra.mxu0 %v102
    %670 = vmatprep.subr.mxu0 0.0
    %671 = vmatpush2.msra.mxu0 0.0
    %672 = vmatprep.subr.mxu0 0.0
    %673 = vmatpush2.msra.mxu0 0.0
    %674 = vmatprep.subr.mxu0 0.0
    %675 = vmatpush2.msra.mxu0 0.0
    %676 = vmatprep.subr.mxu0 0.0
    %677 = vmatpush2.msra.mxu0 0.0
    %678 = vmatprep.subr.mxu0 0.0
    %679 = vmatpush2.msra.mxu0 0.0
    %680 = vmatprep.subr.mxu0 0.0
    %681 = vmatpush2.msra.mxu0 0.0
    %682 = vmatprep.subr.mxu0 0.0
    %683 = vmatpush2.msra.mxu0 0.0
    %684 = vmatprep.subr.mxu0 0.0
    %685 = vmatpush2.msra.mxu0 0.0
    %686 = vmatprep.subr.mxu0 0.0
    %687 = vmatpush2.msra.mxu0 0.0
    %688 = vmatprep.subr.mxu0 0.0
    %689 = vmatpush2.msra.mxu0 0.0
    %690 = vmatprep.subr.mxu0 0.0
    %691 = vmatpush2.msra.mxu0 0.0
    %692 = vmatprep.subr.mxu0 0.0
    %693 = vmatpush2.msra.mxu0 0.0
    %694 = vmatprep.subr.mxu0 0.0
    %695 = vmatpush2.msra.mxu0 0.0
    %696 = vmatprep.subr.mxu0 0.0
    %697 = vmatpush2.msra.mxu0 0.0
    %698 = vmatprep.subr.mxu0 0.0
    %699 = vmatpush2.msra.mxu0 0.0
    %700 = vmatprep.subr.mxu0 0.0
    %701 = vmatpush2.msra.mxu0 0.0
    %702 = vmatprep.mubr.f32.mxu0 0.0
    %703 = vmatmul.mubr.f32.gmra.mxu0 %v636
    %v704 = vpop.f32.mrf.mxu0
    %v705 = vadd.f32 %v144, %v704
    %v706 = vpop.f32.mrf.mxu0
    %707 = vdwg.mxu0
    %709 = vrot.lane.b32.xlu0 %v354, 64
    %v710 = vpop.permute.xlu0 %709
    %v712 = vadd.f32 %v705, %v710
    %v713 = vxor.u32 %v712, 2147483648
    %v714 = vmul.f32 %v713, 1.442695
    %v715 = vpow.pop %v714
    %v716 = vadd.f32 %v715, 1.0
    %v717 = vrcp.pop %v716
    %v718 = vmul.f32 1.0, %v717
    %v719 = vmul.f32 %v718, %v356
    %721 = vrot.lane.b32.xlu0 %v719, 64
    %v722 = vpop.permute.xlu0 %721
    %v724 = vadd.f32 %v705, %v722
    %v725 = vtanh.pop %v724
    %v726 = vsub.f32 1.0, %v718
    %728 = vrot.lane.b32.xlu0 %v725, 96
    %v729 = vpop.permute.xlu0 %728
    %v731 = vmul.f32 %v726, %v729
    %v732 = vmul.f32 %v718, 0.0
    %v733 = vadd.f32 %v731, %v732
    %v734 = vsub.f32 %v632, %v56
    %v735 = vmul.f32 %v734, %v734
    %v736 = vadd.f32 %v735, 0.0
    %v737 = vlog2.pop %v459
    %v738 = vmul.f32 %v737, 0.6931472
    %v739 = vmul.f32 %v738, 2.0
    %v740 = vlog2.pop %v371
    %v741 = vmul.f32 %v740, 0.6931472
    %v742 = vmul.f32 %v741, 2.0
    %v743 = vsub.f32 %v739, %v742
    %v744 = vmul.f32 %v371, %v371
    %v745 = vsub.f32 %v354, %v443
    %v746 = vmul.f32 %v745, %v745
    %748 = vrot.lane.b32.xlu0 %v746, 32
    %v749 = vpop.permute.xlu0 %748
    %v751 = vadd.f32 %v744, %v749
    %v752 = vmul.f32 %v459, %v459
    %v753 = vrcp.pop %v752
    %v754 = vmul.f32 %v751, %v753
    %v755 = vadd.f32 %v743, %v754
    %v756 = vsub.f32 %v755, 1.0
    %v757 = vadd.f32 %v756, 0.0
    %759 = vrot.lane.b32.xlu0 %v733, 96
    %v760 = vpop.permute.xlu0 %759
    %v761 = vsel %vm283, %v760, 0
    %763 = vmatprep.subr.mxu0 0.0
    %764 = vmatpush1.msra.mxu0 0.0
    %765 = vmatprep.subr.mxu0 0.0
    %766 = vmatpush1.msra.mxu0 0.0
    %767 = vmatprep.subr.mxu0 0.0
    %768 = vmatpush1.msra.mxu0 0.0
    %769 = vmatprep.subr.mxu0 0.0
    %770 = vmatpush1.msra.mxu0 0.0
    %771 = vmatprep.subr.mxu0 0.0
    %772 = vmatpush1.msra.mxu0 0.0
    %773 = vmatprep.subr.mxu0 0.0
    %774 = vmatpush1.msra.mxu0 0.0
    %775 = vmatprep.subr.mxu0 0.0
    %776 = vmatpush1.msra.mxu0 0.0
    %777 = vmatprep.subr.mxu0 0.0
    %778 = vmatpush1.msra.mxu0 0.0
    %779 = vmatprep.subr.mxu0 0.0
    %780 = vmatpush1.msra.mxu0 0.0
    %781 = vmatprep.subr.mxu0 0.0
    %782 = vmatpush1.msra.mxu0 0.0
    %783 = vmatprep.subr.mxu0 0.0
    %784 = vmatpush1.msra.mxu0 0.0
    %785 = vmatprep.subr.mxu0 0.0
    %786 = vmatpush1.msra.mxu0 0.0
    %787 = vmatprep.subr.mxu0 %v101
    %788 = vmatpush1.msra.mxu0 %v100
    %789 = vmatprep.subr.mxu0 %v99
    %790 = vmatpush1.msra.mxu0 %v98
    %791 = vmatprep.subr.mxu0 %v97
    %792 = vmatpush1.msra.mxu0 %v96
    %793 = vmatprep.subr.mxu0 %v95
    %794 = vmatpush1.msra.mxu0 %v94
    %795 = vmatprep.subr.mxu0 0.0
    %796 = vmatpush2.msra.mxu0 0.0
    %797 = vmatprep.subr.mxu0 0.0
    %798 = vmatpush2.msra.mxu0 0.0
    %799 = vmatprep.subr.mxu0 0.0
    %800 = vmatpush2.msra.mxu0 0.0
    %801 = vmatprep.subr.mxu0 0.0
    %802 = vmatpush2.msra.mxu0 0.0
    %803 = vmatprep.subr.mxu0 0.0
    %804 = vmatpush2.msra.mxu0 0.0
    %805 = vmatprep.subr.mxu0 0.0
    %806 = vmatpush2.msra.mxu0 0.0
    %807 = vmatprep.subr.mxu0 0.0
    %808 = vmatpush2.msra.mxu0 0.0
    %809 = vmatprep.subr.mxu0 0.0
    %810 = vmatpush2.msra.mxu0 0.0
    %811 = vmatprep.subr.mxu0 0.0
    %812 = vmatpush2.msra.mxu0 0.0
    %813 = vmatprep.subr.mxu0 0.0
    %814 = vmatpush2.msra.mxu0 0.0
    %815 = vmatprep.subr.mxu0 0.0
    %816 = vmatpush2.msra.mxu0 0.0
    %817 = vmatprep.subr.mxu0 0.0
    %818 = vmatpush2.msra.mxu0 0.0
    %819 = vmatprep.subr.mxu0 0.0
    %820 = vmatpush2.msra.mxu0 0.0
    %821 = vmatprep.subr.mxu0 0.0
    %822 = vmatpush2.msra.mxu0 0.0
    %823 = vmatprep.subr.mxu0 0.0
    %824 = vmatpush2.msra.mxu0 0.0
    %825 = vmatprep.subr.mxu0 0.0
    %826 = vmatpush2.msra.mxu0 0.0
    %827 = vmatprep.mubr.f32.mxu0 0.0
    %828 = vmatmul.mubr.f32.gmra.mxu0 %v761
    %v829 = vpop.f32.mrf.mxu0
    %v830 = vadd.f32 %v132, %v829
    %v831 = vpop.f32.mrf.mxu0
    %v832 = vadd.f32 %v136, %v831
    %833 = vdwg.mxu0
    %vm834 = vcmp.gt.f32.partialorder %v830, 20.0
    %v835 = vmin.f32 %v830, 20.0
    %v836 = vmul.f32 %v835, 1.442695
    %v837 = vpow.pop %v836
    %v838 = vadd.f32 %v837, 1.0
    %v839 = vlog2.pop %v838
    %v840 = vmul.f32 %v839, 0.6931472
    %v841 = vmul.f32 -0.5, %v837
    %v842 = vadd.f32 %v841, 1.0
    %v843 = vmul.f32 %v842, %v837
    %v844 = vand.u32 2147483647, %v837
    %vm845 = vcmp.lt.f32.partialorder %v844, 0.0004427343
    %v846 = vsel %vm845, %v843, %v840
    %v847 = vsel %vm834, %v830, %v846
    %v849 = vadd.f32 %v250, %v760
    %v851 = vsel %vm283, %v849, 0
    %853 = vmatprep.subr.mxu0 0.0
    %854 = vmatpush1.msra.mxu0 0.0
    %855 = vmatprep.subr.mxu0 0.0
    %856 = vmatpush1.msra.mxu0 0.0
    %857 = vmatprep.subr.mxu0 0.0
    %858 = vmatpush1.msra.mxu0 0.0
    %859 = vmatprep.subr.mxu0 0.0
    %860 = vmatpush1.msra.mxu0 0.0
    %861 = vmatprep.subr.mxu0 0.0
    %862 = vmatpush1.msra.mxu0 0.0
    %863 = vmatprep.subr.mxu0 0.0
    %864 = vmatpush1.msra.mxu0 0.0
    %865 = vmatprep.subr.mxu0 0.0
    %866 = vmatpush1.msra.mxu0 0.0
    %867 = vmatprep.subr.mxu0 0.0
    %868 = vmatpush1.msra.mxu0 0.0
    %869 = vmatprep.subr.mxu0 0.0
    %870 = vmatpush1.msra.mxu0 0.0
    %871 = vmatprep.subr.mxu0 0.0
    %872 = vmatpush1.msra.mxu0 0.0
    %873 = vmatprep.subr.mxu0 0.0
    %874 = vmatpush1.msra.mxu0 0.0
    %875 = vmatprep.subr.mxu0 0.0
    %876 = vmatpush1.msra.mxu0 0.0
    %877 = vmatprep.subr.mxu0 0.0
    %878 = vmatpush1.msra.mxu0 %v85
    %879 = vmatprep.subr.mxu0 0.0
    %880 = vmatpush1.msra.mxu0 %v84
    %881 = vmatprep.subr.mxu0 0.0
    %882 = vmatpush1.msra.mxu0 %v83
    %883 = vmatprep.subr.mxu0 0.0
    %884 = vmatpush1.msra.mxu0 %v82
    %885 = vmatprep.subr.mxu0 0.0
    %886 = vmatpush2.msra.mxu0 0.0
    %887 = vmatprep.subr.mxu0 0.0
    %888 = vmatpush2.msra.mxu0 0.0
    %889 = vmatprep.subr.mxu0 0.0
    %890 = vmatpush2.msra.mxu0 0.0
    %891 = vmatprep.subr.mxu0 0.0
    %892 = vmatpush2.msra.mxu0 0.0
    %893 = vmatprep.subr.mxu0 0.0
    %894 = vmatpush2.msra.mxu0 0.0
    %895 = vmatprep.subr.mxu0 0.0
    %896 = vmatpush2.msra.mxu0 0.0
    %897 = vmatprep.subr.mxu0 0.0
    %898 = vmatpush2.msra.mxu0 0.0
    %899 = vmatprep.subr.mxu0 0.0
    %900 = vmatpush2.msra.mxu0 0.0
    %901 = vmatprep.subr.mxu0 0.0
    %902 = vmatpush2.msra.mxu0 0.0
    %903 = vmatprep.subr.mxu0 0.0
    %904 = vmatpush2.msra.mxu0 0.0
    %905 = vmatprep.subr.mxu0 0.0
    %906 = vmatpush2.msra.mxu0 0.0
    %907 = vmatprep.subr.mxu0 0.0
    %908 = vmatpush2.msra.mxu0 0.0
    %909 = vmatprep.subr.mxu0 0.0
    %910 = vmatpush2.msra.mxu0 0.0
    %911 = vmatprep.subr.mxu0 0.0
    %912 = vmatpush2.msra.mxu0 0.0
    %913 = vmatprep.subr.mxu0 0.0
    %914 = vmatpush2.msra.mxu0 0.0
    %915 = vmatprep.subr.mxu0 0.0
    %916 = vmatpush2.msra.mxu0 0.0
    %917 = vmatprep.mubr.f32.mxu0 0.0
    %918 = vmatmul.mubr.f32.gmra.mxu0 %v851
    %v919 = vpop.f32.mrf.mxu0
    %v920 = vadd.f32 %v111, %v919
    %v921 = vpop.f32.mrf.mxu0
    %922 = vdwg.mxu0
    %vm923 = vcmp.gt.f32.partialorder %v920, 20.0
    %v924 = vmin.f32 %v920, 20.0
    %v925 = vmul.f32 %v924, 1.442695
    %v926 = vpow.pop %v925
    %v927 = vadd.f32 %v926, 1.0
    %v928 = vlog2.pop %v927
    %v929 = vmul.f32 %v928, 0.6931472
    %v930 = vmul.f32 -0.5, %v926
    %v931 = vadd.f32 %v930, 1.0
    %v932 = vmul.f32 %v931, %v926
    %v933 = vand.u32 2147483647, %v926
    %vm934 = vcmp.lt.f32.partialorder %v933, 0.0004427343
    %v935 = vsel %vm934, %v932, %v929
    %v936 = vsel %vm923, %v920, %v935
    %938 = vrot.lane.b32.xlu0 %v936, 96
    %v939 = vpop.permute.xlu0 %938
    %v941 = vmul.f32 %v65, %v939
    %v942 = vadd.f32 %v941, %v920
    %v944 = vsel %vm283, %v942, 0
    %946 = vmatprep.subr.mxu0 0.0
    %947 = vmatpush1.msra.mxu0 0.0
    %948 = vmatprep.subr.mxu0 0.0
    %949 = vmatpush1.msra.mxu0 0.0
    %950 = vmatprep.subr.mxu0 0.0
    %951 = vmatpush1.msra.mxu0 0.0
    %952 = vmatprep.subr.mxu0 0.0
    %953 = vmatpush1.msra.mxu0 0.0
    %954 = vmatprep.subr.mxu0 0.0
    %955 = vmatpush1.msra.mxu0 0.0
    %956 = vmatprep.subr.mxu0 0.0
    %957 = vmatpush1.msra.mxu0 0.0
    %958 = vmatprep.subr.mxu0 0.0
    %959 = vmatpush1.msra.mxu0 0.0
    %960 = vmatprep.subr.mxu0 0.0
    %961 = vmatpush1.msra.mxu0 0.0
    %962 = vmatprep.subr.mxu0 0.0
    %963 = vmatpush1.msra.mxu0 0.0
    %964 = vmatprep.subr.mxu0 0.0
    %965 = vmatpush1.msra.mxu0 0.0
    %966 = vmatprep.subr.mxu0 0.0
    %967 = vmatpush1.msra.mxu0 0.0
    %968 = vmatprep.subr.mxu0 0.0
    %969 = vmatpush1.msra.mxu0 0.0
    %970 = vmatprep.subr.mxu0 0.0
    %971 = vmatpush1.msra.mxu0 %v93
    %972 = vmatprep.subr.mxu0 0.0
    %973 = vmatpush1.msra.mxu0 %v92
    %974 = vmatprep.subr.mxu0 0.0
    %975 = vmatpush1.msra.mxu0 %v91
    %976 = vmatprep.subr.mxu0 0.0
    %977 = vmatpush1.msra.mxu0 %v90
    %978 = vmatprep.subr.mxu0 0.0
    %979 = vmatpush2.msra.mxu0 0.0
    %980 = vmatprep.subr.mxu0 0.0
    %981 = vmatpush2.msra.mxu0 0.0
    %982 = vmatprep.subr.mxu0 0.0
    %983 = vmatpush2.msra.mxu0 0.0
    %984 = vmatprep.subr.mxu0 0.0
    %985 = vmatpush2.msra.mxu0 0.0
    %986 = vmatprep.subr.mxu0 0.0
    %987 = vmatpush2.msra.mxu0 0.0
    %988 = vmatprep.subr.mxu0 0.0
    %989 = vmatpush2.msra.mxu0 0.0
    %990 = vmatprep.subr.mxu0 0.0
    %991 = vmatpush2.msra.mxu0 0.0
    %992 = vmatprep.subr.mxu0 0.0
    %993 = vmatpush2.msra.mxu0 0.0
    %994 = vmatprep.subr.mxu0 0.0
    %995 = vmatpush2.msra.mxu0 0.0
    %996 = vmatprep.subr.mxu0 0.0
    %997 = vmatpush2.msra.mxu0 0.0
    %998 = vmatprep.subr.mxu0 0.0
    %999 = vmatpush2.msra.mxu0 0.0
    %1000 = vmatprep.subr.mxu0 0.0
    %1001 = vmatpush2.msra.mxu0 0.0
    %1002 = vmatprep.subr.mxu0 0.0
    %1003 = vmatpush2.msra.mxu0 0.0
    %1004 = vmatprep.subr.mxu0 0.0
    %1005 = vmatpush2.msra.mxu0 0.0
    %1006 = vmatprep.subr.mxu0 0.0
    %1007 = vmatpush2.msra.mxu0 0.0
    %1008 = vmatprep.subr.mxu0 0.0
    %1009 = vmatpush2.msra.mxu0 0.0
    %1010 = vmatprep.mubr.f32.mxu0 0.0
    %1011 = vmatmul.mubr.f32.gmra.mxu0 %v944
    %v1012 = vpop.f32.mrf.mxu0
    %v1013 = vadd.f32 %v125, %v1012
    %v1014 = vpop.f32.mrf.mxu0
    %1015 = vdwg.mxu0
    %v1016 = vadd.f32 %v1013, %v760
    %v1018 = vsel %vm283, %v1016, 0
    %1020 = vmatprep.subr.mxu0 0.0
    %1021 = vmatpush1.msra.mxu0 0.0
    %1022 = vmatprep.subr.mxu0 0.0
    %1023 = vmatpush1.msra.mxu0 0.0
    %1024 = vmatprep.subr.mxu0 0.0
    %1025 = vmatpush1.msra.mxu0 0.0
    %1026 = vmatprep.subr.mxu0 0.0
    %1027 = vmatpush1.msra.mxu0 0.0
    %1028 = vmatprep.subr.mxu0 0.0
    %1029 = vmatpush1.msra.mxu0 0.0
    %1030 = vmatprep.subr.mxu0 0.0
    %1031 = vmatpush1.msra.mxu0 0.0
    %1032 = vmatprep.subr.mxu0 0.0
    %1033 = vmatpush1.msra.mxu0 0.0
    %1034 = vmatprep.subr.mxu0 0.0
    %1035 = vmatpush1.msra.mxu0 0.0
    %1036 = vmatprep.subr.mxu0 0.0
    %1037 = vmatpush1.msra.mxu0 0.0
    %1038 = vmatprep.subr.mxu0 0.0
    %1039 = vmatpush1.msra.mxu0 0.0
    %1040 = vmatprep.subr.mxu0 0.0
    %1041 = vmatpush1.msra.mxu0 0.0
    %1042 = vmatprep.subr.mxu0 0.0
    %1043 = vmatpush1.msra.mxu0 0.0
    %1044 = vmatprep.subr.mxu0 0.0
    %1045 = vmatpush1.msra.mxu0 %v89
    %1046 = vmatprep.subr.mxu0 0.0
    %1047 = vmatpush1.msra.mxu0 %v88
    %1048 = vmatprep.subr.mxu0 0.0
    %1049 = vmatpush1.msra.mxu0 %v87
    %1050 = vmatprep.subr.mxu0 0.0
    %1051 = vmatpush1.msra.mxu0 %v86
    %1052 = vmatprep.subr.mxu0 0.0
    %1053 = vmatpush2.msra.mxu0 0.0
    %1054 = vmatprep.subr.mxu0 0.0
    %1055 = vmatpush2.msra.mxu0 0.0
    %1056 = vmatprep.subr.mxu0 0.0
    %1057 = vmatpush2.msra.mxu0 0.0
    %1058 = vmatprep.subr.mxu0 0.0
    %1059 = vmatpush2.msra.mxu0 0.0
    %1060 = vmatprep.subr.mxu0 0.0
    %1061 = vmatpush2.msra.mxu0 0.0
    %1062 = vmatprep.subr.mxu0 0.0
    %1063 = vmatpush2.msra.mxu0 0.0
    %1064 = vmatprep.subr.mxu0 0.0
    %1065 = vmatpush2.msra.mxu0 0.0
    %1066 = vmatprep.subr.mxu0 0.0
    %1067 = vmatpush2.msra.mxu0 0.0
    %1068 = vmatprep.subr.mxu0 0.0
    %1069 = vmatpush2.msra.mxu0 0.0
    %1070 = vmatprep.subr.mxu0 0.0
    %1071 = vmatpush2.msra.mxu0 0.0
    %1072 = vmatprep.subr.mxu0 0.0
    %1073 = vmatpush2.msra.mxu0 0.0
    %1074 = vmatprep.subr.mxu0 0.0
    %1075 = vmatpush2.msra.mxu0 0.0
    %1076 = vmatprep.subr.mxu0 0.0
    %1077 = vmatpush2.msra.mxu0 0.0
    %1078 = vmatprep.subr.mxu0 0.0
    %1079 = vmatpush2.msra.mxu0 0.0
    %1080 = vmatprep.subr.mxu0 0.0
    %1081 = vmatpush2.msra.mxu0 0.0
    %1082 = vmatprep.subr.mxu0 0.0
    %1083 = vmatpush2.msra.mxu0 0.0
    %1084 = vmatprep.mubr.f32.mxu0 0.0
    %1085 = vmatmul.mubr.f32.gmra.mxu0 %v1018
    %v1086 = vpop.f32.mrf.mxu0
    %v1087 = vadd.f32 %v118, %v1086
    %v1088 = vpop.f32.mrf.mxu0
    %1089 = vdwg.mxu0
    %vm1090 = vcmp.gt.f32.partialorder %v1087, 20.0
    %v1091 = vmin.f32 %v1087, 20.0
    %v1092 = vmul.f32 %v1091, 1.442695
    %v1093 = vpow.pop %v1092
    %v1094 = vadd.f32 %v1093, 1.0
    %v1095 = vlog2.pop %v1094
    %v1096 = vmul.f32 %v1095, 0.6931472
    %v1097 = vmul.f32 -0.5, %v1093
    %v1098 = vadd.f32 %v1097, 1.0
    %v1099 = vmul.f32 %v1098, %v1093
    %v1100 = vand.u32 2147483647, %v1093
    %vm1101 = vcmp.lt.f32.partialorder %v1100, 0.0004427343
    %v1102 = vsel %vm1101, %v1099, %v1096
    %v1103 = vsel %vm1090, %v1087, %v1102
    %1105 = vrot.lane.b32.xlu0 %v1103, 112
    %v1106 = vpop.permute.xlu0 %1105
    %v1108 = vmul.f32 %v73, %v1106
    %v1109 = vadd.f32 %v1108, %v1087
    %1111 = vrot.lane.b32.xlu0 %v1013, 96
    %v1112 = vpop.permute.xlu0 %1111
    %v1113 = vsel %vm283, %v1112, 0
    %1115 = vmatprep.subr.mxu0 0.0
    %1116 = vmatpush1.msra.mxu0 0.0
    %1117 = vmatprep.subr.mxu0 0.0
    %1118 = vmatpush1.msra.mxu0 0.0
    %1119 = vmatprep.subr.mxu0 0.0
    %1120 = vmatpush1.msra.mxu0 0.0
    %1121 = vmatprep.subr.mxu0 0.0
    %1122 = vmatpush1.msra.mxu0 0.0
    %1123 = vmatprep.subr.mxu0 0.0
    %1124 = vmatpush1.msra.mxu0 0.0
    %1125 = vmatprep.subr.mxu0 0.0
    %1126 = vmatpush1.msra.mxu0 0.0
    %1127 = vmatprep.subr.mxu0 0.0
    %1128 = vmatpush1.msra.mxu0 0.0
    %1129 = vmatprep.subr.mxu0 0.0
    %1130 = vmatpush1.msra.mxu0 0.0
    %1131 = vmatprep.subr.mxu0 0.0
    %1132 = vmatpush1.msra.mxu0 0.0
    %1133 = vmatprep.subr.mxu0 0.0
    %1134 = vmatpush1.msra.mxu0 0.0
    %1135 = vmatprep.subr.mxu0 0.0
    %1136 = vmatpush1.msra.mxu0 0.0
    %1137 = vmatprep.subr.mxu0 0.0
    %1138 = vmatpush1.msra.mxu0 0.0
    %1139 = vmatprep.subr.mxu0 0.0
    %1140 = vmatpush1.msra.mxu0 %v105
    %1141 = vmatprep.subr.mxu0 0.0
    %1142 = vmatpush1.msra.mxu0 %v104
    %1143 = vmatprep.subr.mxu0 0.0
    %1144 = vmatpush1.msra.mxu0 %v103
    %1145 = vmatprep.subr.mxu0 0.0
    %1146 = vmatpush1.msra.mxu0 %v102
    %1147 = vmatprep.subr.mxu0 0.0
    %1148 = vmatpush2.msra.mxu0 0.0
    %1149 = vmatprep.subr.mxu0 0.0
    %1150 = vmatpush2.msra.mxu0 0.0
    %1151 = vmatprep.subr.mxu0 0.0
    %1152 = vmatpush2.msra.mxu0 0.0
    %1153 = vmatprep.subr.mxu0 0.0
    %1154 = vmatpush2.msra.mxu0 0.0
    %1155 = vmatprep.subr.mxu0 0.0
    %1156 = vmatpush2.msra.mxu0 0.0
    %1157 = vmatprep.subr.mxu0 0.0
    %1158 = vmatpush2.msra.mxu0 0.0
    %1159 = vmatprep.subr.mxu0 0.0
    %1160 = vmatpush2.msra.mxu0 0.0
    %1161 = vmatprep.subr.mxu0 0.0
    %1162 = vmatpush2.msra.mxu0 0.0
    %1163 = vmatprep.subr.mxu0 0.0
    %1164 = vmatpush2.msra.mxu0 0.0
    %1165 = vmatprep.subr.mxu0 0.0
    %1166 = vmatpush2.msra.mxu0 0.0
    %1167 = vmatprep.subr.mxu0 0.0
    %1168 = vmatpush2.msra.mxu0 0.0
    %1169 = vmatprep.subr.mxu0 0.0
    %1170 = vmatpush2.msra.mxu0 0.0
    %1171 = vmatprep.subr.mxu0 0.0
    %1172 = vmatpush2.msra.mxu0 0.0
    %1173 = vmatprep.subr.mxu0 0.0
    %1174 = vmatpush2.msra.mxu0 0.0
    %1175 = vmatprep.subr.mxu0 0.0
    %1176 = vmatpush2.msra.mxu0 0.0
    %1177 = vmatprep.subr.mxu0 0.0
    %1178 = vmatpush2.msra.mxu0 0.0
    %1179 = vmatprep.mubr.f32.mxu0 0.0
    %1180 = vmatmul.mubr.f32.gmra.mxu0 %v1113
    %v1181 = vpop.f32.mrf.mxu0
    %v1182 = vadd.f32 %v144, %v1181
    %v1183 = vpop.f32.mrf.mxu0
    %1184 = vdwg.mxu0
    %1186 = vrot.lane.b32.xlu0 %v830, 64
    %v1187 = vpop.permute.xlu0 %1186
    %v1189 = vadd.f32 %v1182, %v1187
    %v1190 = vxor.u32 %v1189, 2147483648
    %v1191 = vmul.f32 %v1190, 1.442695
    %v1192 = vpow.pop %v1191
    %v1193 = vadd.f32 %v1192, 1.0
    %v1194 = vrcp.pop %v1193
    %v1195 = vmul.f32 1.0, %v1194
    %v1196 = vmul.f32 %v1195, %v832
    %1198 = vrot.lane.b32.xlu0 %v1196, 64
    %v1199 = vpop.permute.xlu0 %1198
    %v1201 = vadd.f32 %v1182, %v1199
    %v1202 = vtanh.pop %v1201
    %v1203 = vsub.f32 1.0, %v1195
    %1205 = vrot.lane.b32.xlu0 %v1202, 96
    %v1206 = vpop.permute.xlu0 %1205
    %v1208 = vmul.f32 %v1203, %v1206
    %v1209 = vmul.f32 %v1195, %v733
    %v1210 = vadd.f32 %v1208, %v1209
    %v1211 = vsub.f32 %v1109, %v57
    %v1212 = vmul.f32 %v1211, %v1211
    %v1213 = vadd.f32 %v736, %v1212
    %v1214 = vlog2.pop %v936
    %v1215 = vmul.f32 %v1214, 0.6931472
    %v1216 = vmul.f32 %v1215, 2.0
    %v1217 = vlog2.pop %v847
    %v1218 = vmul.f32 %v1217, 0.6931472
    %v1219 = vmul.f32 %v1218, 2.0
    %v1220 = vsub.f32 %v1216, %v1219
    %v1221 = vmul.f32 %v847, %v847
    %v1222 = vsub.f32 %v830, %v920
    %v1223 = vmul.f32 %v1222, %v1222
    %1225 = vrot.lane.b32.xlu0 %v1223, 32
    %v1226 = vpop.permute.xlu0 %1225
    %v1228 = vadd.f32 %v1221, %v1226
    %v1229 = vmul.f32 %v936, %v936
    %v1230 = vrcp.pop %v1229
    %v1231 = vmul.f32 %v1228, %v1230
    %v1232 = vadd.f32 %v1220, %v1231
    %v1233 = vsub.f32 %v1232, 1.0
    %v1234 = vadd.f32 %v757, %v1233
    %v1235 = vlog2.pop %v1103
    %v1236 = vmul.f32 %v1235, 0.6931472
    %v1237 = vmul.f32 %v1236, 2.0
    %v1238 = vlog2.pop %v626
    %v1239 = vmul.f32 %v1238, 0.6931472
    %v1240 = vmul.f32 %v1239, 2.0
    %v1241 = vsub.f32 %v1237, %v1240
    %v1242 = vmul.f32 %v626, %v626
    %v1243 = vsub.f32 %v610, %v1087
    %v1244 = vmul.f32 %v1243, %v1243
    %1246 = vrot.lane.b32.xlu0 %v1244, 16
    %v1247 = vpop.permute.xlu0 %1246
    %v1249 = vadd.f32 %v1242, %v1247
    %v1250 = vmul.f32 %v1103, %v1103
    %v1251 = vrcp.pop %v1250
    %v1252 = vmul.f32 %v1249, %v1251
    %v1253 = vadd.f32 %v1241, %v1252
    %v1254 = vsub.f32 %v1253, 1.0
    %v1255 = vadd.f32 %v1254, 0.0
    %1257 = vrot.lane.b32.xlu0 %v1210, 96
    %v1258 = vpop.permute.xlu0 %1257
    %v1259 = vsel %vm283, %v1258, 0
    %1261 = vmatprep.subr.mxu0 0.0
    %1262 = vmatpush1.msra.mxu0 0.0
    %1263 = vmatprep.subr.mxu0 0.0
    %1264 = vmatpush1.msra.mxu0 0.0
    %1265 = vmatprep.subr.mxu0 0.0
    %1266 = vmatpush1.msra.mxu0 0.0
    %1267 = vmatprep.subr.mxu0 0.0
    %1268 = vmatpush1.msra.mxu0 0.0
    %1269 = vmatprep.subr.mxu0 0.0
    %1270 = vmatpush1.msra.mxu0 0.0
    %1271 = vmatprep.subr.mxu0 0.0
    %1272 = vmatpush1.msra.mxu0 0.0
    %1273 = vmatprep.subr.mxu0 0.0
    %1274 = vmatpush1.msra.mxu0 0.0
    %1275 = vmatprep.subr.mxu0 0.0
    %1276 = vmatpush1.msra.mxu0 0.0
    %1277 = vmatprep.subr.mxu0 0.0
    %1278 = vmatpush1.msra.mxu0 0.0
    %1279 = vmatprep.subr.mxu0 0.0
    %1280 = vmatpush1.msra.mxu0 0.0
    %1281 = vmatprep.subr.mxu0 0.0
    %1282 = vmatpush1.msra.mxu0 0.0
    %1283 = vmatprep.subr.mxu0 0.0
    %1284 = vmatpush1.msra.mxu0 0.0
    %1285 = vmatprep.subr.mxu0 %v101
    %1286 = vmatpush1.msra.mxu0 %v100
    %1287 = vmatprep.subr.mxu0 %v99
    %1288 = vmatpush1.msra.mxu0 %v98
    %1289 = vmatprep.subr.mxu0 %v97
    %1290 = vmatpush1.msra.mxu0 %v96
    %1291 = vmatprep.subr.mxu0 %v95
    %1292 = vmatpush1.msra.mxu0 %v94
    %1293 = vmatprep.subr.mxu0 0.0
    %1294 = vmatpush2.msra.mxu0 0.0
    %1295 = vmatprep.subr.mxu0 0.0
    %1296 = vmatpush2.msra.mxu0 0.0
    %1297 = vmatprep.subr.mxu0 0.0
    %1298 = vmatpush2.msra.mxu0 0.0
    %1299 = vmatprep.subr.mxu0 0.0
    %1300 = vmatpush2.msra.mxu0 0.0
    %1301 = vmatprep.subr.mxu0 0.0
    %1302 = vmatpush2.msra.mxu0 0.0
    %1303 = vmatprep.subr.mxu0 0.0
    %1304 = vmatpush2.msra.mxu0 0.0
    %1305 = vmatprep.subr.mxu0 0.0
    %1306 = vmatpush2.msra.mxu0 0.0
    %1307 = vmatprep.subr.mxu0 0.0
    %1308 = vmatpush2.msra.mxu0 0.0
    %1309 = vmatprep.subr.mxu0 0.0
    %1310 = vmatpush2.msra.mxu0 0.0
    %1311 = vmatprep.subr.mxu0 0.0
    %1312 = vmatpush2.msra.mxu0 0.0
    %1313 = vmatprep.subr.mxu0 0.0
    %1314 = vmatpush2.msra.mxu0 0.0
    %1315 = vmatprep.subr.mxu0 0.0
    %1316 = vmatpush2.msra.mxu0 0.0
    %1317 = vmatprep.subr.mxu0 0.0
    %1318 = vmatpush2.msra.mxu0 0.0
    %1319 = vmatprep.subr.mxu0 0.0
    %1320 = vmatpush2.msra.mxu0 0.0
    %1321 = vmatprep.subr.mxu0 0.0
    %1322 = vmatpush2.msra.mxu0 0.0
    %1323 = vmatprep.subr.mxu0 0.0
    %1324 = vmatpush2.msra.mxu0 0.0
    %1325 = vmatprep.mubr.f32.mxu0 0.0
    %1326 = vmatmul.mubr.f32.gmra.mxu0 %v1259
    %v1327 = vpop.f32.mrf.mxu0
    %v1328 = vadd.f32 %v132, %v1327
    %v1329 = vpop.f32.mrf.mxu0
    %v1330 = vadd.f32 %v136, %v1329
    %1331 = vdwg.mxu0
    %vm1332 = vcmp.gt.f32.partialorder %v1328, 20.0
    %v1333 = vmin.f32 %v1328, 20.0
    %v1334 = vmul.f32 %v1333, 1.442695
    %v1335 = vpow.pop %v1334
    %v1336 = vadd.f32 %v1335, 1.0
    %v1337 = vlog2.pop %v1336
    %v1338 = vmul.f32 %v1337, 0.6931472
    %v1339 = vmul.f32 -0.5, %v1335
    %v1340 = vadd.f32 %v1339, 1.0
    %v1341 = vmul.f32 %v1340, %v1335
    %v1342 = vand.u32 2147483647, %v1335
    %vm1343 = vcmp.lt.f32.partialorder %v1342, 0.0004427343
    %v1344 = vsel %vm1343, %v1341, %v1338
    %v1345 = vsel %vm1332, %v1328, %v1344
    %v1347 = vadd.f32 %v255, %v1258
    %v1349 = vsel %vm283, %v1347, 0
    %1351 = vmatprep.subr.mxu0 0.0
    %1352 = vmatpush1.msra.mxu0 0.0
    %1353 = vmatprep.subr.mxu0 0.0
    %1354 = vmatpush1.msra.mxu0 0.0
    %1355 = vmatprep.subr.mxu0 0.0
    %1356 = vmatpush1.msra.mxu0 0.0
    %1357 = vmatprep.subr.mxu0 0.0
    %1358 = vmatpush1.msra.mxu0 0.0
    %1359 = vmatprep.subr.mxu0 0.0
    %1360 = vmatpush1.msra.mxu0 0.0
    %1361 = vmatprep.subr.mxu0 0.0
    %1362 = vmatpush1.msra.mxu0 0.0
    %1363 = vmatprep.subr.mxu0 0.0
    %1364 = vmatpush1.msra.mxu0 0.0
    %1365 = vmatprep.subr.mxu0 0.0
    %1366 = vmatpush1.msra.mxu0 0.0
    %1367 = vmatprep.subr.mxu0 0.0
    %1368 = vmatpush1.msra.mxu0 0.0
    %1369 = vmatprep.subr.mxu0 0.0
    %1370 = vmatpush1.msra.mxu0 0.0
    %1371 = vmatprep.subr.mxu0 0.0
    %1372 = vmatpush1.msra.mxu0 0.0
    %1373 = vmatprep.subr.mxu0 0.0
    %1374 = vmatpush1.msra.mxu0 0.0
    %1375 = vmatprep.subr.mxu0 0.0
    %1376 = vmatpush1.msra.mxu0 %v85
    %1377 = vmatprep.subr.mxu0 0.0
    %1378 = vmatpush1.msra.mxu0 %v84
    %1379 = vmatprep.subr.mxu0 0.0
    %1380 = vmatpush1.msra.mxu0 %v83
    %1381 = vmatprep.subr.mxu0 0.0
    %1382 = vmatpush1.msra.mxu0 %v82
    %1383 = vmatprep.subr.mxu0 0.0
    %1384 = vmatpush2.msra.mxu0 0.0
    %1385 = vmatprep.subr.mxu0 0.0
    %1386 = vmatpush2.msra.mxu0 0.0
    %1387 = vmatprep.subr.mxu0 0.0
    %1388 = vmatpush2.msra.mxu0 0.0
    %1389 = vmatprep.subr.mxu0 0.0
    %1390 = vmatpush2.msra.mxu0 0.0
    %1391 = vmatprep.subr.mxu0 0.0
    %1392 = vmatpush2.msra.mxu0 0.0
    %1393 = vmatprep.subr.mxu0 0.0
    %1394 = vmatpush2.msra.mxu0 0.0
    %1395 = vmatprep.subr.mxu0 0.0
    %1396 = vmatpush2.msra.mxu0 0.0
    %1397 = vmatprep.subr.mxu0 0.0
    %1398 = vmatpush2.msra.mxu0 0.0
    %1399 = vmatprep.subr.mxu0 0.0
    %1400 = vmatpush2.msra.mxu0 0.0
    %1401 = vmatprep.subr.mxu0 0.0
    %1402 = vmatpush2.msra.mxu0 0.0
    %1403 = vmatprep.subr.mxu0 0.0
    %1404 = vmatpush2.msra.mxu0 0.0
    %1405 = vmatprep.subr.mxu0 0.0
    %1406 = vmatpush2.msra.mxu0 0.0
    %1407 = vmatprep.subr.mxu0 0.0
    %1408 = vmatpush2.msra.mxu0 0.0
    %1409 = vmatprep.subr.mxu0 0.0
    %1410 = vmatpush2.msra.mxu0 0.0
    %1411 = vmatprep.subr.mxu0 0.0
    %1412 = vmatpush2.msra.mxu0 0.0
    %1413 = vmatprep.subr.mxu0 0.0
    %1414 = vmatpush2.msra.mxu0 0.0
    %1415 = vmatprep.mubr.f32.mxu0 0.0
    %1416 = vmatmul.mubr.f32.gmra.mxu0 %v1349
    %v1417 = vpop.f32.mrf.mxu0
    %v1418 = vadd.f32 %v111, %v1417
    %v1419 = vpop.f32.mrf.mxu0
    %1420 = vdwg.mxu0
    %vm1421 = vcmp.gt.f32.partialorder %v1418, 20.0
    %v1422 = vmin.f32 %v1418, 20.0
    %v1423 = vmul.f32 %v1422, 1.442695
    %v1424 = vpow.pop %v1423
    %v1425 = vadd.f32 %v1424, 1.0
    %v1426 = vlog2.pop %v1425
    %v1427 = vmul.f32 %v1426, 0.6931472
    %v1428 = vmul.f32 -0.5, %v1424
    %v1429 = vadd.f32 %v1428, 1.0
    %v1430 = vmul.f32 %v1429, %v1424
    %v1431 = vand.u32 2147483647, %v1424
    %vm1432 = vcmp.lt.f32.partialorder %v1431, 0.0004427343
    %v1433 = vsel %vm1432, %v1430, %v1427
    %v1434 = vsel %vm1421, %v1418, %v1433
    %1436 = vrot.lane.b32.xlu0 %v1434, 96
    %v1437 = vpop.permute.xlu0 %1436
    %v1439 = vmul.f32 %v66, %v1437
    %v1440 = vadd.f32 %v1439, %v1418
    %v1442 = vsel %vm283, %v1440, 0
    %1444 = vmatprep.subr.mxu0 0.0
    %1445 = vmatpush1.msra.mxu0 0.0
    %1446 = vmatprep.subr.mxu0 0.0
    %1447 = vmatpush1.msra.mxu0 0.0
    %1448 = vmatprep.subr.mxu0 0.0
    %1449 = vmatpush1.msra.mxu0 0.0
    %1450 = vmatprep.subr.mxu0 0.0
    %1451 = vmatpush1.msra.mxu0 0.0
    %1452 = vmatprep.subr.mxu0 0.0
    %1453 = vmatpush1.msra.mxu0 0.0
    %1454 = vmatprep.subr.mxu0 0.0
    %1455 = vmatpush1.msra.mxu0 0.0
    %1456 = vmatprep.subr.mxu0 0.0
    %1457 = vmatpush1.msra.mxu0 0.0
    %1458 = vmatprep.subr.mxu0 0.0
    %1459 = vmatpush1.msra.mxu0 0.0
    %1460 = vmatprep.subr.mxu0 0.0
    %1461 = vmatpush1.msra.mxu0 0.0
    %1462 = vmatprep.subr.mxu0 0.0
    %1463 = vmatpush1.msra.mxu0 0.0
    %1464 = vmatprep.subr.mxu0 0.0
    %1465 = vmatpush1.msra.mxu0 0.0
    %1466 = vmatprep.subr.mxu0 0.0
    %1467 = vmatpush1.msra.mxu0 0.0
    %1468 = vmatprep.subr.mxu0 0.0
    %1469 = vmatpush1.msra.mxu0 %v93
    %1470 = vmatprep.subr.mxu0 0.0
    %1471 = vmatpush1.msra.mxu0 %v92
    %1472 = vmatprep.subr.mxu0 0.0
    %1473 = vmatpush1.msra.mxu0 %v91
    %1474 = vmatprep.subr.mxu0 0.0
    %1475 = vmatpush1.msra.mxu0 %v90
    %1476 = vmatprep.subr.mxu0 0.0
    %1477 = vmatpush2.msra.mxu0 0.0
    %1478 = vmatprep.subr.mxu0 0.0
    %1479 = vmatpush2.msra.mxu0 0.0
    %1480 = vmatprep.subr.mxu0 0.0
    %1481 = vmatpush2.msra.mxu0 0.0
    %1482 = vmatprep.subr.mxu0 0.0
    %1483 = vmatpush2.msra.mxu0 0.0
    %1484 = vmatprep.subr.mxu0 0.0
    %1485 = vmatpush2.msra.mxu0 0.0
    %1486 = vmatprep.subr.mxu0 0.0
    %1487 = vmatpush2.msra.mxu0 0.0
    %1488 = vmatprep.subr.mxu0 0.0
    %1489 = vmatpush2.msra.mxu0 0.0
    %1490 = vmatprep.subr.mxu0 0.0
    %1491 = vmatpush2.msra.mxu0 0.0
    %1492 = vmatprep.subr.mxu0 0.0
    %1493 = vmatpush2.msra.mxu0 0.0
    %1494 = vmatprep.subr.mxu0 0.0
    %1495 = vmatpush2.msra.mxu0 0.0
    %1496 = vmatprep.subr.mxu0 0.0
    %1497 = vmatpush2.msra.mxu0 0.0
    %1498 = vmatprep.subr.mxu0 0.0
    %1499 = vmatpush2.msra.mxu0 0.0
    %1500 = vmatprep.subr.mxu0 0.0
    %1501 = vmatpush2.msra.mxu0 0.0
    %1502 = vmatprep.subr.mxu0 0.0
    %1503 = vmatpush2.msra.mxu0 0.0
    %1504 = vmatprep.subr.mxu0 0.0
    %1505 = vmatpush2.msra.mxu0 0.0
    %1506 = vmatprep.subr.mxu0 0.0
    %1507 = vmatpush2.msra.mxu0 0.0
    %1508 = vmatprep.mubr.f32.mxu0 0.0
    %1509 = vmatmul.mubr.f32.gmra.mxu0 %v1442
    %v1510 = vpop.f32.mrf.mxu0
    %v1511 = vadd.f32 %v125, %v1510
    %v1512 = vpop.f32.mrf.mxu0
    %1513 = vdwg.mxu0
    %v1514 = vadd.f32 %v1511, %v1258
    %v1516 = vsel %vm283, %v1514, 0
    %1518 = vmatprep.subr.mxu0 0.0
    %1519 = vmatpush1.msra.mxu0 0.0
    %1520 = vmatprep.subr.mxu0 0.0
    %1521 = vmatpush1.msra.mxu0 0.0
    %1522 = vmatprep.subr.mxu0 0.0
    %1523 = vmatpush1.msra.mxu0 0.0
    %1524 = vmatprep.subr.mxu0 0.0
    %1525 = vmatpush1.msra.mxu0 0.0
    %1526 = vmatprep.subr.mxu0 0.0
    %1527 = vmatpush1.msra.mxu0 0.0
    %1528 = vmatprep.subr.mxu0 0.0
    %1529 = vmatpush1.msra.mxu0 0.0
    %1530 = vmatprep.subr.mxu0 0.0
    %1531 = vmatpush1.msra.mxu0 0.0
    %1532 = vmatprep.subr.mxu0 0.0
    %1533 = vmatpush1.msra.mxu0 0.0
    %1534 = vmatprep.subr.mxu0 0.0
    %1535 = vmatpush1.msra.mxu0 0.0
    %1536 = vmatprep.subr.mxu0 0.0
    %1537 = vmatpush1.msra.mxu0 0.0
    %1538 = vmatprep.subr.mxu0 0.0
    %1539 = vmatpush1.msra.mxu0 0.0
    %1540 = vmatprep.subr.mxu0 0.0
    %1541 = vmatpush1.msra.mxu0 0.0
    %1542 = vmatprep.subr.mxu0 0.0
    %1543 = vmatpush1.msra.mxu0 %v89
    %1544 = vmatprep.subr.mxu0 0.0
    %1545 = vmatpush1.msra.mxu0 %v88
    %1546 = vmatprep.subr.mxu0 0.0
    %1547 = vmatpush1.msra.mxu0 %v87
    %1548 = vmatprep.subr.mxu0 0.0
    %1549 = vmatpush1.msra.mxu0 %v86
    %1550 = vmatprep.subr.mxu0 0.0
    %1551 = vmatpush2.msra.mxu0 0.0
    %1552 = vmatprep.subr.mxu0 0.0
    %1553 = vmatpush2.msra.mxu0 0.0
    %1554 = vmatprep.subr.mxu0 0.0
    %1555 = vmatpush2.msra.mxu0 0.0
    %1556 = vmatprep.subr.mxu0 0.0
    %1557 = vmatpush2.msra.mxu0 0.0
    %1558 = vmatprep.subr.mxu0 0.0
    %1559 = vmatpush2.msra.mxu0 0.0
    %1560 = vmatprep.subr.mxu0 0.0
    %1561 = vmatpush2.msra.mxu0 0.0
    %1562 = vmatprep.subr.mxu0 0.0
    %1563 = vmatpush2.msra.mxu0 0.0
    %1564 = vmatprep.subr.mxu0 0.0
    %1565 = vmatpush2.msra.mxu0 0.0
    %1566 = vmatprep.subr.mxu0 0.0
    %1567 = vmatpush2.msra.mxu0 0.0
    %1568 = vmatprep.subr.mxu0 0.0
    %1569 = vmatpush2.msra.mxu0 0.0
    %1570 = vmatprep.subr.mxu0 0.0
    %1571 = vmatpush2.msra.mxu0 0.0
    %1572 = vmatprep.subr.mxu0 0.0
    %1573 = vmatpush2.msra.mxu0 0.0
    %1574 = vmatprep.subr.mxu0 0.0
    %1575 = vmatpush2.msra.mxu0 0.0
    %1576 = vmatprep.subr.mxu0 0.0
    %1577 = vmatpush2.msra.mxu0 0.0
    %1578 = vmatprep.subr.mxu0 0.0
    %1579 = vmatpush2.msra.mxu0 0.0
    %1580 = vmatprep.subr.mxu0 0.0
    %1581 = vmatpush2.msra.mxu0 0.0
    %1582 = vmatprep.mubr.f32.mxu0 0.0
    %1583 = vmatmul.mubr.f32.gmra.mxu0 %v1516
    %v1584 = vpop.f32.mrf.mxu0
    %v1585 = vadd.f32 %v118, %v1584
    %v1586 = vpop.f32.mrf.mxu0
    %1587 = vdwg.mxu0
    %vm1588 = vcmp.gt.f32.partialorder %v1585, 20.0
    %v1589 = vmin.f32 %v1585, 20.0
    %v1590 = vmul.f32 %v1589, 1.442695
    %v1591 = vpow.pop %v1590
    %v1592 = vadd.f32 %v1591, 1.0
    %v1593 = vlog2.pop %v1592
    %v1594 = vmul.f32 %v1593, 0.6931472
    %v1595 = vmul.f32 -0.5, %v1591
    %v1596 = vadd.f32 %v1595, 1.0
    %v1597 = vmul.f32 %v1596, %v1591
    %v1598 = vand.u32 2147483647, %v1591
    %vm1599 = vcmp.lt.f32.partialorder %v1598, 0.0004427343
    %v1600 = vsel %vm1599, %v1597, %v1594
    %v1601 = vsel %vm1588, %v1585, %v1600
    %1603 = vrot.lane.b32.xlu0 %v1601, 112
    %v1604 = vpop.permute.xlu0 %1603
    %v1606 = vmul.f32 %v74, %v1604
    %v1607 = vadd.f32 %v1606, %v1585
    %1609 = vrot.lane.b32.xlu0 %v1511, 96
    %v1610 = vpop.permute.xlu0 %1609
    %v1611 = vsel %vm283, %v1610, 0
    %1613 = vmatprep.subr.mxu0 0.0
    %1614 = vmatpush1.msra.mxu0 0.0
    %1615 = vmatprep.subr.mxu0 0.0
    %1616 = vmatpush1.msra.mxu0 0.0
    %1617 = vmatprep.subr.mxu0 0.0
    %1618 = vmatpush1.msra.mxu0 0.0
    %1619 = vmatprep.subr.mxu0 0.0
    %1620 = vmatpush1.msra.mxu0 0.0
    %1621 = vmatprep.subr.mxu0 0.0
    %1622 = vmatpush1.msra.mxu0 0.0
    %1623 = vmatprep.subr.mxu0 0.0
    %1624 = vmatpush1.msra.mxu0 0.0
    %1625 = vmatprep.subr.mxu0 0.0
    %1626 = vmatpush1.msra.mxu0 0.0
    %1627 = vmatprep.subr.mxu0 0.0
    %1628 = vmatpush1.msra.mxu0 0.0
    %1629 = vmatprep.subr.mxu0 0.0
    %1630 = vmatpush1.msra.mxu0 0.0
    %1631 = vmatprep.subr.mxu0 0.0
    %1632 = vmatpush1.msra.mxu0 0.0
    %1633 = vmatprep.subr.mxu0 0.0
    %1634 = vmatpush1.msra.mxu0 0.0
    %1635 = vmatprep.subr.mxu0 0.0
    %1636 = vmatpush1.msra.mxu0 0.0
    %1637 = vmatprep.subr.mxu0 0.0
    %1638 = vmatpush1.msra.mxu0 %v105
    %1639 = vmatprep.subr.mxu0 0.0
    %1640 = vmatpush1.msra.mxu0 %v104
    %1641 = vmatprep.subr.mxu0 0.0
    %1642 = vmatpush1.msra.mxu0 %v103
    %1643 = vmatprep.subr.mxu0 0.0
    %1644 = vmatpush1.msra.mxu0 %v102
    %1645 = vmatprep.subr.mxu0 0.0
    %1646 = vmatpush2.msra.mxu0 0.0
    %1647 = vmatprep.subr.mxu0 0.0
    %1648 = vmatpush2.msra.mxu0 0.0
    %1649 = vmatprep.subr.mxu0 0.0
    %1650 = vmatpush2.msra.mxu0 0.0
    %1651 = vmatprep.subr.mxu0 0.0
    %1652 = vmatpush2.msra.mxu0 0.0
    %1653 = vmatprep.subr.mxu0 0.0
    %1654 = vmatpush2.msra.mxu0 0.0
    %1655 = vmatprep.subr.mxu0 0.0
    %1656 = vmatpush2.msra.mxu0 0.0
    %1657 = vmatprep.subr.mxu0 0.0
    %1658 = vmatpush2.msra.mxu0 0.0
    %1659 = vmatprep.subr.mxu0 0.0
    %1660 = vmatpush2.msra.mxu0 0.0
    %1661 = vmatprep.subr.mxu0 0.0
    %1662 = vmatpush2.msra.mxu0 0.0
    %1663 = vmatprep.subr.mxu0 0.0
    %1664 = vmatpush2.msra.mxu0 0.0
    %1665 = vmatprep.subr.mxu0 0.0
    %1666 = vmatpush2.msra.mxu0 0.0
    %1667 = vmatprep.subr.mxu0 0.0
    %1668 = vmatpush2.msra.mxu0 0.0
    %1669 = vmatprep.subr.mxu0 0.0
    %1670 = vmatpush2.msra.mxu0 0.0
    %1671 = vmatprep.subr.mxu0 0.0
    %1672 = vmatpush2.msra.mxu0 0.0
    %1673 = vmatprep.subr.mxu0 0.0
    %1674 = vmatpush2.msra.mxu0 0.0
    %1675 = vmatprep.subr.mxu0 0.0
    %1676 = vmatpush2.msra.mxu0 0.0
    %1677 = vmatprep.mubr.f32.mxu0 0.0
    %1678 = vmatmul.mubr.f32.gmra.mxu0 %v1611
    %v1679 = vpop.f32.mrf.mxu0
    %v1680 = vadd.f32 %v144, %v1679
    %v1681 = vpop.f32.mrf.mxu0
    %1682 = vdwg.mxu0
    %1684 = vrot.lane.b32.xlu0 %v1328, 64
    %v1685 = vpop.permute.xlu0 %1684
    %v1687 = vadd.f32 %v1680, %v1685
    %v1688 = vxor.u32 %v1687, 2147483648
    %v1689 = vmul.f32 %v1688, 1.442695
    %v1690 = vpow.pop %v1689
    %v1691 = vadd.f32 %v1690, 1.0
    %v1692 = vrcp.pop %v1691
    %v1693 = vmul.f32 1.0, %v1692
    %v1694 = vmul.f32 %v1693, %v1330
    %1696 = vrot.lane.b32.xlu0 %v1694, 64
    %v1697 = vpop.permute.xlu0 %1696
    %v1699 = vadd.f32 %v1680, %v1697
    %v1700 = vtanh.pop %v1699
    %v1701 = vsub.f32 1.0, %v1693
    %1703 = vrot.lane.b32.xlu0 %v1700, 96
    %v1704 = vpop.permute.xlu0 %1703
    %v1706 = vmul.f32 %v1701, %v1704
    %v1707 = vmul.f32 %v1693, %v1210
    %v1708 = vadd.f32 %v1706, %v1707
    %v1709 = vsub.f32 %v1607, %v58
    %v1710 = vmul.f32 %v1709, %v1709
    %v1711 = vadd.f32 %v1213, %v1710
    %v1712 = vlog2.pop %v1434
    %v1713 = vmul.f32 %v1712, 0.6931472
    %v1714 = vmul.f32 %v1713, 2.0
    %v1715 = vlog2.pop %v1345
    %v1716 = vmul.f32 %v1715, 0.6931472
    %v1717 = vmul.f32 %v1716, 2.0
    %v1718 = vsub.f32 %v1714, %v1717
    %v1719 = vmul.f32 %v1345, %v1345
    %v1720 = vsub.f32 %v1328, %v1418
    %v1721 = vmul.f32 %v1720, %v1720
    %1723 = vrot.lane.b32.xlu0 %v1721, 32
    %v1724 = vpop.permute.xlu0 %1723
    %v1726 = vadd.f32 %v1719, %v1724
    %v1727 = vmul.f32 %v1434, %v1434
    %v1728 = vrcp.pop %v1727
    %v1729 = vmul.f32 %v1726, %v1728
    %v1730 = vadd.f32 %v1718, %v1729
    %v1731 = vsub.f32 %v1730, 1.0
    %v1732 = vadd.f32 %v1234, %v1731
    %v1733 = vlog2.pop %v1601
    %v1734 = vmul.f32 %v1733, 0.6931472
    %v1735 = vmul.f32 %v1734, 2.0
    %v1736 = vsub.f32 %v1735, %v1237
    %v1737 = vsub.f32 %v1087, %v1585
    %v1738 = vmul.f32 %v1737, %v1737
    %1740 = vrot.lane.b32.xlu0 %v1738, 16
    %v1741 = vpop.permute.xlu0 %1740
    %v1743 = vadd.f32 %v1250, %v1741
    %v1744 = vmul.f32 %v1601, %v1601
    %v1745 = vrcp.pop %v1744
    %v1746 = vmul.f32 %v1743, %v1745
    %v1747 = vadd.f32 %v1736, %v1746
    %v1748 = vsub.f32 %v1747, 1.0
    %v1749 = vadd.f32 %v1255, %v1748
    %1751 = vrot.lane.b32.xlu0 %v1708, 96
    %v1752 = vpop.permute.xlu0 %1751
    %v1753 = vsel %vm283, %v1752, 0
    %1755 = vmatprep.subr.mxu0 0.0
    %1756 = vmatpush1.msra.mxu0 0.0
    %1757 = vmatprep.subr.mxu0 0.0
    %1758 = vmatpush1.msra.mxu0 0.0
    %1759 = vmatprep.subr.mxu0 0.0
    %1760 = vmatpush1.msra.mxu0 0.0
    %1761 = vmatprep.subr.mxu0 0.0
    %1762 = vmatpush1.msra.mxu0 0.0
    %1763 = vmatprep.subr.mxu0 0.0
    %1764 = vmatpush1.msra.mxu0 0.0
    %1765 = vmatprep.subr.mxu0 0.0
    %1766 = vmatpush1.msra.mxu0 0.0
    %1767 = vmatprep.subr.mxu0 0.0
    %1768 = vmatpush1.msra.mxu0 0.0
    %1769 = vmatprep.subr.mxu0 0.0
    %1770 = vmatpush1.msra.mxu0 0.0
    %1771 = vmatprep.subr.mxu0 0.0
    %1772 = vmatpush1.msra.mxu0 0.0
    %1773 = vmatprep.subr.mxu0 0.0
    %1774 = vmatpush1.msra.mxu0 0.0
    %1775 = vmatprep.subr.mxu0 0.0
    %1776 = vmatpush1.msra.mxu0 0.0
    %1777 = vmatprep.subr.mxu0 0.0
    %1778 = vmatpush1.msra.mxu0 0.0
    %1779 = vmatprep.subr.mxu0 %v101
    %1780 = vmatpush1.msra.mxu0 %v100
    %1781 = vmatprep.subr.mxu0 %v99
    %1782 = vmatpush1.msra.mxu0 %v98
    %1783 = vmatprep.subr.mxu0 %v97
    %1784 = vmatpush1.msra.mxu0 %v96
    %1785 = vmatprep.subr.mxu0 %v95
    %1786 = vmatpush1.msra.mxu0 %v94
    %1787 = vmatprep.subr.mxu0 0.0
    %1788 = vmatpush2.msra.mxu0 0.0
    %1789 = vmatprep.subr.mxu0 0.0
    %1790 = vmatpush2.msra.mxu0 0.0
    %1791 = vmatprep.subr.mxu0 0.0
    %1792 = vmatpush2.msra.mxu0 0.0
    %1793 = vmatprep.subr.mxu0 0.0
    %1794 = vmatpush2.msra.mxu0 0.0
    %1795 = vmatprep.subr.mxu0 0.0
    %1796 = vmatpush2.msra.mxu0 0.0
    %1797 = vmatprep.subr.mxu0 0.0
    %1798 = vmatpush2.msra.mxu0 0.0
    %1799 = vmatprep.subr.mxu0 0.0
    %1800 = vmatpush2.msra.mxu0 0.0
    %1801 = vmatprep.subr.mxu0 0.0
    %1802 = vmatpush2.msra.mxu0 0.0
    %1803 = vmatprep.subr.mxu0 0.0
    %1804 = vmatpush2.msra.mxu0 0.0
    %1805 = vmatprep.subr.mxu0 0.0
    %1806 = vmatpush2.msra.mxu0 0.0
    %1807 = vmatprep.subr.mxu0 0.0
    %1808 = vmatpush2.msra.mxu0 0.0
    %1809 = vmatprep.subr.mxu0 0.0
    %1810 = vmatpush2.msra.mxu0 0.0
    %1811 = vmatprep.subr.mxu0 0.0
    %1812 = vmatpush2.msra.mxu0 0.0
    %1813 = vmatprep.subr.mxu0 0.0
    %1814 = vmatpush2.msra.mxu0 0.0
    %1815 = vmatprep.subr.mxu0 0.0
    %1816 = vmatpush2.msra.mxu0 0.0
    %1817 = vmatprep.subr.mxu0 0.0
    %1818 = vmatpush2.msra.mxu0 0.0
    %1819 = vmatprep.mubr.f32.mxu0 0.0
    %1820 = vmatmul.mubr.f32.gmra.mxu0 %v1753
    %v1821 = vpop.f32.mrf.mxu0
    %v1822 = vadd.f32 %v132, %v1821
    %v1823 = vpop.f32.mrf.mxu0
    %v1824 = vadd.f32 %v136, %v1823
    %1825 = vdwg.mxu0
    %vm1826 = vcmp.gt.f32.partialorder %v1822, 20.0
    %v1827 = vmin.f32 %v1822, 20.0
    %v1828 = vmul.f32 %v1827, 1.442695
    %v1829 = vpow.pop %v1828
    %v1830 = vadd.f32 %v1829, 1.0
    %v1831 = vlog2.pop %v1830
    %v1832 = vmul.f32 %v1831, 0.6931472
    %v1833 = vmul.f32 -0.5, %v1829
    %v1834 = vadd.f32 %v1833, 1.0
    %v1835 = vmul.f32 %v1834, %v1829
    %v1836 = vand.u32 2147483647, %v1829
    %vm1837 = vcmp.lt.f32.partialorder %v1836, 0.0004427343
    %v1838 = vsel %vm1837, %v1835, %v1832
    %v1839 = vsel %vm1826, %v1822, %v1838
    %v1841 = vadd.f32 %v260, %v1752
    %v1843 = vsel %vm283, %v1841, 0
    %1845 = vmatprep.subr.mxu0 0.0
    %1846 = vmatpush1.msra.mxu0 0.0
    %1847 = vmatprep.subr.mxu0 0.0
    %1848 = vmatpush1.msra.mxu0 0.0
    %1849 = vmatprep.subr.mxu0 0.0
    %1850 = vmatpush1.msra.mxu0 0.0
    %1851 = vmatprep.subr.mxu0 0.0
    %1852 = vmatpush1.msra.mxu0 0.0
    %1853 = vmatprep.subr.mxu0 0.0
    %1854 = vmatpush1.msra.mxu0 0.0
    %1855 = vmatprep.subr.mxu0 0.0
    %1856 = vmatpush1.msra.mxu0 0.0
    %1857 = vmatprep.subr.mxu0 0.0
    %1858 = vmatpush1.msra.mxu0 0.0
    %1859 = vmatprep.subr.mxu0 0.0
    %1860 = vmatpush1.msra.mxu0 0.0
    %1861 = vmatprep.subr.mxu0 0.0
    %1862 = vmatpush1.msra.mxu0 0.0
    %1863 = vmatprep.subr.mxu0 0.0
    %1864 = vmatpush1.msra.mxu0 0.0
    %1865 = vmatprep.subr.mxu0 0.0
    %1866 = vmatpush1.msra.mxu0 0.0
    %1867 = vmatprep.subr.mxu0 0.0
    %1868 = vmatpush1.msra.mxu0 0.0
    %1869 = vmatprep.subr.mxu0 0.0
    %1870 = vmatpush1.msra.mxu0 %v85
    %1871 = vmatprep.subr.mxu0 0.0
    %1872 = vmatpush1.msra.mxu0 %v84
    %1873 = vmatprep.subr.mxu0 0.0
    %1874 = vmatpush1.msra.mxu0 %v83
    %1875 = vmatprep.subr.mxu0 0.0
    %1876 = vmatpush1.msra.mxu0 %v82
    %1877 = vmatprep.subr.mxu0 0.0
    %1878 = vmatpush2.msra.mxu0 0.0
    %1879 = vmatprep.subr.mxu0 0.0
    %1880 = vmatpush2.msra.mxu0 0.0
    %1881 = vmatprep.subr.mxu0 0.0
    %1882 = vmatpush2.msra.mxu0 0.0
    %1883 = vmatprep.subr.mxu0 0.0
    %1884 = vmatpush2.msra.mxu0 0.0
    %1885 = vmatprep.subr.mxu0 0.0
    %1886 = vmatpush2.msra.mxu0 0.0
    %1887 = vmatprep.subr.mxu0 0.0
    %1888 = vmatpush2.msra.mxu0 0.0
    %1889 = vmatprep.subr.mxu0 0.0
    %1890 = vmatpush2.msra.mxu0 0.0
    %1891 = vmatprep.subr.mxu0 0.0
    %1892 = vmatpush2.msra.mxu0 0.0
    %1893 = vmatprep.subr.mxu0 0.0
    %1894 = vmatpush2.msra.mxu0 0.0
    %1895 = vmatprep.subr.mxu0 0.0
    %1896 = vmatpush2.msra.mxu0 0.0
    %1897 = vmatprep.subr.mxu0 0.0
    %1898 = vmatpush2.msra.mxu0 0.0
    %1899 = vmatprep.subr.mxu0 0.0
    %1900 = vmatpush2.msra.mxu0 0.0
    %1901 = vmatprep.subr.mxu0 0.0
    %1902 = vmatpush2.msra.mxu0 0.0
    %1903 = vmatprep.subr.mxu0 0.0
    %1904 = vmatpush2.msra.mxu0 0.0
    %1905 = vmatprep.subr.mxu0 0.0
    %1906 = vmatpush2.msra.mxu0 0.0
    %1907 = vmatprep.subr.mxu0 0.0
    %1908 = vmatpush2.msra.mxu0 0.0
    %1909 = vmatprep.mubr.f32.mxu0 0.0
    %1910 = vmatmul.mubr.f32.gmra.mxu0 %v1843
    %v1911 = vpop.f32.mrf.mxu0
    %v1912 = vadd.f32 %v111, %v1911
    %v1913 = vpop.f32.mrf.mxu0
    %1914 = vdwg.mxu0
    %vm1915 = vcmp.gt.f32.partialorder %v1912, 20.0
    %v1916 = vmin.f32 %v1912, 20.0
    %v1917 = vmul.f32 %v1916, 1.442695
    %v1918 = vpow.pop %v1917
    %v1919 = vadd.f32 %v1918, 1.0
    %v1920 = vlog2.pop %v1919
    %v1921 = vmul.f32 %v1920, 0.6931472
    %v1922 = vmul.f32 -0.5, %v1918
    %v1923 = vadd.f32 %v1922, 1.0
    %v1924 = vmul.f32 %v1923, %v1918
    %v1925 = vand.u32 2147483647, %v1918
    %vm1926 = vcmp.lt.f32.partialorder %v1925, 0.0004427343
    %v1927 = vsel %vm1926, %v1924, %v1921
    %v1928 = vsel %vm1915, %v1912, %v1927
    %1930 = vrot.lane.b32.xlu0 %v1928, 96
    %v1931 = vpop.permute.xlu0 %1930
    %v1933 = vmul.f32 %v67, %v1931
    %v1934 = vadd.f32 %v1933, %v1912
    %v1936 = vsel %vm283, %v1934, 0
    %1938 = vmatprep.subr.mxu0 0.0
    %1939 = vmatpush1.msra.mxu0 0.0
    %1940 = vmatprep.subr.mxu0 0.0
    %1941 = vmatpush1.msra.mxu0 0.0
    %1942 = vmatprep.subr.mxu0 0.0
    %1943 = vmatpush1.msra.mxu0 0.0
    %1944 = vmatprep.subr.mxu0 0.0
    %1945 = vmatpush1.msra.mxu0 0.0
    %1946 = vmatprep.subr.mxu0 0.0
    %1947 = vmatpush1.msra.mxu0 0.0
    %1948 = vmatprep.subr.mxu0 0.0
    %1949 = vmatpush1.msra.mxu0 0.0
    %1950 = vmatprep.subr.mxu0 0.0
    %1951 = vmatpush1.msra.mxu0 0.0
    %1952 = vmatprep.subr.mxu0 0.0
    %1953 = vmatpush1.msra.mxu0 0.0
    %1954 = vmatprep.subr.mxu0 0.0
    %1955 = vmatpush1.msra.mxu0 0.0
    %1956 = vmatprep.subr.mxu0 0.0
    %1957 = vmatpush1.msra.mxu0 0.0
    %1958 = vmatprep.subr.mxu0 0.0
    %1959 = vmatpush1.msra.mxu0 0.0
    %1960 = vmatprep.subr.mxu0 0.0
    %1961 = vmatpush1.msra.mxu0 0.0
    %1962 = vmatprep.subr.mxu0 0.0
    %1963 = vmatpush1.msra.mxu0 %v93
    %1964 = vmatprep.subr.mxu0 0.0
    %1965 = vmatpush1.msra.mxu0 %v92
    %1966 = vmatprep.subr.mxu0 0.0
    %1967 = vmatpush1.msra.mxu0 %v91
    %1968 = vmatprep.subr.mxu0 0.0
    %1969 = vmatpush1.msra.mxu0 %v90
    %1970 = vmatprep.subr.mxu0 0.0
    %1971 = vmatpush2.msra.mxu0 0.0
    %1972 = vmatprep.subr.mxu0 0.0
    %1973 = vmatpush2.msra.mxu0 0.0
    %1974 = vmatprep.subr.mxu0 0.0
    %1975 = vmatpush2.msra.mxu0 0.0
    %1976 = vmatprep.subr.mxu0 0.0
    %1977 = vmatpush2.msra.mxu0 0.0
    %1978 = vmatprep.subr.mxu0 0.0
    %1979 = vmatpush2.msra.mxu0 0.0
    %1980 = vmatprep.subr.mxu0 0.0
    %1981 = vmatpush2.msra.mxu0 0.0
    %1982 = vmatprep.subr.mxu0 0.0
    %1983 = vmatpush2.msra.mxu0 0.0
    %1984 = vmatprep.subr.mxu0 0.0
    %1985 = vmatpush2.msra.mxu0 0.0
    %1986 = vmatprep.subr.mxu0 0.0
    %1987 = vmatpush2.msra.mxu0 0.0
    %1988 = vmatprep.subr.mxu0 0.0
    %1989 = vmatpush2.msra.mxu0 0.0
    %1990 = vmatprep.subr.mxu0 0.0
    %1991 = vmatpush2.msra.mxu0 0.0
    %1992 = vmatprep.subr.mxu0 0.0
    %1993 = vmatpush2.msra.mxu0 0.0
    %1994 = vmatprep.subr.mxu0 0.0
    %1995 = vmatpush2.msra.mxu0 0.0
    %1996 = vmatprep.subr.mxu0 0.0
    %1997 = vmatpush2.msra.mxu0 0.0
    %1998 = vmatprep.subr.mxu0 0.0
    %1999 = vmatpush2.msra.mxu0 0.0
    %2000 = vmatprep.subr.mxu0 0.0
    %2001 = vmatpush2.msra.mxu0 0.0
    %2002 = vmatprep.mubr.f32.mxu0 0.0
    %2003 = vmatmul.mubr.f32.gmra.mxu0 %v1936
    %v2004 = vpop.f32.mrf.mxu0
    %v2005 = vadd.f32 %v125, %v2004
    %v2006 = vpop.f32.mrf.mxu0
    %2007 = vdwg.mxu0
    %v2008 = vadd.f32 %v2005, %v1752
    %v2010 = vsel %vm283, %v2008, 0
    %2012 = vmatprep.subr.mxu0 0.0
    %2013 = vmatpush1.msra.mxu0 0.0
    %2014 = vmatprep.subr.mxu0 0.0
    %2015 = vmatpush1.msra.mxu0 0.0
    %2016 = vmatprep.subr.mxu0 0.0
    %2017 = vmatpush1.msra.mxu0 0.0
    %2018 = vmatprep.subr.mxu0 0.0
    %2019 = vmatpush1.msra.mxu0 0.0
    %2020 = vmatprep.subr.mxu0 0.0
    %2021 = vmatpush1.msra.mxu0 0.0
    %2022 = vmatprep.subr.mxu0 0.0
    %2023 = vmatpush1.msra.mxu0 0.0
    %2024 = vmatprep.subr.mxu0 0.0
    %2025 = vmatpush1.msra.mxu0 0.0
    %2026 = vmatprep.subr.mxu0 0.0
    %2027 = vmatpush1.msra.mxu0 0.0
    %2028 = vmatprep.subr.mxu0 0.0
    %2029 = vmatpush1.msra.mxu0 0.0
    %2030 = vmatprep.subr.mxu0 0.0
    %2031 = vmatpush1.msra.mxu0 0.0
    %2032 = vmatprep.subr.mxu0 0.0
    %2033 = vmatpush1.msra.mxu0 0.0
    %2034 = vmatprep.subr.mxu0 0.0
    %2035 = vmatpush1.msra.mxu0 0.0
    %2036 = vmatprep.subr.mxu0 0.0
    %2037 = vmatpush1.msra.mxu0 %v89
    %2038 = vmatprep.subr.mxu0 0.0
    %2039 = vmatpush1.msra.mxu0 %v88
    %2040 = vmatprep.subr.mxu0 0.0
    %2041 = vmatpush1.msra.mxu0 %v87
    %2042 = vmatprep.subr.mxu0 0.0
    %2043 = vmatpush1.msra.mxu0 %v86
    %2044 = vmatprep.subr.mxu0 0.0
    %2045 = vmatpush2.msra.mxu0 0.0
    %2046 = vmatprep.subr.mxu0 0.0
    %2047 = vmatpush2.msra.mxu0 0.0
    %2048 = vmatprep.subr.mxu0 0.0
    %2049 = vmatpush2.msra.mxu0 0.0
    %2050 = vmatprep.subr.mxu0 0.0
    %2051 = vmatpush2.msra.mxu0 0.0
    %2052 = vmatprep.subr.mxu0 0.0
    %2053 = vmatpush2.msra.mxu0 0.0
    %2054 = vmatprep.subr.mxu0 0.0
    %2055 = vmatpush2.msra.mxu0 0.0
    %2056 = vmatprep.subr.mxu0 0.0
    %2057 = vmatpush2.msra.mxu0 0.0
    %2058 = vmatprep.subr.mxu0 0.0
    %2059 = vmatpush2.msra.mxu0 0.0
    %2060 = vmatprep.subr.mxu0 0.0
    %2061 = vmatpush2.msra.mxu0 0.0
    %2062 = vmatprep.subr.mxu0 0.0
    %2063 = vmatpush2.msra.mxu0 0.0
    %2064 = vmatprep.subr.mxu0 0.0
    %2065 = vmatpush2.msra.mxu0 0.0
    %2066 = vmatprep.subr.mxu0 0.0
    %2067 = vmatpush2.msra.mxu0 0.0
    %2068 = vmatprep.subr.mxu0 0.0
    %2069 = vmatpush2.msra.mxu0 0.0
    %2070 = vmatprep.subr.mxu0 0.0
    %2071 = vmatpush2.msra.mxu0 0.0
    %2072 = vmatprep.subr.mxu0 0.0
    %2073 = vmatpush2.msra.mxu0 0.0
    %2074 = vmatprep.subr.mxu0 0.0
    %2075 = vmatpush2.msra.mxu0 0.0
    %2076 = vmatprep.mubr.f32.mxu0 0.0
    %2077 = vmatmul.mubr.f32.gmra.mxu0 %v2010
    %v2078 = vpop.f32.mrf.mxu0
    %v2079 = vadd.f32 %v118, %v2078
    %v2080 = vpop.f32.mrf.mxu0
    %2081 = vdwg.mxu0
    %vm2082 = vcmp.gt.f32.partialorder %v2079, 20.0
    %v2083 = vmin.f32 %v2079, 20.0
    %v2084 = vmul.f32 %v2083, 1.442695
    %v2085 = vpow.pop %v2084
    %v2086 = vadd.f32 %v2085, 1.0
    %v2087 = vlog2.pop %v2086
    %v2088 = vmul.f32 %v2087, 0.6931472
    %v2089 = vmul.f32 -0.5, %v2085
    %v2090 = vadd.f32 %v2089, 1.0
    %v2091 = vmul.f32 %v2090, %v2085
    %v2092 = vand.u32 2147483647, %v2085
    %vm2093 = vcmp.lt.f32.partialorder %v2092, 0.0004427343
    %v2094 = vsel %vm2093, %v2091, %v2088
    %v2095 = vsel %vm2082, %v2079, %v2094
    %2097 = vrot.lane.b32.xlu0 %v2095, 112
    %v2098 = vpop.permute.xlu0 %2097
    %v2100 = vmul.f32 %v75, %v2098
    %v2101 = vadd.f32 %v2100, %v2079
    %2103 = vrot.lane.b32.xlu0 %v2005, 96
    %v2104 = vpop.permute.xlu0 %2103
    %v2105 = vsel %vm283, %v2104, 0
    %2107 = vmatprep.subr.mxu0 0.0
    %2108 = vmatpush1.msra.mxu0 0.0
    %2109 = vmatprep.subr.mxu0 0.0
    %2110 = vmatpush1.msra.mxu0 0.0
    %2111 = vmatprep.subr.mxu0 0.0
    %2112 = vmatpush1.msra.mxu0 0.0
    %2113 = vmatprep.subr.mxu0 0.0
    %2114 = vmatpush1.msra.mxu0 0.0
    %2115 = vmatprep.subr.mxu0 0.0
    %2116 = vmatpush1.msra.mxu0 0.0
    %2117 = vmatprep.subr.mxu0 0.0
    %2118 = vmatpush1.msra.mxu0 0.0
    %2119 = vmatprep.subr.mxu0 0.0
    %2120 = vmatpush1.msra.mxu0 0.0
    %2121 = vmatprep.subr.mxu0 0.0
    %2122 = vmatpush1.msra.mxu0 0.0
    %2123 = vmatprep.subr.mxu0 0.0
    %2124 = vmatpush1.msra.mxu0 0.0
    %2125 = vmatprep.subr.mxu0 0.0
    %2126 = vmatpush1.msra.mxu0 0.0
    %2127 = vmatprep.subr.mxu0 0.0
    %2128 = vmatpush1.msra.mxu0 0.0
    %2129 = vmatprep.subr.mxu0 0.0
    %2130 = vmatpush1.msra.mxu0 0.0
    %2131 = vmatprep.subr.mxu0 0.0
    %2132 = vmatpush1.msra.mxu0 %v105
    %2133 = vmatprep.subr.mxu0 0.0
    %2134 = vmatpush1.msra.mxu0 %v104
    %2135 = vmatprep.subr.mxu0 0.0
    %2136 = vmatpush1.msra.mxu0 %v103
    %2137 = vmatprep.subr.mxu0 0.0
    %2138 = vmatpush1.msra.mxu0 %v102
    %2139 = vmatprep.subr.mxu0 0.0
    %2140 = vmatpush2.msra.mxu0 0.0
    %2141 = vmatprep.subr.mxu0 0.0
    %2142 = vmatpush2.msra.mxu0 0.0
    %2143 = vmatprep.subr.mxu0 0.0
    %2144 = vmatpush2.msra.mxu0 0.0
    %2145 = vmatprep.subr.mxu0 0.0
    %2146 = vmatpush2.msra.mxu0 0.0
    %2147 = vmatprep.subr.mxu0 0.0
    %2148 = vmatpush2.msra.mxu0 0.0
    %2149 = vmatprep.subr.mxu0 0.0
    %2150 = vmatpush2.msra.mxu0 0.0
    %2151 = vmatprep.subr.mxu0 0.0
    %2152 = vmatpush2.msra.mxu0 0.0
    %2153 = vmatprep.subr.mxu0 0.0
    %2154 = vmatpush2.msra.mxu0 0.0
    %2155 = vmatprep.subr.mxu0 0.0
    %2156 = vmatpush2.msra.mxu0 0.0
    %2157 = vmatprep.subr.mxu0 0.0
    %2158 = vmatpush2.msra.mxu0 0.0
    %2159 = vmatprep.subr.mxu0 0.0
    %2160 = vmatpush2.msra.mxu0 0.0
    %2161 = vmatprep.subr.mxu0 0.0
    %2162 = vmatpush2.msra.mxu0 0.0
    %2163 = vmatprep.subr.mxu0 0.0
    %2164 = vmatpush2.msra.mxu0 0.0
    %2165 = vmatprep.subr.mxu0 0.0
    %2166 = vmatpush2.msra.mxu0 0.0
    %2167 = vmatprep.subr.mxu0 0.0
    %2168 = vmatpush2.msra.mxu0 0.0
    %2169 = vmatprep.subr.mxu0 0.0
    %2170 = vmatpush2.msra.mxu0 0.0
    %2171 = vmatprep.mubr.f32.mxu0 0.0
    %2172 = vmatmul.mubr.f32.gmra.mxu0 %v2105
    %v2173 = vpop.f32.mrf.mxu0
    %v2174 = vadd.f32 %v144, %v2173
    %v2175 = vpop.f32.mrf.mxu0
    %2176 = vdwg.mxu0
    %2178 = vrot.lane.b32.xlu0 %v1822, 64
    %v2179 = vpop.permute.xlu0 %2178
    %v2181 = vadd.f32 %v2174, %v2179
    %v2182 = vxor.u32 %v2181, 2147483648
    %v2183 = vmul.f32 %v2182, 1.442695
    %v2184 = vpow.pop %v2183
    %v2185 = vadd.f32 %v2184, 1.0
    %v2186 = vrcp.pop %v2185
    %v2187 = vmul.f32 1.0, %v2186
    %v2188 = vmul.f32 %v2187, %v1824
    %2190 = vrot.lane.b32.xlu0 %v2188, 64
    %v2191 = vpop.permute.xlu0 %2190
    %v2193 = vadd.f32 %v2174, %v2191
    %v2194 = vtanh.pop %v2193
    %v2195 = vsub.f32 1.0, %v2187
    %2197 = vrot.lane.b32.xlu0 %v2194, 96
    %v2198 = vpop.permute.xlu0 %2197
    %v2200 = vmul.f32 %v2195, %v2198
    %v2201 = vmul.f32 %v2187, %v1708
    %v2202 = vadd.f32 %v2200, %v2201
    %v2203 = vsub.f32 %v2101, %v59
    %v2204 = vmul.f32 %v2203, %v2203
    %v2205 = vadd.f32 %v1711, %v2204
    %v2206 = vlog2.pop %v1928
    %v2207 = vmul.f32 %v2206, 0.6931472
    %v2208 = vmul.f32 %v2207, 2.0
    %v2209 = vlog2.pop %v1839
    %v2210 = vmul.f32 %v2209, 0.6931472
    %v2211 = vmul.f32 %v2210, 2.0
    %v2212 = vsub.f32 %v2208, %v2211
    %v2213 = vmul.f32 %v1839, %v1839
    %v2214 = vsub.f32 %v1822, %v1912
    %v2215 = vmul.f32 %v2214, %v2214
    %2217 = vrot.lane.b32.xlu0 %v2215, 32
    %v2218 = vpop.permute.xlu0 %2217
    %v2220 = vadd.f32 %v2213, %v2218
    %v2221 = vmul.f32 %v1928, %v1928
    %v2222 = vrcp.pop %v2221
    %v2223 = vmul.f32 %v2220, %v2222
    %v2224 = vadd.f32 %v2212, %v2223
    %v2225 = vsub.f32 %v2224, 1.0
    %v2226 = vadd.f32 %v1732, %v2225
    %v2227 = vlog2.pop %v2095
    %v2228 = vmul.f32 %v2227, 0.6931472
    %v2229 = vmul.f32 %v2228, 2.0
    %v2230 = vsub.f32 %v2229, %v1735
    %v2231 = vsub.f32 %v1585, %v2079
    %v2232 = vmul.f32 %v2231, %v2231
    %2234 = vrot.lane.b32.xlu0 %v2232, 16
    %v2235 = vpop.permute.xlu0 %2234
    %v2237 = vadd.f32 %v1744, %v2235
    %v2238 = vmul.f32 %v2095, %v2095
    %v2239 = vrcp.pop %v2238
    %v2240 = vmul.f32 %v2237, %v2239
    %v2241 = vadd.f32 %v2230, %v2240
    %v2242 = vsub.f32 %v2241, 1.0
    %v2243 = vadd.f32 %v1749, %v2242
    %2245 = vrot.lane.b32.xlu0 %v2202, 96
    %v2246 = vpop.permute.xlu0 %2245
    %v2247 = vsel %vm283, %v2246, 0
    %2249 = vmatprep.subr.mxu0 0.0
    %2250 = vmatpush1.msra.mxu0 0.0
    %2251 = vmatprep.subr.mxu0 0.0
    %2252 = vmatpush1.msra.mxu0 0.0
    %2253 = vmatprep.subr.mxu0 0.0
    %2254 = vmatpush1.msra.mxu0 0.0
    %2255 = vmatprep.subr.mxu0 0.0
    %2256 = vmatpush1.msra.mxu0 0.0
    %2257 = vmatprep.subr.mxu0 0.0
    %2258 = vmatpush1.msra.mxu0 0.0
    %2259 = vmatprep.subr.mxu0 0.0
    %2260 = vmatpush1.msra.mxu0 0.0
    %2261 = vmatprep.subr.mxu0 0.0
    %2262 = vmatpush1.msra.mxu0 0.0
    %2263 = vmatprep.subr.mxu0 0.0
    %2264 = vmatpush1.msra.mxu0 0.0
    %2265 = vmatprep.subr.mxu0 0.0
    %2266 = vmatpush1.msra.mxu0 0.0
    %2267 = vmatprep.subr.mxu0 0.0
    %2268 = vmatpush1.msra.mxu0 0.0
    %2269 = vmatprep.subr.mxu0 0.0
    %2270 = vmatpush1.msra.mxu0 0.0
    %2271 = vmatprep.subr.mxu0 0.0
    %2272 = vmatpush1.msra.mxu0 0.0
    %2273 = vmatprep.subr.mxu0 %v101
    %2274 = vmatpush1.msra.mxu0 %v100
    %2275 = vmatprep.subr.mxu0 %v99
    %2276 = vmatpush1.msra.mxu0 %v98
    %2277 = vmatprep.subr.mxu0 %v97
    %2278 = vmatpush1.msra.mxu0 %v96
    %2279 = vmatprep.subr.mxu0 %v95
    %2280 = vmatpush1.msra.mxu0 %v94
    %2281 = vmatprep.subr.mxu0 0.0
    %2282 = vmatpush2.msra.mxu0 0.0
    %2283 = vmatprep.subr.mxu0 0.0
    %2284 = vmatpush2.msra.mxu0 0.0
    %2285 = vmatprep.subr.mxu0 0.0
    %2286 = vmatpush2.msra.mxu0 0.0
    %2287 = vmatprep.subr.mxu0 0.0
    %2288 = vmatpush2.msra.mxu0 0.0
    %2289 = vmatprep.subr.mxu0 0.0
    %2290 = vmatpush2.msra.mxu0 0.0
    %2291 = vmatprep.subr.mxu0 0.0
    %2292 = vmatpush2.msra.mxu0 0.0
    %2293 = vmatprep.subr.mxu0 0.0
    %2294 = vmatpush2.msra.mxu0 0.0
    %2295 = vmatprep.subr.mxu0 0.0
    %2296 = vmatpush2.msra.mxu0 0.0
    %2297 = vmatprep.subr.mxu0 0.0
    %2298 = vmatpush2.msra.mxu0 0.0
    %2299 = vmatprep.subr.mxu0 0.0
    %2300 = vmatpush2.msra.mxu0 0.0
    %2301 = vmatprep.subr.mxu0 0.0
    %2302 = vmatpush2.msra.mxu0 0.0
    %2303 = vmatprep.subr.mxu0 0.0
    %2304 = vmatpush2.msra.mxu0 0.0
    %2305 = vmatprep.subr.mxu0 0.0
    %2306 = vmatpush2.msra.mxu0 0.0
    %2307 = vmatprep.subr.mxu0 0.0
    %2308 = vmatpush2.msra.mxu0 0.0
    %2309 = vmatprep.subr.mxu0 0.0
    %2310 = vmatpush2.msra.mxu0 0.0
    %2311 = vmatprep.subr.mxu0 0.0
    %2312 = vmatpush2.msra.mxu0 0.0
    %2313 = vmatprep.mubr.f32.mxu0 0.0
    %2314 = vmatmul.mubr.f32.gmra.mxu0 %v2247
    %v2315 = vpop.f32.mrf.mxu0
    %v2316 = vadd.f32 %v132, %v2315
    %v2317 = vpop.f32.mrf.mxu0
    %v2318 = vadd.f32 %v136, %v2317
    %2319 = vdwg.mxu0
    %vm2320 = vcmp.gt.f32.partialorder %v2316, 20.0
    %v2321 = vmin.f32 %v2316, 20.0
    %v2322 = vmul.f32 %v2321, 1.442695
    %v2323 = vpow.pop %v2322
    %v2324 = vadd.f32 %v2323, 1.0
    %v2325 = vlog2.pop %v2324
    %v2326 = vmul.f32 %v2325, 0.6931472
    %v2327 = vmul.f32 -0.5, %v2323
    %v2328 = vadd.f32 %v2327, 1.0
    %v2329 = vmul.f32 %v2328, %v2323
    %v2330 = vand.u32 2147483647, %v2323
    %vm2331 = vcmp.lt.f32.partialorder %v2330, 0.0004427343
    %v2332 = vsel %vm2331, %v2329, %v2326
    %v2333 = vsel %vm2320, %v2316, %v2332
    %v2335 = vadd.f32 %v265, %v2246
    %v2337 = vsel %vm283, %v2335, 0
    %2339 = vmatprep.subr.mxu0 0.0
    %2340 = vmatpush1.msra.mxu0 0.0
    %2341 = vmatprep.subr.mxu0 0.0
    %2342 = vmatpush1.msra.mxu0 0.0
    %2343 = vmatprep.subr.mxu0 0.0
    %2344 = vmatpush1.msra.mxu0 0.0
    %2345 = vmatprep.subr.mxu0 0.0
    %2346 = vmatpush1.msra.mxu0 0.0
    %2347 = vmatprep.subr.mxu0 0.0
    %2348 = vmatpush1.msra.mxu0 0.0
    %2349 = vmatprep.subr.mxu0 0.0
    %2350 = vmatpush1.msra.mxu0 0.0
    %2351 = vmatprep.subr.mxu0 0.0
    %2352 = vmatpush1.msra.mxu0 0.0
    %2353 = vmatprep.subr.mxu0 0.0
    %2354 = vmatpush1.msra.mxu0 0.0
    %2355 = vmatprep.subr.mxu0 0.0
    %2356 = vmatpush1.msra.mxu0 0.0
    %2357 = vmatprep.subr.mxu0 0.0
    %2358 = vmatpush1.msra.mxu0 0.0
    %2359 = vmatprep.subr.mxu0 0.0
    %2360 = vmatpush1.msra.mxu0 0.0
    %2361 = vmatprep.subr.mxu0 0.0
    %2362 = vmatpush1.msra.mxu0 0.0
    %2363 = vmatprep.subr.mxu0 0.0
    %2364 = vmatpush1.msra.mxu0 %v85
    %2365 = vmatprep.subr.mxu0 0.0
    %2366 = vmatpush1.msra.mxu0 %v84
    %2367 = vmatprep.subr.mxu0 0.0
    %2368 = vmatpush1.msra.mxu0 %v83
    %2369 = vmatprep.subr.mxu0 0.0
    %2370 = vmatpush1.msra.mxu0 %v82
    %2371 = vmatprep.subr.mxu0 0.0
    %2372 = vmatpush2.msra.mxu0 0.0
    %2373 = vmatprep.subr.mxu0 0.0
    %2374 = vmatpush2.msra.mxu0 0.0
    %2375 = vmatprep.subr.mxu0 0.0
    %2376 = vmatpush2.msra.mxu0 0.0
    %2377 = vmatprep.subr.mxu0 0.0
    %2378 = vmatpush2.msra.mxu0 0.0
    %2379 = vmatprep.subr.mxu0 0.0
    %2380 = vmatpush2.msra.mxu0 0.0
    %2381 = vmatprep.subr.mxu0 0.0
    %2382 = vmatpush2.msra.mxu0 0.0
    %2383 = vmatprep.subr.mxu0 0.0
    %2384 = vmatpush2.msra.mxu0 0.0
    %2385 = vmatprep.subr.mxu0 0.0
    %2386 = vmatpush2.msra.mxu0 0.0
    %2387 = vmatprep.subr.mxu0 0.0
    %2388 = vmatpush2.msra.mxu0 0.0
    %2389 = vmatprep.subr.mxu0 0.0
    %2390 = vmatpush2.msra.mxu0 0.0
    %2391 = vmatprep.subr.mxu0 0.0
    %2392 = vmatpush2.msra.mxu0 0.0
    %2393 = vmatprep.subr.mxu0 0.0
    %2394 = vmatpush2.msra.mxu0 0.0
    %2395 = vmatprep.subr.mxu0 0.0
    %2396 = vmatpush2.msra.mxu0 0.0
    %2397 = vmatprep.subr.mxu0 0.0
    %2398 = vmatpush2.msra.mxu0 0.0
    %2399 = vmatprep.subr.mxu0 0.0
    %2400 = vmatpush2.msra.mxu0 0.0
    %2401 = vmatprep.subr.mxu0 0.0
    %2402 = vmatpush2.msra.mxu0 0.0
    %2403 = vmatprep.mubr.f32.mxu0 0.0
    %2404 = vmatmul.mubr.f32.gmra.mxu0 %v2337
    %v2405 = vpop.f32.mrf.mxu0
    %v2406 = vadd.f32 %v111, %v2405
    %v2407 = vpop.f32.mrf.mxu0
    %2408 = vdwg.mxu0
    %vm2409 = vcmp.gt.f32.partialorder %v2406, 20.0
    %v2410 = vmin.f32 %v2406, 20.0
    %v2411 = vmul.f32 %v2410, 1.442695
    %v2412 = vpow.pop %v2411
    %v2413 = vadd.f32 %v2412, 1.0
    %v2414 = vlog2.pop %v2413
    %v2415 = vmul.f32 %v2414, 0.6931472
    %v2416 = vmul.f32 -0.5, %v2412
    %v2417 = vadd.f32 %v2416, 1.0
    %v2418 = vmul.f32 %v2417, %v2412
    %v2419 = vand.u32 2147483647, %v2412
    %vm2420 = vcmp.lt.f32.partialorder %v2419, 0.0004427343
    %v2421 = vsel %vm2420, %v2418, %v2415
    %v2422 = vsel %vm2409, %v2406, %v2421
    %2424 = vrot.lane.b32.xlu0 %v2422, 96
    %v2425 = vpop.permute.xlu0 %2424
    %v2427 = vmul.f32 %v68, %v2425
    %v2428 = vadd.f32 %v2427, %v2406
    %v2430 = vsel %vm283, %v2428, 0
    %2432 = vmatprep.subr.mxu0 0.0
    %2433 = vmatpush1.msra.mxu0 0.0
    %2434 = vmatprep.subr.mxu0 0.0
    %2435 = vmatpush1.msra.mxu0 0.0
    %2436 = vmatprep.subr.mxu0 0.0
    %2437 = vmatpush1.msra.mxu0 0.0
    %2438 = vmatprep.subr.mxu0 0.0
    %2439 = vmatpush1.msra.mxu0 0.0
    %2440 = vmatprep.subr.mxu0 0.0
    %2441 = vmatpush1.msra.mxu0 0.0
    %2442 = vmatprep.subr.mxu0 0.0
    %2443 = vmatpush1.msra.mxu0 0.0
    %2444 = vmatprep.subr.mxu0 0.0
    %2445 = vmatpush1.msra.mxu0 0.0
    %2446 = vmatprep.subr.mxu0 0.0
    %2447 = vmatpush1.msra.mxu0 0.0
    %2448 = vmatprep.subr.mxu0 0.0
    %2449 = vmatpush1.msra.mxu0 0.0
    %2450 = vmatprep.subr.mxu0 0.0
    %2451 = vmatpush1.msra.mxu0 0.0
    %2452 = vmatprep.subr.mxu0 0.0
    %2453 = vmatpush1.msra.mxu0 0.0
    %2454 = vmatprep.subr.mxu0 0.0
    %2455 = vmatpush1.msra.mxu0 0.0
    %2456 = vmatprep.subr.mxu0 0.0
    %2457 = vmatpush1.msra.mxu0 %v93
    %2458 = vmatprep.subr.mxu0 0.0
    %2459 = vmatpush1.msra.mxu0 %v92
    %2460 = vmatprep.subr.mxu0 0.0
    %2461 = vmatpush1.msra.mxu0 %v91
    %2462 = vmatprep.subr.mxu0 0.0
    %2463 = vmatpush1.msra.mxu0 %v90
    %2464 = vmatprep.subr.mxu0 0.0
    %2465 = vmatpush2.msra.mxu0 0.0
    %2466 = vmatprep.subr.mxu0 0.0
    %2467 = vmatpush2.msra.mxu0 0.0
    %2468 = vmatprep.subr.mxu0 0.0
    %2469 = vmatpush2.msra.mxu0 0.0
    %2470 = vmatprep.subr.mxu0 0.0
    %2471 = vmatpush2.msra.mxu0 0.0
    %2472 = vmatprep.subr.mxu0 0.0
    %2473 = vmatpush2.msra.mxu0 0.0
    %2474 = vmatprep.subr.mxu0 0.0
    %2475 = vmatpush2.msra.mxu0 0.0
    %2476 = vmatprep.subr.mxu0 0.0
    %2477 = vmatpush2.msra.mxu0 0.0
    %2478 = vmatprep.subr.mxu0 0.0
    %2479 = vmatpush2.msra.mxu0 0.0
    %2480 = vmatprep.subr.mxu0 0.0
    %2481 = vmatpush2.msra.mxu0 0.0
    %2482 = vmatprep.subr.mxu0 0.0
    %2483 = vmatpush2.msra.mxu0 0.0
    %2484 = vmatprep.subr.mxu0 0.0
    %2485 = vmatpush2.msra.mxu0 0.0
    %2486 = vmatprep.subr.mxu0 0.0
    %2487 = vmatpush2.msra.mxu0 0.0
    %2488 = vmatprep.subr.mxu0 0.0
    %2489 = vmatpush2.msra.mxu0 0.0
    %2490 = vmatprep.subr.mxu0 0.0
    %2491 = vmatpush2.msra.mxu0 0.0
    %2492 = vmatprep.subr.mxu0 0.0
    %2493 = vmatpush2.msra.mxu0 0.0
    %2494 = vmatprep.subr.mxu0 0.0
    %2495 = vmatpush2.msra.mxu0 0.0
    %2496 = vmatprep.mubr.f32.mxu0 0.0
    %2497 = vmatmul.mubr.f32.gmra.mxu0 %v2430
    %v2498 = vpop.f32.mrf.mxu0
    %v2499 = vadd.f32 %v125, %v2498
    %v2500 = vpop.f32.mrf.mxu0
    %2501 = vdwg.mxu0
    %v2502 = vadd.f32 %v2499, %v2246
    %v2504 = vsel %vm283, %v2502, 0
    %2506 = vmatprep.subr.mxu0 0.0
    %2507 = vmatpush1.msra.mxu0 0.0
    %2508 = vmatprep.subr.mxu0 0.0
    %2509 = vmatpush1.msra.mxu0 0.0
    %2510 = vmatprep.subr.mxu0 0.0
    %2511 = vmatpush1.msra.mxu0 0.0
    %2512 = vmatprep.subr.mxu0 0.0
    %2513 = vmatpush1.msra.mxu0 0.0
    %2514 = vmatprep.subr.mxu0 0.0
    %2515 = vmatpush1.msra.mxu0 0.0
    %2516 = vmatprep.subr.mxu0 0.0
    %2517 = vmatpush1.msra.mxu0 0.0
    %2518 = vmatprep.subr.mxu0 0.0
    %2519 = vmatpush1.msra.mxu0 0.0
    %2520 = vmatprep.subr.mxu0 0.0
    %2521 = vmatpush1.msra.mxu0 0.0
    %2522 = vmatprep.subr.mxu0 0.0
    %2523 = vmatpush1.msra.mxu0 0.0
    %2524 = vmatprep.subr.mxu0 0.0
    %2525 = vmatpush1.msra.mxu0 0.0
    %2526 = vmatprep.subr.mxu0 0.0
    %2527 = vmatpush1.msra.mxu0 0.0
    %2528 = vmatprep.subr.mxu0 0.0
    %2529 = vmatpush1.msra.mxu0 0.0
    %2530 = vmatprep.subr.mxu0 0.0
    %2531 = vmatpush1.msra.mxu0 %v89
    %2532 = vmatprep.subr.mxu0 0.0
    %2533 = vmatpush1.msra.mxu0 %v88
    %2534 = vmatprep.subr.mxu0 0.0
    %2535 = vmatpush1.msra.mxu0 %v87
    %2536 = vmatprep.subr.mxu0 0.0
    %2537 = vmatpush1.msra.mxu0 %v86
    %2538 = vmatprep.subr.mxu0 0.0
    %2539 = vmatpush2.msra.mxu0 0.0
    %2540 = vmatprep.subr.mxu0 0.0
    %2541 = vmatpush2.msra.mxu0 0.0
    %2542 = vmatprep.subr.mxu0 0.0
    %2543 = vmatpush2.msra.mxu0 0.0
    %2544 = vmatprep.subr.mxu0 0.0
    %2545 = vmatpush2.msra.mxu0 0.0
    %2546 = vmatprep.subr.mxu0 0.0
    %2547 = vmatpush2.msra.mxu0 0.0
    %2548 = vmatprep.subr.mxu0 0.0
    %2549 = vmatpush2.msra.mxu0 0.0
    %2550 = vmatprep.subr.mxu0 0.0
    %2551 = vmatpush2.msra.mxu0 0.0
    %2552 = vmatprep.subr.mxu0 0.0
    %2553 = vmatpush2.msra.mxu0 0.0
    %2554 = vmatprep.subr.mxu0 0.0
    %2555 = vmatpush2.msra.mxu0 0.0
    %2556 = vmatprep.subr.mxu0 0.0
    %2557 = vmatpush2.msra.mxu0 0.0
    %2558 = vmatprep.subr.mxu0 0.0
    %2559 = vmatpush2.msra.mxu0 0.0
    %2560 = vmatprep.subr.mxu0 0.0
    %2561 = vmatpush2.msra.mxu0 0.0
    %2562 = vmatprep.subr.mxu0 0.0
    %2563 = vmatpush2.msra.mxu0 0.0
    %2564 = vmatprep.subr.mxu0 0.0
    %2565 = vmatpush2.msra.mxu0 0.0
    %2566 = vmatprep.subr.mxu0 0.0
    %2567 = vmatpush2.msra.mxu0 0.0
    %2568 = vmatprep.subr.mxu0 0.0
    %2569 = vmatpush2.msra.mxu0 0.0
    %2570 = vmatprep.mubr.f32.mxu0 0.0
    %2571 = vmatmul.mubr.f32.gmra.mxu0 %v2504
    %v2572 = vpop.f32.mrf.mxu0
    %v2573 = vadd.f32 %v118, %v2572
    %v2574 = vpop.f32.mrf.mxu0
    %2575 = vdwg.mxu0
    %vm2576 = vcmp.gt.f32.partialorder %v2573, 20.0
    %v2577 = vmin.f32 %v2573, 20.0
    %v2578 = vmul.f32 %v2577, 1.442695
    %v2579 = vpow.pop %v2578
    %v2580 = vadd.f32 %v2579, 1.0
    %v2581 = vlog2.pop %v2580
    %v2582 = vmul.f32 %v2581, 0.6931472
    %v2583 = vmul.f32 -0.5, %v2579
    %v2584 = vadd.f32 %v2583, 1.0
    %v2585 = vmul.f32 %v2584, %v2579
    %v2586 = vand.u32 2147483647, %v2579
    %vm2587 = vcmp.lt.f32.partialorder %v2586, 0.0004427343
    %v2588 = vsel %vm2587, %v2585, %v2582
    %v2589 = vsel %vm2576, %v2573, %v2588
    %2591 = vrot.lane.b32.xlu0 %v2589, 112
    %v2592 = vpop.permute.xlu0 %2591
    %v2594 = vmul.f32 %v76, %v2592
    %v2595 = vadd.f32 %v2594, %v2573
    %2597 = vrot.lane.b32.xlu0 %v2499, 96
    %v2598 = vpop.permute.xlu0 %2597
    %v2599 = vsel %vm283, %v2598, 0
    %2601 = vmatprep.subr.mxu0 0.0
    %2602 = vmatpush1.msra.mxu0 0.0
    %2603 = vmatprep.subr.mxu0 0.0
    %2604 = vmatpush1.msra.mxu0 0.0
    %2605 = vmatprep.subr.mxu0 0.0
    %2606 = vmatpush1.msra.mxu0 0.0
    %2607 = vmatprep.subr.mxu0 0.0
    %2608 = vmatpush1.msra.mxu0 0.0
    %2609 = vmatprep.subr.mxu0 0.0
    %2610 = vmatpush1.msra.mxu0 0.0
    %2611 = vmatprep.subr.mxu0 0.0
    %2612 = vmatpush1.msra.mxu0 0.0
    %2613 = vmatprep.subr.mxu0 0.0
    %2614 = vmatpush1.msra.mxu0 0.0
    %2615 = vmatprep.subr.mxu0 0.0
    %2616 = vmatpush1.msra.mxu0 0.0
    %2617 = vmatprep.subr.mxu0 0.0
    %2618 = vmatpush1.msra.mxu0 0.0
    %2619 = vmatprep.subr.mxu0 0.0
    %2620 = vmatpush1.msra.mxu0 0.0
    %2621 = vmatprep.subr.mxu0 0.0
    %2622 = vmatpush1.msra.mxu0 0.0
    %2623 = vmatprep.subr.mxu0 0.0
    %2624 = vmatpush1.msra.mxu0 0.0
    %2625 = vmatprep.subr.mxu0 0.0
    %2626 = vmatpush1.msra.mxu0 %v105
    %2627 = vmatprep.subr.mxu0 0.0
    %2628 = vmatpush1.msra.mxu0 %v104
    %2629 = vmatprep.subr.mxu0 0.0
    %2630 = vmatpush1.msra.mxu0 %v103
    %2631 = vmatprep.subr.mxu0 0.0
    %2632 = vmatpush1.msra.mxu0 %v102
    %2633 = vmatprep.subr.mxu0 0.0
    %2634 = vmatpush2.msra.mxu0 0.0
    %2635 = vmatprep.subr.mxu0 0.0
    %2636 = vmatpush2.msra.mxu0 0.0
    %2637 = vmatprep.subr.mxu0 0.0
    %2638 = vmatpush2.msra.mxu0 0.0
    %2639 = vmatprep.subr.mxu0 0.0
    %2640 = vmatpush2.msra.mxu0 0.0
    %2641 = vmatprep.subr.mxu0 0.0
    %2642 = vmatpush2.msra.mxu0 0.0
    %2643 = vmatprep.subr.mxu0 0.0
    %2644 = vmatpush2.msra.mxu0 0.0
    %2645 = vmatprep.subr.mxu0 0.0
    %2646 = vmatpush2.msra.mxu0 0.0
    %2647 = vmatprep.subr.mxu0 0.0
    %2648 = vmatpush2.msra.mxu0 0.0
    %2649 = vmatprep.subr.mxu0 0.0
    %2650 = vmatpush2.msra.mxu0 0.0
    %2651 = vmatprep.subr.mxu0 0.0
    %2652 = vmatpush2.msra.mxu0 0.0
    %2653 = vmatprep.subr.mxu0 0.0
    %2654 = vmatpush2.msra.mxu0 0.0
    %2655 = vmatprep.subr.mxu0 0.0
    %2656 = vmatpush2.msra.mxu0 0.0
    %2657 = vmatprep.subr.mxu0 0.0
    %2658 = vmatpush2.msra.mxu0 0.0
    %2659 = vmatprep.subr.mxu0 0.0
    %2660 = vmatpush2.msra.mxu0 0.0
    %2661 = vmatprep.subr.mxu0 0.0
    %2662 = vmatpush2.msra.mxu0 0.0
    %2663 = vmatprep.subr.mxu0 0.0
    %2664 = vmatpush2.msra.mxu0 0.0
    %2665 = vmatprep.mubr.f32.mxu0 0.0
    %2666 = vmatmul.mubr.f32.gmra.mxu0 %v2599
    %v2667 = vpop.f32.mrf.mxu0
    %v2668 = vadd.f32 %v144, %v2667
    %v2669 = vpop.f32.mrf.mxu0
    %2670 = vdwg.mxu0
    %2672 = vrot.lane.b32.xlu0 %v2316, 64
    %v2673 = vpop.permute.xlu0 %2672
    %v2675 = vadd.f32 %v2668, %v2673
    %v2676 = vxor.u32 %v2675, 2147483648
    %v2677 = vmul.f32 %v2676, 1.442695
    %v2678 = vpow.pop %v2677
    %v2679 = vadd.f32 %v2678, 1.0
    %v2680 = vrcp.pop %v2679
    %v2681 = vmul.f32 1.0, %v2680
    %v2682 = vmul.f32 %v2681, %v2318
    %2684 = vrot.lane.b32.xlu0 %v2682, 64
    %v2685 = vpop.permute.xlu0 %2684
    %v2687 = vadd.f32 %v2668, %v2685
    %v2688 = vtanh.pop %v2687
    %v2689 = vsub.f32 1.0, %v2681
    %2691 = vrot.lane.b32.xlu0 %v2688, 96
    %v2692 = vpop.permute.xlu0 %2691
    %v2694 = vmul.f32 %v2689, %v2692
    %v2695 = vmul.f32 %v2681, %v2202
    %v2696 = vadd.f32 %v2694, %v2695
    %v2697 = vsub.f32 %v2595, %v60
    %v2698 = vmul.f32 %v2697, %v2697
    %v2699 = vadd.f32 %v2205, %v2698
    %v2700 = vlog2.pop %v2422
    %v2701 = vmul.f32 %v2700, 0.6931472
    %v2702 = vmul.f32 %v2701, 2.0
    %v2703 = vlog2.pop %v2333
    %v2704 = vmul.f32 %v2703, 0.6931472
    %v2705 = vmul.f32 %v2704, 2.0
    %v2706 = vsub.f32 %v2702, %v2705
    %v2707 = vmul.f32 %v2333, %v2333
    %v2708 = vsub.f32 %v2316, %v2406
    %v2709 = vmul.f32 %v2708, %v2708
    %2711 = vrot.lane.b32.xlu0 %v2709, 32
    %v2712 = vpop.permute.xlu0 %2711
    %v2714 = vadd.f32 %v2707, %v2712
    %v2715 = vmul.f32 %v2422, %v2422
    %v2716 = vrcp.pop %v2715
    %v2717 = vmul.f32 %v2714, %v2716
    %v2718 = vadd.f32 %v2706, %v2717
    %v2719 = vsub.f32 %v2718, 1.0
    %v2720 = vadd.f32 %v2226, %v2719
    %v2721 = vlog2.pop %v2589
    %v2722 = vmul.f32 %v2721, 0.6931472
    %v2723 = vmul.f32 %v2722, 2.0
    %v2724 = vsub.f32 %v2723, %v2229
    %v2725 = vsub.f32 %v2079, %v2573
    %v2726 = vmul.f32 %v2725, %v2725
    %2728 = vrot.lane.b32.xlu0 %v2726, 16
    %v2729 = vpop.permute.xlu0 %2728
    %v2731 = vadd.f32 %v2238, %v2729
    %v2732 = vmul.f32 %v2589, %v2589
    %v2733 = vrcp.pop %v2732
    %v2734 = vmul.f32 %v2731, %v2733
    %v2735 = vadd.f32 %v2724, %v2734
    %v2736 = vsub.f32 %v2735, 1.0
    %v2737 = vadd.f32 %v2243, %v2736
    %2739 = vrot.lane.b32.xlu0 %v2696, 96
    %v2740 = vpop.permute.xlu0 %2739
    %v2741 = vsel %vm283, %v2740, 0
    %2743 = vmatprep.subr.mxu0 0.0
    %2744 = vmatpush1.msra.mxu0 0.0
    %2745 = vmatprep.subr.mxu0 0.0
    %2746 = vmatpush1.msra.mxu0 0.0
    %2747 = vmatprep.subr.mxu0 0.0
    %2748 = vmatpush1.msra.mxu0 0.0
    %2749 = vmatprep.subr.mxu0 0.0
    %2750 = vmatpush1.msra.mxu0 0.0
    %2751 = vmatprep.subr.mxu0 0.0
    %2752 = vmatpush1.msra.mxu0 0.0
    %2753 = vmatprep.subr.mxu0 0.0
    %2754 = vmatpush1.msra.mxu0 0.0
    %2755 = vmatprep.subr.mxu0 0.0
    %2756 = vmatpush1.msra.mxu0 0.0
    %2757 = vmatprep.subr.mxu0 0.0
    %2758 = vmatpush1.msra.mxu0 0.0
    %2759 = vmatprep.subr.mxu0 0.0
    %2760 = vmatpush1.msra.mxu0 0.0
    %2761 = vmatprep.subr.mxu0 0.0
    %2762 = vmatpush1.msra.mxu0 0.0
    %2763 = vmatprep.subr.mxu0 0.0
    %2764 = vmatpush1.msra.mxu0 0.0
    %2765 = vmatprep.subr.mxu0 0.0
    %2766 = vmatpush1.msra.mxu0 0.0
    %2767 = vmatprep.subr.mxu0 %v101
    %2768 = vmatpush1.msra.mxu0 %v100
    %2769 = vmatprep.subr.mxu0 %v99
    %2770 = vmatpush1.msra.mxu0 %v98
    %2771 = vmatprep.subr.mxu0 %v97
    %2772 = vmatpush1.msra.mxu0 %v96
    %2773 = vmatprep.subr.mxu0 %v95
    %2774 = vmatpush1.msra.mxu0 %v94
    %2775 = vmatprep.subr.mxu0 0.0
    %2776 = vmatpush2.msra.mxu0 0.0
    %2777 = vmatprep.subr.mxu0 0.0
    %2778 = vmatpush2.msra.mxu0 0.0
    %2779 = vmatprep.subr.mxu0 0.0
    %2780 = vmatpush2.msra.mxu0 0.0
    %2781 = vmatprep.subr.mxu0 0.0
    %2782 = vmatpush2.msra.mxu0 0.0
    %2783 = vmatprep.subr.mxu0 0.0
    %2784 = vmatpush2.msra.mxu0 0.0
    %2785 = vmatprep.subr.mxu0 0.0
    %2786 = vmatpush2.msra.mxu0 0.0
    %2787 = vmatprep.subr.mxu0 0.0
    %2788 = vmatpush2.msra.mxu0 0.0
    %2789 = vmatprep.subr.mxu0 0.0
    %2790 = vmatpush2.msra.mxu0 0.0
    %2791 = vmatprep.subr.mxu0 0.0
    %2792 = vmatpush2.msra.mxu0 0.0
    %2793 = vmatprep.subr.mxu0 0.0
    %2794 = vmatpush2.msra.mxu0 0.0
    %2795 = vmatprep.subr.mxu0 0.0
    %2796 = vmatpush2.msra.mxu0 0.0
    %2797 = vmatprep.subr.mxu0 0.0
    %2798 = vmatpush2.msra.mxu0 0.0
    %2799 = vmatprep.subr.mxu0 0.0
    %2800 = vmatpush2.msra.mxu0 0.0
    %2801 = vmatprep.subr.mxu0 0.0
    %2802 = vmatpush2.msra.mxu0 0.0
    %2803 = vmatprep.subr.mxu0 0.0
    %2804 = vmatpush2.msra.mxu0 0.0
    %2805 = vmatprep.subr.mxu0 0.0
    %2806 = vmatpush2.msra.mxu0 0.0
    %2807 = vmatprep.mubr.f32.mxu0 0.0
    %2808 = vmatmul.mubr.f32.gmra.mxu0 %v2741
    %v2809 = vpop.f32.mrf.mxu0
    %v2810 = vadd.f32 %v132, %v2809
    %v2811 = vpop.f32.mrf.mxu0
    %v2812 = vadd.f32 %v136, %v2811
    %2813 = vdwg.mxu0
    %vm2814 = vcmp.gt.f32.partialorder %v2810, 20.0
    %v2815 = vmin.f32 %v2810, 20.0
    %v2816 = vmul.f32 %v2815, 1.442695
    %v2817 = vpow.pop %v2816
    %v2818 = vadd.f32 %v2817, 1.0
    %v2819 = vlog2.pop %v2818
    %v2820 = vmul.f32 %v2819, 0.6931472
    %v2821 = vmul.f32 -0.5, %v2817
    %v2822 = vadd.f32 %v2821, 1.0
    %v2823 = vmul.f32 %v2822, %v2817
    %v2824 = vand.u32 2147483647, %v2817
    %vm2825 = vcmp.lt.f32.partialorder %v2824, 0.0004427343
    %v2826 = vsel %vm2825, %v2823, %v2820
    %v2827 = vsel %vm2814, %v2810, %v2826
    %v2829 = vadd.f32 %v270, %v2740
    %v2831 = vsel %vm283, %v2829, 0
    %2833 = vmatprep.subr.mxu0 0.0
    %2834 = vmatpush1.msra.mxu0 0.0
    %2835 = vmatprep.subr.mxu0 0.0
    %2836 = vmatpush1.msra.mxu0 0.0
    %2837 = vmatprep.subr.mxu0 0.0
    %2838 = vmatpush1.msra.mxu0 0.0
    %2839 = vmatprep.subr.mxu0 0.0
    %2840 = vmatpush1.msra.mxu0 0.0
    %2841 = vmatprep.subr.mxu0 0.0
    %2842 = vmatpush1.msra.mxu0 0.0
    %2843 = vmatprep.subr.mxu0 0.0
    %2844 = vmatpush1.msra.mxu0 0.0
    %2845 = vmatprep.subr.mxu0 0.0
    %2846 = vmatpush1.msra.mxu0 0.0
    %2847 = vmatprep.subr.mxu0 0.0
    %2848 = vmatpush1.msra.mxu0 0.0
    %2849 = vmatprep.subr.mxu0 0.0
    %2850 = vmatpush1.msra.mxu0 0.0
    %2851 = vmatprep.subr.mxu0 0.0
    %2852 = vmatpush1.msra.mxu0 0.0
    %2853 = vmatprep.subr.mxu0 0.0
    %2854 = vmatpush1.msra.mxu0 0.0
    %2855 = vmatprep.subr.mxu0 0.0
    %2856 = vmatpush1.msra.mxu0 0.0
    %2857 = vmatprep.subr.mxu0 0.0
    %2858 = vmatpush1.msra.mxu0 %v85
    %2859 = vmatprep.subr.mxu0 0.0
    %2860 = vmatpush1.msra.mxu0 %v84
    %2861 = vmatprep.subr.mxu0 0.0
    %2862 = vmatpush1.msra.mxu0 %v83
    %2863 = vmatprep.subr.mxu0 0.0
    %2864 = vmatpush1.msra.mxu0 %v82
    %2865 = vmatprep.subr.mxu0 0.0
    %2866 = vmatpush2.msra.mxu0 0.0
    %2867 = vmatprep.subr.mxu0 0.0
    %2868 = vmatpush2.msra.mxu0 0.0
    %2869 = vmatprep.subr.mxu0 0.0
    %2870 = vmatpush2.msra.mxu0 0.0
    %2871 = vmatprep.subr.mxu0 0.0
    %2872 = vmatpush2.msra.mxu0 0.0
    %2873 = vmatprep.subr.mxu0 0.0
    %2874 = vmatpush2.msra.mxu0 0.0
    %2875 = vmatprep.subr.mxu0 0.0
    %2876 = vmatpush2.msra.mxu0 0.0
    %2877 = vmatprep.subr.mxu0 0.0
    %2878 = vmatpush2.msra.mxu0 0.0
    %2879 = vmatprep.subr.mxu0 0.0
    %2880 = vmatpush2.msra.mxu0 0.0
    %2881 = vmatprep.subr.mxu0 0.0
    %2882 = vmatpush2.msra.mxu0 0.0
    %2883 = vmatprep.subr.mxu0 0.0
    %2884 = vmatpush2.msra.mxu0 0.0
    %2885 = vmatprep.subr.mxu0 0.0
    %2886 = vmatpush2.msra.mxu0 0.0
    %2887 = vmatprep.subr.mxu0 0.0
    %2888 = vmatpush2.msra.mxu0 0.0
    %2889 = vmatprep.subr.mxu0 0.0
    %2890 = vmatpush2.msra.mxu0 0.0
    %2891 = vmatprep.subr.mxu0 0.0
    %2892 = vmatpush2.msra.mxu0 0.0
    %2893 = vmatprep.subr.mxu0 0.0
    %2894 = vmatpush2.msra.mxu0 0.0
    %2895 = vmatprep.subr.mxu0 0.0
    %2896 = vmatpush2.msra.mxu0 0.0
    %2897 = vmatprep.mubr.f32.mxu0 0.0
    %2898 = vmatmul.mubr.f32.gmra.mxu0 %v2831
    %v2899 = vpop.f32.mrf.mxu0
    %v2900 = vadd.f32 %v111, %v2899
    %v2901 = vpop.f32.mrf.mxu0
    %2902 = vdwg.mxu0
    %vm2903 = vcmp.gt.f32.partialorder %v2900, 20.0
    %v2904 = vmin.f32 %v2900, 20.0
    %v2905 = vmul.f32 %v2904, 1.442695
    %v2906 = vpow.pop %v2905
    %v2907 = vadd.f32 %v2906, 1.0
    %v2908 = vlog2.pop %v2907
    %v2909 = vmul.f32 %v2908, 0.6931472
    %v2910 = vmul.f32 -0.5, %v2906
    %v2911 = vadd.f32 %v2910, 1.0
    %v2912 = vmul.f32 %v2911, %v2906
    %v2913 = vand.u32 2147483647, %v2906
    %vm2914 = vcmp.lt.f32.partialorder %v2913, 0.0004427343
    %v2915 = vsel %vm2914, %v2912, %v2909
    %v2916 = vsel %vm2903, %v2900, %v2915
    %2918 = vrot.lane.b32.xlu0 %v2916, 96
    %v2919 = vpop.permute.xlu0 %2918
    %v2921 = vmul.f32 %v69, %v2919
    %v2922 = vadd.f32 %v2921, %v2900
    %v2924 = vsel %vm283, %v2922, 0
    %2926 = vmatprep.subr.mxu0 0.0
    %2927 = vmatpush1.msra.mxu0 0.0
    %2928 = vmatprep.subr.mxu0 0.0
    %2929 = vmatpush1.msra.mxu0 0.0
    %2930 = vmatprep.subr.mxu0 0.0
    %2931 = vmatpush1.msra.mxu0 0.0
    %2932 = vmatprep.subr.mxu0 0.0
    %2933 = vmatpush1.msra.mxu0 0.0
    %2934 = vmatprep.subr.mxu0 0.0
    %2935 = vmatpush1.msra.mxu0 0.0
    %2936 = vmatprep.subr.mxu0 0.0
    %2937 = vmatpush1.msra.mxu0 0.0
    %2938 = vmatprep.subr.mxu0 0.0
    %2939 = vmatpush1.msra.mxu0 0.0
    %2940 = vmatprep.subr.mxu0 0.0
    %2941 = vmatpush1.msra.mxu0 0.0
    %2942 = vmatprep.subr.mxu0 0.0
    %2943 = vmatpush1.msra.mxu0 0.0
    %2944 = vmatprep.subr.mxu0 0.0
    %2945 = vmatpush1.msra.mxu0 0.0
    %2946 = vmatprep.subr.mxu0 0.0
    %2947 = vmatpush1.msra.mxu0 0.0
    %2948 = vmatprep.subr.mxu0 0.0
    %2949 = vmatpush1.msra.mxu0 0.0
    %2950 = vmatprep.subr.mxu0 0.0
    %2951 = vmatpush1.msra.mxu0 %v93
    %2952 = vmatprep.subr.mxu0 0.0
    %2953 = vmatpush1.msra.mxu0 %v92
    %2954 = vmatprep.subr.mxu0 0.0
    %2955 = vmatpush1.msra.mxu0 %v91
    %2956 = vmatprep.subr.mxu0 0.0
    %2957 = vmatpush1.msra.mxu0 %v90
    %2958 = vmatprep.subr.mxu0 0.0
    %2959 = vmatpush2.msra.mxu0 0.0
    %2960 = vmatprep.subr.mxu0 0.0
    %2961 = vmatpush2.msra.mxu0 0.0
    %2962 = vmatprep.subr.mxu0 0.0
    %2963 = vmatpush2.msra.mxu0 0.0
    %2964 = vmatprep.subr.mxu0 0.0
    %2965 = vmatpush2.msra.mxu0 0.0
    %2966 = vmatprep.subr.mxu0 0.0
    %2967 = vmatpush2.msra.mxu0 0.0
    %2968 = vmatprep.subr.mxu0 0.0
    %2969 = vmatpush2.msra.mxu0 0.0
    %2970 = vmatprep.subr.mxu0 0.0
    %2971 = vmatpush2.msra.mxu0 0.0
    %2972 = vmatprep.subr.mxu0 0.0
    %2973 = vmatpush2.msra.mxu0 0.0
    %2974 = vmatprep.subr.mxu0 0.0
    %2975 = vmatpush2.msra.mxu0 0.0
    %2976 = vmatprep.subr.mxu0 0.0
    %2977 = vmatpush2.msra.mxu0 0.0
    %2978 = vmatprep.subr.mxu0 0.0
    %2979 = vmatpush2.msra.mxu0 0.0
    %2980 = vmatprep.subr.mxu0 0.0
    %2981 = vmatpush2.msra.mxu0 0.0
    %2982 = vmatprep.subr.mxu0 0.0
    %2983 = vmatpush2.msra.mxu0 0.0
    %2984 = vmatprep.subr.mxu0 0.0
    %2985 = vmatpush2.msra.mxu0 0.0
    %2986 = vmatprep.subr.mxu0 0.0
    %2987 = vmatpush2.msra.mxu0 0.0
    %2988 = vmatprep.subr.mxu0 0.0
    %2989 = vmatpush2.msra.mxu0 0.0
    %2990 = vmatprep.mubr.f32.mxu0 0.0
    %2991 = vmatmul.mubr.f32.gmra.mxu0 %v2924
    %v2992 = vpop.f32.mrf.mxu0
    %v2993 = vadd.f32 %v125, %v2992
    %v2994 = vpop.f32.mrf.mxu0
    %2995 = vdwg.mxu0
    %v2996 = vadd.f32 %v2993, %v2740
    %v2998 = vsel %vm283, %v2996, 0
    %3000 = vmatprep.subr.mxu0 0.0
    %3001 = vmatpush1.msra.mxu0 0.0
    %3002 = vmatprep.subr.mxu0 0.0
    %3003 = vmatpush1.msra.mxu0 0.0
    %3004 = vmatprep.subr.mxu0 0.0
    %3005 = vmatpush1.msra.mxu0 0.0
    %3006 = vmatprep.subr.mxu0 0.0
    %3007 = vmatpush1.msra.mxu0 0.0
    %3008 = vmatprep.subr.mxu0 0.0
    %3009 = vmatpush1.msra.mxu0 0.0
    %3010 = vmatprep.subr.mxu0 0.0
    %3011 = vmatpush1.msra.mxu0 0.0
    %3012 = vmatprep.subr.mxu0 0.0
    %3013 = vmatpush1.msra.mxu0 0.0
    %3014 = vmatprep.subr.mxu0 0.0
    %3015 = vmatpush1.msra.mxu0 0.0
    %3016 = vmatprep.subr.mxu0 0.0
    %3017 = vmatpush1.msra.mxu0 0.0
    %3018 = vmatprep.subr.mxu0 0.0
    %3019 = vmatpush1.msra.mxu0 0.0
    %3020 = vmatprep.subr.mxu0 0.0
    %3021 = vmatpush1.msra.mxu0 0.0
    %3022 = vmatprep.subr.mxu0 0.0
    %3023 = vmatpush1.msra.mxu0 0.0
    %3024 = vmatprep.subr.mxu0 0.0
    %3025 = vmatpush1.msra.mxu0 %v89
    %3026 = vmatprep.subr.mxu0 0.0
    %3027 = vmatpush1.msra.mxu0 %v88
    %3028 = vmatprep.subr.mxu0 0.0
    %3029 = vmatpush1.msra.mxu0 %v87
    %3030 = vmatprep.subr.mxu0 0.0
    %3031 = vmatpush1.msra.mxu0 %v86
    %3032 = vmatprep.subr.mxu0 0.0
    %3033 = vmatpush2.msra.mxu0 0.0
    %3034 = vmatprep.subr.mxu0 0.0
    %3035 = vmatpush2.msra.mxu0 0.0
    %3036 = vmatprep.subr.mxu0 0.0
    %3037 = vmatpush2.msra.mxu0 0.0
    %3038 = vmatprep.subr.mxu0 0.0
    %3039 = vmatpush2.msra.mxu0 0.0
    %3040 = vmatprep.subr.mxu0 0.0
    %3041 = vmatpush2.msra.mxu0 0.0
    %3042 = vmatprep.subr.mxu0 0.0
    %3043 = vmatpush2.msra.mxu0 0.0
    %3044 = vmatprep.subr.mxu0 0.0
    %3045 = vmatpush2.msra.mxu0 0.0
    %3046 = vmatprep.subr.mxu0 0.0
    %3047 = vmatpush2.msra.mxu0 0.0
    %3048 = vmatprep.subr.mxu0 0.0
    %3049 = vmatpush2.msra.mxu0 0.0
    %3050 = vmatprep.subr.mxu0 0.0
    %3051 = vmatpush2.msra.mxu0 0.0
    %3052 = vmatprep.subr.mxu0 0.0
    %3053 = vmatpush2.msra.mxu0 0.0
    %3054 = vmatprep.subr.mxu0 0.0
    %3055 = vmatpush2.msra.mxu0 0.0
    %3056 = vmatprep.subr.mxu0 0.0
    %3057 = vmatpush2.msra.mxu0 0.0
    %3058 = vmatprep.subr.mxu0 0.0
    %3059 = vmatpush2.msra.mxu0 0.0
    %3060 = vmatprep.subr.mxu0 0.0
    %3061 = vmatpush2.msra.mxu0 0.0
    %3062 = vmatprep.subr.mxu0 0.0
    %3063 = vmatpush2.msra.mxu0 0.0
    %3064 = vmatprep.mubr.f32.mxu0 0.0
    %3065 = vmatmul.mubr.f32.gmra.mxu0 %v2998
    %v3066 = vpop.f32.mrf.mxu0
    %v3067 = vadd.f32 %v118, %v3066
    %v3068 = vpop.f32.mrf.mxu0
    %3069 = vdwg.mxu0
    %vm3070 = vcmp.gt.f32.partialorder %v3067, 20.0
    %v3071 = vmin.f32 %v3067, 20.0
    %v3072 = vmul.f32 %v3071, 1.442695
    %v3073 = vpow.pop %v3072
    %v3074 = vadd.f32 %v3073, 1.0
    %v3075 = vlog2.pop %v3074
    %v3076 = vmul.f32 %v3075, 0.6931472
    %v3077 = vmul.f32 -0.5, %v3073
    %v3078 = vadd.f32 %v3077, 1.0
    %v3079 = vmul.f32 %v3078, %v3073
    %v3080 = vand.u32 2147483647, %v3073
    %vm3081 = vcmp.lt.f32.partialorder %v3080, 0.0004427343
    %v3082 = vsel %vm3081, %v3079, %v3076
    %v3083 = vsel %vm3070, %v3067, %v3082
    %3085 = vrot.lane.b32.xlu0 %v3083, 112
    %v3086 = vpop.permute.xlu0 %3085
    %v3088 = vmul.f32 %v77, %v3086
    %v3089 = vadd.f32 %v3088, %v3067
    %3091 = vrot.lane.b32.xlu0 %v2993, 96
    %v3092 = vpop.permute.xlu0 %3091
    %v3093 = vsel %vm283, %v3092, 0
    %3095 = vmatprep.subr.mxu0 0.0
    %3096 = vmatpush1.msra.mxu0 0.0
    %3097 = vmatprep.subr.mxu0 0.0
    %3098 = vmatpush1.msra.mxu0 0.0
    %3099 = vmatprep.subr.mxu0 0.0
    %3100 = vmatpush1.msra.mxu0 0.0
    %3101 = vmatprep.subr.mxu0 0.0
    %3102 = vmatpush1.msra.mxu0 0.0
    %3103 = vmatprep.subr.mxu0 0.0
    %3104 = vmatpush1.msra.mxu0 0.0
    %3105 = vmatprep.subr.mxu0 0.0
    %3106 = vmatpush1.msra.mxu0 0.0
    %3107 = vmatprep.subr.mxu0 0.0
    %3108 = vmatpush1.msra.mxu0 0.0
    %3109 = vmatprep.subr.mxu0 0.0
    %3110 = vmatpush1.msra.mxu0 0.0
    %3111 = vmatprep.subr.mxu0 0.0
    %3112 = vmatpush1.msra.mxu0 0.0
    %3113 = vmatprep.subr.mxu0 0.0
    %3114 = vmatpush1.msra.mxu0 0.0
    %3115 = vmatprep.subr.mxu0 0.0
    %3116 = vmatpush1.msra.mxu0 0.0
    %3117 = vmatprep.subr.mxu0 0.0
    %3118 = vmatpush1.msra.mxu0 0.0
    %3119 = vmatprep.subr.mxu0 0.0
    %3120 = vmatpush1.msra.mxu0 %v105
    %3121 = vmatprep.subr.mxu0 0.0
    %3122 = vmatpush1.msra.mxu0 %v104
    %3123 = vmatprep.subr.mxu0 0.0
    %3124 = vmatpush1.msra.mxu0 %v103
    %3125 = vmatprep.subr.mxu0 0.0
    %3126 = vmatpush1.msra.mxu0 %v102
    %3127 = vmatprep.subr.mxu0 0.0
    %3128 = vmatpush2.msra.mxu0 0.0
    %3129 = vmatprep.subr.mxu0 0.0
    %3130 = vmatpush2.msra.mxu0 0.0
    %3131 = vmatprep.subr.mxu0 0.0
    %3132 = vmatpush2.msra.mxu0 0.0
    %3133 = vmatprep.subr.mxu0 0.0
    %3134 = vmatpush2.msra.mxu0 0.0
    %3135 = vmatprep.subr.mxu0 0.0
    %3136 = vmatpush2.msra.mxu0 0.0
    %3137 = vmatprep.subr.mxu0 0.0
    %3138 = vmatpush2.msra.mxu0 0.0
    %3139 = vmatprep.subr.mxu0 0.0
    %3140 = vmatpush2.msra.mxu0 0.0
    %3141 = vmatprep.subr.mxu0 0.0
    %3142 = vmatpush2.msra.mxu0 0.0
    %3143 = vmatprep.subr.mxu0 0.0
    %3144 = vmatpush2.msra.mxu0 0.0
    %3145 = vmatprep.subr.mxu0 0.0
    %3146 = vmatpush2.msra.mxu0 0.0
    %3147 = vmatprep.subr.mxu0 0.0
    %3148 = vmatpush2.msra.mxu0 0.0
    %3149 = vmatprep.subr.mxu0 0.0
    %3150 = vmatpush2.msra.mxu0 0.0
    %3151 = vmatprep.subr.mxu0 0.0
    %3152 = vmatpush2.msra.mxu0 0.0
    %3153 = vmatprep.subr.mxu0 0.0
    %3154 = vmatpush2.msra.mxu0 0.0
    %3155 = vmatprep.subr.mxu0 0.0
    %3156 = vmatpush2.msra.mxu0 0.0
    %3157 = vmatprep.subr.mxu0 0.0
    %3158 = vmatpush2.msra.mxu0 0.0
    %3159 = vmatprep.mubr.f32.mxu0 0.0
    %3160 = vmatmul.mubr.f32.gmra.mxu0 %v3093
    %v3161 = vpop.f32.mrf.mxu0
    %v3162 = vadd.f32 %v144, %v3161
    %v3163 = vpop.f32.mrf.mxu0
    %3164 = vdwg.mxu0
    %3166 = vrot.lane.b32.xlu0 %v2810, 64
    %v3167 = vpop.permute.xlu0 %3166
    %v3169 = vadd.f32 %v3162, %v3167
    %v3170 = vxor.u32 %v3169, 2147483648
    %v3171 = vmul.f32 %v3170, 1.442695
    %v3172 = vpow.pop %v3171
    %v3173 = vadd.f32 %v3172, 1.0
    %v3174 = vrcp.pop %v3173
    %v3175 = vmul.f32 1.0, %v3174
    %v3176 = vmul.f32 %v3175, %v2812
    %3178 = vrot.lane.b32.xlu0 %v3176, 64
    %v3179 = vpop.permute.xlu0 %3178
    %v3181 = vadd.f32 %v3162, %v3179
    %v3182 = vtanh.pop %v3181
    %v3183 = vsub.f32 1.0, %v3175
    %3185 = vrot.lane.b32.xlu0 %v3182, 96
    %v3186 = vpop.permute.xlu0 %3185
    %v3188 = vmul.f32 %v3183, %v3186
    %v3189 = vmul.f32 %v3175, %v2696
    %v3190 = vadd.f32 %v3188, %v3189
    %v3191 = vsub.f32 %v3089, %v61
    %v3192 = vmul.f32 %v3191, %v3191
    %v3193 = vadd.f32 %v2699, %v3192
    %v3194 = vlog2.pop %v2916
    %v3195 = vmul.f32 %v3194, 0.6931472
    %v3196 = vmul.f32 %v3195, 2.0
    %v3197 = vlog2.pop %v2827
    %v3198 = vmul.f32 %v3197, 0.6931472
    %v3199 = vmul.f32 %v3198, 2.0
    %v3200 = vsub.f32 %v3196, %v3199
    %v3201 = vmul.f32 %v2827, %v2827
    %v3202 = vsub.f32 %v2810, %v2900
    %v3203 = vmul.f32 %v3202, %v3202
    %3205 = vrot.lane.b32.xlu0 %v3203, 32
    %v3206 = vpop.permute.xlu0 %3205
    %v3208 = vadd.f32 %v3201, %v3206
    %v3209 = vmul.f32 %v2916, %v2916
    %v3210 = vrcp.pop %v3209
    %v3211 = vmul.f32 %v3208, %v3210
    %v3212 = vadd.f32 %v3200, %v3211
    %v3213 = vsub.f32 %v3212, 1.0
    %v3214 = vadd.f32 %v2720, %v3213
    %v3215 = vlog2.pop %v3083
    %v3216 = vmul.f32 %v3215, 0.6931472
    %v3217 = vmul.f32 %v3216, 2.0
    %v3218 = vsub.f32 %v3217, %v2723
    %v3219 = vsub.f32 %v2573, %v3067
    %v3220 = vmul.f32 %v3219, %v3219
    %3222 = vrot.lane.b32.xlu0 %v3220, 16
    %v3223 = vpop.permute.xlu0 %3222
    %v3225 = vadd.f32 %v2732, %v3223
    %v3226 = vmul.f32 %v3083, %v3083
    %v3227 = vrcp.pop %v3226
    %v3228 = vmul.f32 %v3225, %v3227
    %v3229 = vadd.f32 %v3218, %v3228
    %v3230 = vsub.f32 %v3229, 1.0
    %v3231 = vadd.f32 %v2737, %v3230
    %3233 = vrot.lane.b32.xlu0 %v3190, 96
    %v3234 = vpop.permute.xlu0 %3233
    %v3235 = vsel %vm283, %v3234, 0
    %3237 = vmatprep.subr.mxu0 0.0
    %3238 = vmatpush1.msra.mxu0 0.0
    %3239 = vmatprep.subr.mxu0 0.0
    %3240 = vmatpush1.msra.mxu0 0.0
    %3241 = vmatprep.subr.mxu0 0.0
    %3242 = vmatpush1.msra.mxu0 0.0
    %3243 = vmatprep.subr.mxu0 0.0
    %3244 = vmatpush1.msra.mxu0 0.0
    %3245 = vmatprep.subr.mxu0 0.0
    %3246 = vmatpush1.msra.mxu0 0.0
    %3247 = vmatprep.subr.mxu0 0.0
    %3248 = vmatpush1.msra.mxu0 0.0
    %3249 = vmatprep.subr.mxu0 0.0
    %3250 = vmatpush1.msra.mxu0 0.0
    %3251 = vmatprep.subr.mxu0 0.0
    %3252 = vmatpush1.msra.mxu0 0.0
    %3253 = vmatprep.subr.mxu0 0.0
    %3254 = vmatpush1.msra.mxu0 0.0
    %3255 = vmatprep.subr.mxu0 0.0
    %3256 = vmatpush1.msra.mxu0 0.0
    %3257 = vmatprep.subr.mxu0 0.0
    %3258 = vmatpush1.msra.mxu0 0.0
    %3259 = vmatprep.subr.mxu0 0.0
    %3260 = vmatpush1.msra.mxu0 0.0
    %3261 = vmatprep.subr.mxu0 %v101
    %3262 = vmatpush1.msra.mxu0 %v100
    %3263 = vmatprep.subr.mxu0 %v99
    %3264 = vmatpush1.msra.mxu0 %v98
    %3265 = vmatprep.subr.mxu0 %v97
    %3266 = vmatpush1.msra.mxu0 %v96
    %3267 = vmatprep.subr.mxu0 %v95
    %3268 = vmatpush1.msra.mxu0 %v94
    %3269 = vmatprep.subr.mxu0 0.0
    %3270 = vmatpush2.msra.mxu0 0.0
    %3271 = vmatprep.subr.mxu0 0.0
    %3272 = vmatpush2.msra.mxu0 0.0
    %3273 = vmatprep.subr.mxu0 0.0
    %3274 = vmatpush2.msra.mxu0 0.0
    %3275 = vmatprep.subr.mxu0 0.0
    %3276 = vmatpush2.msra.mxu0 0.0
    %3277 = vmatprep.subr.mxu0 0.0
    %3278 = vmatpush2.msra.mxu0 0.0
    %3279 = vmatprep.subr.mxu0 0.0
    %3280 = vmatpush2.msra.mxu0 0.0
    %3281 = vmatprep.subr.mxu0 0.0
    %3282 = vmatpush2.msra.mxu0 0.0
    %3283 = vmatprep.subr.mxu0 0.0
    %3284 = vmatpush2.msra.mxu0 0.0
    %3285 = vmatprep.subr.mxu0 0.0
    %3286 = vmatpush2.msra.mxu0 0.0
    %3287 = vmatprep.subr.mxu0 0.0
    %3288 = vmatpush2.msra.mxu0 0.0
    %3289 = vmatprep.subr.mxu0 0.0
    %3290 = vmatpush2.msra.mxu0 0.0
    %3291 = vmatprep.subr.mxu0 0.0
    %3292 = vmatpush2.msra.mxu0 0.0
    %3293 = vmatprep.subr.mxu0 0.0
    %3294 = vmatpush2.msra.mxu0 0.0
    %3295 = vmatprep.subr.mxu0 0.0
    %3296 = vmatpush2.msra.mxu0 0.0
    %3297 = vmatprep.subr.mxu0 0.0
    %3298 = vmatpush2.msra.mxu0 0.0
    %3299 = vmatprep.subr.mxu0 0.0
    %3300 = vmatpush2.msra.mxu0 0.0
    %3301 = vmatprep.mubr.f32.mxu0 0.0
    %3302 = vmatmul.mubr.f32.gmra.mxu0 %v3235
    %v3303 = vpop.f32.mrf.mxu0
    %v3304 = vadd.f32 %v132, %v3303
    %v3305 = vpop.f32.mrf.mxu0
    %v3306 = vadd.f32 %v136, %v3305
    %3307 = vdwg.mxu0
    %vm3308 = vcmp.gt.f32.partialorder %v3304, 20.0
    %v3309 = vmin.f32 %v3304, 20.0
    %v3310 = vmul.f32 %v3309, 1.442695
    %v3311 = vpow.pop %v3310
    %v3312 = vadd.f32 %v3311, 1.0
    %v3313 = vlog2.pop %v3312
    %v3314 = vmul.f32 %v3313, 0.6931472
    %v3315 = vmul.f32 -0.5, %v3311
    %v3316 = vadd.f32 %v3315, 1.0
    %v3317 = vmul.f32 %v3316, %v3311
    %v3318 = vand.u32 2147483647, %v3311
    %vm3319 = vcmp.lt.f32.partialorder %v3318, 0.0004427343
    %v3320 = vsel %vm3319, %v3317, %v3314
    %v3321 = vsel %vm3308, %v3304, %v3320
    %v3323 = vadd.f32 %v275, %v3234
    %v3325 = vsel %vm283, %v3323, 0
    %3327 = vmatprep.subr.mxu0 0.0
    %3328 = vmatpush1.msra.mxu0 0.0
    %3329 = vmatprep.subr.mxu0 0.0
    %3330 = vmatpush1.msra.mxu0 0.0
    %3331 = vmatprep.subr.mxu0 0.0
    %3332 = vmatpush1.msra.mxu0 0.0
    %3333 = vmatprep.subr.mxu0 0.0
    %3334 = vmatpush1.msra.mxu0 0.0
    %3335 = vmatprep.subr.mxu0 0.0
    %3336 = vmatpush1.msra.mxu0 0.0
    %3337 = vmatprep.subr.mxu0 0.0
    %3338 = vmatpush1.msra.mxu0 0.0
    %3339 = vmatprep.subr.mxu0 0.0
    %3340 = vmatpush1.msra.mxu0 0.0
    %3341 = vmatprep.subr.mxu0 0.0
    %3342 = vmatpush1.msra.mxu0 0.0
    %3343 = vmatprep.subr.mxu0 0.0
    %3344 = vmatpush1.msra.mxu0 0.0
    %3345 = vmatprep.subr.mxu0 0.0
    %3346 = vmatpush1.msra.mxu0 0.0
    %3347 = vmatprep.subr.mxu0 0.0
    %3348 = vmatpush1.msra.mxu0 0.0
    %3349 = vmatprep.subr.mxu0 0.0
    %3350 = vmatpush1.msra.mxu0 0.0
    %3351 = vmatprep.subr.mxu0 0.0
    %3352 = vmatpush1.msra.mxu0 %v85
    %3353 = vmatprep.subr.mxu0 0.0
    %3354 = vmatpush1.msra.mxu0 %v84
    %3355 = vmatprep.subr.mxu0 0.0
    %3356 = vmatpush1.msra.mxu0 %v83
    %3357 = vmatprep.subr.mxu0 0.0
    %3358 = vmatpush1.msra.mxu0 %v82
    %3359 = vmatprep.subr.mxu0 0.0
    %3360 = vmatpush2.msra.mxu0 0.0
    %3361 = vmatprep.subr.mxu0 0.0
    %3362 = vmatpush2.msra.mxu0 0.0
    %3363 = vmatprep.subr.mxu0 0.0
    %3364 = vmatpush2.msra.mxu0 0.0
    %3365 = vmatprep.subr.mxu0 0.0
    %3366 = vmatpush2.msra.mxu0 0.0
    %3367 = vmatprep.subr.mxu0 0.0
    %3368 = vmatpush2.msra.mxu0 0.0
    %3369 = vmatprep.subr.mxu0 0.0
    %3370 = vmatpush2.msra.mxu0 0.0
    %3371 = vmatprep.subr.mxu0 0.0
    %3372 = vmatpush2.msra.mxu0 0.0
    %3373 = vmatprep.subr.mxu0 0.0
    %3374 = vmatpush2.msra.mxu0 0.0
    %3375 = vmatprep.subr.mxu0 0.0
    %3376 = vmatpush2.msra.mxu0 0.0
    %3377 = vmatprep.subr.mxu0 0.0
    %3378 = vmatpush2.msra.mxu0 0.0
    %3379 = vmatprep.subr.mxu0 0.0
    %3380 = vmatpush2.msra.mxu0 0.0
    %3381 = vmatprep.subr.mxu0 0.0
    %3382 = vmatpush2.msra.mxu0 0.0
    %3383 = vmatprep.subr.mxu0 0.0
    %3384 = vmatpush2.msra.mxu0 0.0
    %3385 = vmatprep.subr.mxu0 0.0
    %3386 = vmatpush2.msra.mxu0 0.0
    %3387 = vmatprep.subr.mxu0 0.0
    %3388 = vmatpush2.msra.mxu0 0.0
    %3389 = vmatprep.subr.mxu0 0.0
    %3390 = vmatpush2.msra.mxu0 0.0
    %3391 = vmatprep.mubr.f32.mxu0 0.0
    %3392 = vmatmul.mubr.f32.gmra.mxu0 %v3325
    %v3393 = vpop.f32.mrf.mxu0
    %v3394 = vadd.f32 %v111, %v3393
    %v3395 = vpop.f32.mrf.mxu0
    %3396 = vdwg.mxu0
    %vm3397 = vcmp.gt.f32.partialorder %v3394, 20.0
    %v3398 = vmin.f32 %v3394, 20.0
    %v3399 = vmul.f32 %v3398, 1.442695
    %v3400 = vpow.pop %v3399
    %v3401 = vadd.f32 %v3400, 1.0
    %v3402 = vlog2.pop %v3401
    %v3403 = vmul.f32 %v3402, 0.6931472
    %v3404 = vmul.f32 -0.5, %v3400
    %v3405 = vadd.f32 %v3404, 1.0
    %v3406 = vmul.f32 %v3405, %v3400
    %v3407 = vand.u32 2147483647, %v3400
    %vm3408 = vcmp.lt.f32.partialorder %v3407, 0.0004427343
    %v3409 = vsel %vm3408, %v3406, %v3403
    %v3410 = vsel %vm3397, %v3394, %v3409
    %3412 = vrot.lane.b32.xlu0 %v3410, 96
    %v3413 = vpop.permute.xlu0 %3412
    %v3415 = vmul.f32 %v70, %v3413
    %v3416 = vadd.f32 %v3415, %v3394
    %v3418 = vsel %vm283, %v3416, 0
    %3420 = vmatprep.subr.mxu0 0.0
    %3421 = vmatpush1.msra.mxu0 0.0
    %3422 = vmatprep.subr.mxu0 0.0
    %3423 = vmatpush1.msra.mxu0 0.0
    %3424 = vmatprep.subr.mxu0 0.0
    %3425 = vmatpush1.msra.mxu0 0.0
    %3426 = vmatprep.subr.mxu0 0.0
    %3427 = vmatpush1.msra.mxu0 0.0
    %3428 = vmatprep.subr.mxu0 0.0
    %3429 = vmatpush1.msra.mxu0 0.0
    %3430 = vmatprep.subr.mxu0 0.0
    %3431 = vmatpush1.msra.mxu0 0.0
    %3432 = vmatprep.subr.mxu0 0.0
    %3433 = vmatpush1.msra.mxu0 0.0
    %3434 = vmatprep.subr.mxu0 0.0
    %3435 = vmatpush1.msra.mxu0 0.0
    %3436 = vmatprep.subr.mxu0 0.0
    %3437 = vmatpush1.msra.mxu0 0.0
    %3438 = vmatprep.subr.mxu0 0.0
    %3439 = vmatpush1.msra.mxu0 0.0
    %3440 = vmatprep.subr.mxu0 0.0
    %3441 = vmatpush1.msra.mxu0 0.0
    %3442 = vmatprep.subr.mxu0 0.0
    %3443 = vmatpush1.msra.mxu0 0.0
    %3444 = vmatprep.subr.mxu0 0.0
    %3445 = vmatpush1.msra.mxu0 %v93
    %3446 = vmatprep.subr.mxu0 0.0
    %3447 = vmatpush1.msra.mxu0 %v92
    %3448 = vmatprep.subr.mxu0 0.0
    %3449 = vmatpush1.msra.mxu0 %v91
    %3450 = vmatprep.subr.mxu0 0.0
    %3451 = vmatpush1.msra.mxu0 %v90
    %3452 = vmatprep.subr.mxu0 0.0
    %3453 = vmatpush2.msra.mxu0 0.0
    %3454 = vmatprep.subr.mxu0 0.0
    %3455 = vmatpush2.msra.mxu0 0.0
    %3456 = vmatprep.subr.mxu0 0.0
    %3457 = vmatpush2.msra.mxu0 0.0
    %3458 = vmatprep.subr.mxu0 0.0
    %3459 = vmatpush2.msra.mxu0 0.0
    %3460 = vmatprep.subr.mxu0 0.0
    %3461 = vmatpush2.msra.mxu0 0.0
    %3462 = vmatprep.subr.mxu0 0.0
    %3463 = vmatpush2.msra.mxu0 0.0
    %3464 = vmatprep.subr.mxu0 0.0
    %3465 = vmatpush2.msra.mxu0 0.0
    %3466 = vmatprep.subr.mxu0 0.0
    %3467 = vmatpush2.msra.mxu0 0.0
    %3468 = vmatprep.subr.mxu0 0.0
    %3469 = vmatpush2.msra.mxu0 0.0
    %3470 = vmatprep.subr.mxu0 0.0
    %3471 = vmatpush2.msra.mxu0 0.0
    %3472 = vmatprep.subr.mxu0 0.0
    %3473 = vmatpush2.msra.mxu0 0.0
    %3474 = vmatprep.subr.mxu0 0.0
    %3475 = vmatpush2.msra.mxu0 0.0
    %3476 = vmatprep.subr.mxu0 0.0
    %3477 = vmatpush2.msra.mxu0 0.0
    %3478 = vmatprep.subr.mxu0 0.0
    %3479 = vmatpush2.msra.mxu0 0.0
    %3480 = vmatprep.subr.mxu0 0.0
    %3481 = vmatpush2.msra.mxu0 0.0
    %3482 = vmatprep.subr.mxu0 0.0
    %3483 = vmatpush2.msra.mxu0 0.0
    %3484 = vmatprep.mubr.f32.mxu0 0.0
    %3485 = vmatmul.mubr.f32.gmra.mxu0 %v3418
    %v3486 = vpop.f32.mrf.mxu0
    %v3487 = vadd.f32 %v125, %v3486
    %v3488 = vpop.f32.mrf.mxu0
    %3489 = vdwg.mxu0
    %v3490 = vadd.f32 %v3487, %v3234
    %v3492 = vsel %vm283, %v3490, 0
    %3494 = vmatprep.subr.mxu0 0.0
    %3495 = vmatpush1.msra.mxu0 0.0
    %3496 = vmatprep.subr.mxu0 0.0
    %3497 = vmatpush1.msra.mxu0 0.0
    %3498 = vmatprep.subr.mxu0 0.0
    %3499 = vmatpush1.msra.mxu0 0.0
    %3500 = vmatprep.subr.mxu0 0.0
    %3501 = vmatpush1.msra.mxu0 0.0
    %3502 = vmatprep.subr.mxu0 0.0
    %3503 = vmatpush1.msra.mxu0 0.0
    %3504 = vmatprep.subr.mxu0 0.0
    %3505 = vmatpush1.msra.mxu0 0.0
    %3506 = vmatprep.subr.mxu0 0.0
    %3507 = vmatpush1.msra.mxu0 0.0
    %3508 = vmatprep.subr.mxu0 0.0
    %3509 = vmatpush1.msra.mxu0 0.0
    %3510 = vmatprep.subr.mxu0 0.0
    %3511 = vmatpush1.msra.mxu0 0.0
    %3512 = vmatprep.subr.mxu0 0.0
    %3513 = vmatpush1.msra.mxu0 0.0
    %3514 = vmatprep.subr.mxu0 0.0
    %3515 = vmatpush1.msra.mxu0 0.0
    %3516 = vmatprep.subr.mxu0 0.0
    %3517 = vmatpush1.msra.mxu0 0.0
    %3518 = vmatprep.subr.mxu0 0.0
    %3519 = vmatpush1.msra.mxu0 %v89
    %3520 = vmatprep.subr.mxu0 0.0
    %3521 = vmatpush1.msra.mxu0 %v88
    %3522 = vmatprep.subr.mxu0 0.0
    %3523 = vmatpush1.msra.mxu0 %v87
    %3524 = vmatprep.subr.mxu0 0.0
    %3525 = vmatpush1.msra.mxu0 %v86
    %3526 = vmatprep.subr.mxu0 0.0
    %3527 = vmatpush2.msra.mxu0 0.0
    %3528 = vmatprep.subr.mxu0 0.0
    %3529 = vmatpush2.msra.mxu0 0.0
    %3530 = vmatprep.subr.mxu0 0.0
    %3531 = vmatpush2.msra.mxu0 0.0
    %3532 = vmatprep.subr.mxu0 0.0
    %3533 = vmatpush2.msra.mxu0 0.0
    %3534 = vmatprep.subr.mxu0 0.0
    %3535 = vmatpush2.msra.mxu0 0.0
    %3536 = vmatprep.subr.mxu0 0.0
    %3537 = vmatpush2.msra.mxu0 0.0
    %3538 = vmatprep.subr.mxu0 0.0
    %3539 = vmatpush2.msra.mxu0 0.0
    %3540 = vmatprep.subr.mxu0 0.0
    %3541 = vmatpush2.msra.mxu0 0.0
    %3542 = vmatprep.subr.mxu0 0.0
    %3543 = vmatpush2.msra.mxu0 0.0
    %3544 = vmatprep.subr.mxu0 0.0
    %3545 = vmatpush2.msra.mxu0 0.0
    %3546 = vmatprep.subr.mxu0 0.0
    %3547 = vmatpush2.msra.mxu0 0.0
    %3548 = vmatprep.subr.mxu0 0.0
    %3549 = vmatpush2.msra.mxu0 0.0
    %3550 = vmatprep.subr.mxu0 0.0
    %3551 = vmatpush2.msra.mxu0 0.0
    %3552 = vmatprep.subr.mxu0 0.0
    %3553 = vmatpush2.msra.mxu0 0.0
    %3554 = vmatprep.subr.mxu0 0.0
    %3555 = vmatpush2.msra.mxu0 0.0
    %3556 = vmatprep.subr.mxu0 0.0
    %3557 = vmatpush2.msra.mxu0 0.0
    %3558 = vmatprep.mubr.f32.mxu0 0.0
    %3559 = vmatmul.mubr.f32.gmra.mxu0 %v3492
    %v3560 = vpop.f32.mrf.mxu0
    %v3561 = vadd.f32 %v118, %v3560
    %v3562 = vpop.f32.mrf.mxu0
    %3563 = vdwg.mxu0
    %vm3564 = vcmp.gt.f32.partialorder %v3561, 20.0
    %v3565 = vmin.f32 %v3561, 20.0
    %v3566 = vmul.f32 %v3565, 1.442695
    %v3567 = vpow.pop %v3566
    %v3568 = vadd.f32 %v3567, 1.0
    %v3569 = vlog2.pop %v3568
    %v3570 = vmul.f32 %v3569, 0.6931472
    %v3571 = vmul.f32 -0.5, %v3567
    %v3572 = vadd.f32 %v3571, 1.0
    %v3573 = vmul.f32 %v3572, %v3567
    %v3574 = vand.u32 2147483647, %v3567
    %vm3575 = vcmp.lt.f32.partialorder %v3574, 0.0004427343
    %v3576 = vsel %vm3575, %v3573, %v3570
    %v3577 = vsel %vm3564, %v3561, %v3576
    %3579 = vrot.lane.b32.xlu0 %v3577, 112
    %v3580 = vpop.permute.xlu0 %3579
    %v3582 = vmul.f32 %v78, %v3580
    %v3583 = vadd.f32 %v3582, %v3561
    %3585 = vrot.lane.b32.xlu0 %v3487, 96
    %v3586 = vpop.permute.xlu0 %3585
    %v3587 = vsel %vm283, %v3586, 0
    %3589 = vmatprep.subr.mxu0 0.0
    %3590 = vmatpush1.msra.mxu0 0.0
    %3591 = vmatprep.subr.mxu0 0.0
    %3592 = vmatpush1.msra.mxu0 0.0
    %3593 = vmatprep.subr.mxu0 0.0
    %3594 = vmatpush1.msra.mxu0 0.0
    %3595 = vmatprep.subr.mxu0 0.0
    %3596 = vmatpush1.msra.mxu0 0.0
    %3597 = vmatprep.subr.mxu0 0.0
    %3598 = vmatpush1.msra.mxu0 0.0
    %3599 = vmatprep.subr.mxu0 0.0
    %3600 = vmatpush1.msra.mxu0 0.0
    %3601 = vmatprep.subr.mxu0 0.0
    %3602 = vmatpush1.msra.mxu0 0.0
    %3603 = vmatprep.subr.mxu0 0.0
    %3604 = vmatpush1.msra.mxu0 0.0
    %3605 = vmatprep.subr.mxu0 0.0
    %3606 = vmatpush1.msra.mxu0 0.0
    %3607 = vmatprep.subr.mxu0 0.0
    %3608 = vmatpush1.msra.mxu0 0.0
    %3609 = vmatprep.subr.mxu0 0.0
    %3610 = vmatpush1.msra.mxu0 0.0
    %3611 = vmatprep.subr.mxu0 0.0
    %3612 = vmatpush1.msra.mxu0 0.0
    %3613 = vmatprep.subr.mxu0 0.0
    %3614 = vmatpush1.msra.mxu0 %v105
    %3615 = vmatprep.subr.mxu0 0.0
    %3616 = vmatpush1.msra.mxu0 %v104
    %3617 = vmatprep.subr.mxu0 0.0
    %3618 = vmatpush1.msra.mxu0 %v103
    %3619 = vmatprep.subr.mxu0 0.0
    %3620 = vmatpush1.msra.mxu0 %v102
    %3621 = vmatprep.subr.mxu0 0.0
    %3622 = vmatpush2.msra.mxu0 0.0
    %3623 = vmatprep.subr.mxu0 0.0
    %3624 = vmatpush2.msra.mxu0 0.0
    %3625 = vmatprep.subr.mxu0 0.0
    %3626 = vmatpush2.msra.mxu0 0.0
    %3627 = vmatprep.subr.mxu0 0.0
    %3628 = vmatpush2.msra.mxu0 0.0
    %3629 = vmatprep.subr.mxu0 0.0
    %3630 = vmatpush2.msra.mxu0 0.0
    %3631 = vmatprep.subr.mxu0 0.0
    %3632 = vmatpush2.msra.mxu0 0.0
    %3633 = vmatprep.subr.mxu0 0.0
    %3634 = vmatpush2.msra.mxu0 0.0
    %3635 = vmatprep.subr.mxu0 0.0
    %3636 = vmatpush2.msra.mxu0 0.0
    %3637 = vmatprep.subr.mxu0 0.0
    %3638 = vmatpush2.msra.mxu0 0.0
    %3639 = vmatprep.subr.mxu0 0.0
    %3640 = vmatpush2.msra.mxu0 0.0
    %3641 = vmatprep.subr.mxu0 0.0
    %3642 = vmatpush2.msra.mxu0 0.0
    %3643 = vmatprep.subr.mxu0 0.0
    %3644 = vmatpush2.msra.mxu0 0.0
    %3645 = vmatprep.subr.mxu0 0.0
    %3646 = vmatpush2.msra.mxu0 0.0
    %3647 = vmatprep.subr.mxu0 0.0
    %3648 = vmatpush2.msra.mxu0 0.0
    %3649 = vmatprep.subr.mxu0 0.0
    %3650 = vmatpush2.msra.mxu0 0.0
    %3651 = vmatprep.subr.mxu0 0.0
    %3652 = vmatpush2.msra.mxu0 0.0
    %3653 = vmatprep.mubr.f32.mxu0 0.0
    %3654 = vmatmul.mubr.f32.gmra.mxu0 %v3587
    %v3655 = vpop.f32.mrf.mxu0
    %v3656 = vadd.f32 %v144, %v3655
    %v3657 = vpop.f32.mrf.mxu0
    %3658 = vdwg.mxu0
    %3660 = vrot.lane.b32.xlu0 %v3304, 64
    %v3661 = vpop.permute.xlu0 %3660
    %v3663 = vadd.f32 %v3656, %v3661
    %v3664 = vxor.u32 %v3663, 2147483648
    %v3665 = vmul.f32 %v3664, 1.442695
    %v3666 = vpow.pop %v3665
    %v3667 = vadd.f32 %v3666, 1.0
    %v3668 = vrcp.pop %v3667
    %v3669 = vmul.f32 1.0, %v3668
    %v3670 = vmul.f32 %v3669, %v3306
    %3672 = vrot.lane.b32.xlu0 %v3670, 64
    %v3673 = vpop.permute.xlu0 %3672
    %v3675 = vadd.f32 %v3656, %v3673
    %v3676 = vtanh.pop %v3675
    %v3677 = vsub.f32 1.0, %v3669
    %3679 = vrot.lane.b32.xlu0 %v3676, 96
    %v3680 = vpop.permute.xlu0 %3679
    %v3682 = vmul.f32 %v3677, %v3680
    %v3683 = vmul.f32 %v3669, %v3190
    %v3684 = vadd.f32 %v3682, %v3683
    %v3685 = vsub.f32 %v3583, %v62
    %v3686 = vmul.f32 %v3685, %v3685
    %v3687 = vadd.f32 %v3193, %v3686
    %v3688 = vlog2.pop %v3410
    %v3689 = vmul.f32 %v3688, 0.6931472
    %v3690 = vmul.f32 %v3689, 2.0
    %v3691 = vlog2.pop %v3321
    %v3692 = vmul.f32 %v3691, 0.6931472
    %v3693 = vmul.f32 %v3692, 2.0
    %v3694 = vsub.f32 %v3690, %v3693
    %v3695 = vmul.f32 %v3321, %v3321
    %v3696 = vsub.f32 %v3304, %v3394
    %v3697 = vmul.f32 %v3696, %v3696
    %3699 = vrot.lane.b32.xlu0 %v3697, 32
    %v3700 = vpop.permute.xlu0 %3699
    %v3702 = vadd.f32 %v3695, %v3700
    %v3703 = vmul.f32 %v3410, %v3410
    %v3704 = vrcp.pop %v3703
    %v3705 = vmul.f32 %v3702, %v3704
    %v3706 = vadd.f32 %v3694, %v3705
    %v3707 = vsub.f32 %v3706, 1.0
    %v3708 = vadd.f32 %v3214, %v3707
    %v3709 = vlog2.pop %v3577
    %v3710 = vmul.f32 %v3709, 0.6931472
    %v3711 = vmul.f32 %v3710, 2.0
    %v3712 = vsub.f32 %v3711, %v3217
    %v3713 = vsub.f32 %v3067, %v3561
    %v3714 = vmul.f32 %v3713, %v3713
    %3716 = vrot.lane.b32.xlu0 %v3714, 16
    %v3717 = vpop.permute.xlu0 %3716
    %v3719 = vadd.f32 %v3226, %v3717
    %v3720 = vmul.f32 %v3577, %v3577
    %v3721 = vrcp.pop %v3720
    %v3722 = vmul.f32 %v3719, %v3721
    %v3723 = vadd.f32 %v3712, %v3722
    %v3724 = vsub.f32 %v3723, 1.0
    %v3725 = vadd.f32 %v3231, %v3724
    %3727 = vrot.lane.b32.xlu0 %v3684, 96
    %v3728 = vpop.permute.xlu0 %3727
    %v3729 = vsel %vm283, %v3728, 0
    %3731 = vmatprep.subr.mxu0 0.0
    %3732 = vmatpush1.msra.mxu0 0.0
    %3733 = vmatprep.subr.mxu0 0.0
    %3734 = vmatpush1.msra.mxu0 0.0
    %3735 = vmatprep.subr.mxu0 0.0
    %3736 = vmatpush1.msra.mxu0 0.0
    %3737 = vmatprep.subr.mxu0 0.0
    %3738 = vmatpush1.msra.mxu0 0.0
    %3739 = vmatprep.subr.mxu0 0.0
    %3740 = vmatpush1.msra.mxu0 0.0
    %3741 = vmatprep.subr.mxu0 0.0
    %3742 = vmatpush1.msra.mxu0 0.0
    %3743 = vmatprep.subr.mxu0 0.0
    %3744 = vmatpush1.msra.mxu0 0.0
    %3745 = vmatprep.subr.mxu0 0.0
    %3746 = vmatpush1.msra.mxu0 0.0
    %3747 = vmatprep.subr.mxu0 0.0
    %3748 = vmatpush1.msra.mxu0 0.0
    %3749 = vmatprep.subr.mxu0 0.0
    %3750 = vmatpush1.msra.mxu0 0.0
    %3751 = vmatprep.subr.mxu0 0.0
    %3752 = vmatpush1.msra.mxu0 0.0
    %3753 = vmatprep.subr.mxu0 0.0
    %3754 = vmatpush1.msra.mxu0 0.0
    %3755 = vmatprep.subr.mxu0 %v101
    %3756 = vmatpush1.msra.mxu0 %v100
    %3757 = vmatprep.subr.mxu0 %v99
    %3758 = vmatpush1.msra.mxu0 %v98
    %3759 = vmatprep.subr.mxu0 %v97
    %3760 = vmatpush1.msra.mxu0 %v96
    %3761 = vmatprep.subr.mxu0 %v95
    %3762 = vmatpush1.msra.mxu0 %v94
    %3763 = vmatprep.subr.mxu0 0.0
    %3764 = vmatpush2.msra.mxu0 0.0
    %3765 = vmatprep.subr.mxu0 0.0
    %3766 = vmatpush2.msra.mxu0 0.0
    %3767 = vmatprep.subr.mxu0 0.0
    %3768 = vmatpush2.msra.mxu0 0.0
    %3769 = vmatprep.subr.mxu0 0.0
    %3770 = vmatpush2.msra.mxu0 0.0
    %3771 = vmatprep.subr.mxu0 0.0
    %3772 = vmatpush2.msra.mxu0 0.0
    %3773 = vmatprep.subr.mxu0 0.0
    %3774 = vmatpush2.msra.mxu0 0.0
    %3775 = vmatprep.subr.mxu0 0.0
    %3776 = vmatpush2.msra.mxu0 0.0
    %3777 = vmatprep.subr.mxu0 0.0
    %3778 = vmatpush2.msra.mxu0 0.0
    %3779 = vmatprep.subr.mxu0 0.0
    %3780 = vmatpush2.msra.mxu0 0.0
    %3781 = vmatprep.subr.mxu0 0.0
    %3782 = vmatpush2.msra.mxu0 0.0
    %3783 = vmatprep.subr.mxu0 0.0
    %3784 = vmatpush2.msra.mxu0 0.0
    %3785 = vmatprep.subr.mxu0 0.0
    %3786 = vmatpush2.msra.mxu0 0.0
    %3787 = vmatprep.subr.mxu0 0.0
    %3788 = vmatpush2.msra.mxu0 0.0
    %3789 = vmatprep.subr.mxu0 0.0
    %3790 = vmatpush2.msra.mxu0 0.0
    %3791 = vmatprep.subr.mxu0 0.0
    %3792 = vmatpush2.msra.mxu0 0.0
    %3793 = vmatprep.subr.mxu0 0.0
    %3794 = vmatpush2.msra.mxu0 0.0
    %3795 = vmatprep.mubr.f32.mxu0 0.0
    %3796 = vmatmul.mubr.f32.gmra.mxu0 %v3729
    %v3797 = vpop.f32.mrf.mxu0
    %v3798 = vadd.f32 %v132, %v3797
    %v3799 = vpop.f32.mrf.mxu0
    %3800 = vdwg.mxu0
    %vm3801 = vcmp.gt.f32.partialorder %v3798, 20.0
    %v3802 = vmin.f32 %v3798, 20.0
    %v3803 = vmul.f32 %v3802, 1.442695
    %v3804 = vpow.pop %v3803
    %v3805 = vadd.f32 %v3804, 1.0
    %v3806 = vlog2.pop %v3805
    %v3807 = vmul.f32 %v3806, 0.6931472
    %v3808 = vmul.f32 -0.5, %v3804
    %v3809 = vadd.f32 %v3808, 1.0
    %v3810 = vmul.f32 %v3809, %v3804
    %v3811 = vand.u32 2147483647, %v3804
    %vm3812 = vcmp.lt.f32.partialorder %v3811, 0.0004427343
    %v3813 = vsel %vm3812, %v3810, %v3807
    %v3814 = vsel %vm3801, %v3798, %v3813
    %v3816 = vadd.f32 %v280, %v3728
    %v3818 = vsel %vm283, %v3816, 0
    %3820 = vmatprep.subr.mxu0 0.0
    %3821 = vmatpush1.msra.mxu0 0.0
    %3822 = vmatprep.subr.mxu0 0.0
    %3823 = vmatpush1.msra.mxu0 0.0
    %3824 = vmatprep.subr.mxu0 0.0
    %3825 = vmatpush1.msra.mxu0 0.0
    %3826 = vmatprep.subr.mxu0 0.0
    %3827 = vmatpush1.msra.mxu0 0.0
    %3828 = vmatprep.subr.mxu0 0.0
    %3829 = vmatpush1.msra.mxu0 0.0
    %3830 = vmatprep.subr.mxu0 0.0
    %3831 = vmatpush1.msra.mxu0 0.0
    %3832 = vmatprep.subr.mxu0 0.0
    %3833 = vmatpush1.msra.mxu0 0.0
    %3834 = vmatprep.subr.mxu0 0.0
    %3835 = vmatpush1.msra.mxu0 0.0
    %3836 = vmatprep.subr.mxu0 0.0
    %3837 = vmatpush1.msra.mxu0 0.0
    %3838 = vmatprep.subr.mxu0 0.0
    %3839 = vmatpush1.msra.mxu0 0.0
    %3840 = vmatprep.subr.mxu0 0.0
    %3841 = vmatpush1.msra.mxu0 0.0
    %3842 = vmatprep.subr.mxu0 0.0
    %3843 = vmatpush1.msra.mxu0 0.0
    %3844 = vmatprep.subr.mxu0 0.0
    %3845 = vmatpush1.msra.mxu0 %v85
    %3846 = vmatprep.subr.mxu0 0.0
    %3847 = vmatpush1.msra.mxu0 %v84
    %3848 = vmatprep.subr.mxu0 0.0
    %3849 = vmatpush1.msra.mxu0 %v83
    %3850 = vmatprep.subr.mxu0 0.0
    %3851 = vmatpush1.msra.mxu0 %v82
    %3852 = vmatprep.subr.mxu0 0.0
    %3853 = vmatpush2.msra.mxu0 0.0
    %3854 = vmatprep.subr.mxu0 0.0
    %3855 = vmatpush2.msra.mxu0 0.0
    %3856 = vmatprep.subr.mxu0 0.0
    %3857 = vmatpush2.msra.mxu0 0.0
    %3858 = vmatprep.subr.mxu0 0.0
    %3859 = vmatpush2.msra.mxu0 0.0
    %3860 = vmatprep.subr.mxu0 0.0
    %3861 = vmatpush2.msra.mxu0 0.0
    %3862 = vmatprep.subr.mxu0 0.0
    %3863 = vmatpush2.msra.mxu0 0.0
    %3864 = vmatprep.subr.mxu0 0.0
    %3865 = vmatpush2.msra.mxu0 0.0
    %3866 = vmatprep.subr.mxu0 0.0
    %3867 = vmatpush2.msra.mxu0 0.0
    %3868 = vmatprep.subr.mxu0 0.0
    %3869 = vmatpush2.msra.mxu0 0.0
    %3870 = vmatprep.subr.mxu0 0.0
    %3871 = vmatpush2.msra.mxu0 0.0
    %3872 = vmatprep.subr.mxu0 0.0
    %3873 = vmatpush2.msra.mxu0 0.0
    %3874 = vmatprep.subr.mxu0 0.0
    %3875 = vmatpush2.msra.mxu0 0.0
    %3876 = vmatprep.subr.mxu0 0.0
    %3877 = vmatpush2.msra.mxu0 0.0
    %3878 = vmatprep.subr.mxu0 0.0
    %3879 = vmatpush2.msra.mxu0 0.0
    %3880 = vmatprep.subr.mxu0 0.0
    %3881 = vmatpush2.msra.mxu0 0.0
    %3882 = vmatprep.subr.mxu0 0.0
    %3883 = vmatpush2.msra.mxu0 0.0
    %3884 = vmatprep.mubr.f32.mxu0 0.0
    %3885 = vmatmul.mubr.f32.gmra.mxu0 %v3818
    %v3886 = vpop.f32.mrf.mxu0
    %v3887 = vadd.f32 %v111, %v3886
    %v3888 = vpop.f32.mrf.mxu0
    %3889 = vdwg.mxu0
    %vm3890 = vcmp.gt.f32.partialorder %v3887, 20.0
    %v3891 = vmin.f32 %v3887, 20.0
    %v3892 = vmul.f32 %v3891, 1.442695
    %v3893 = vpow.pop %v3892
    %v3894 = vadd.f32 %v3893, 1.0
    %v3895 = vlog2.pop %v3894
    %v3896 = vmul.f32 %v3895, 0.6931472
    %v3897 = vmul.f32 -0.5, %v3893
    %v3898 = vadd.f32 %v3897, 1.0
    %v3899 = vmul.f32 %v3898, %v3893
    %v3900 = vand.u32 2147483647, %v3893
    %vm3901 = vcmp.lt.f32.partialorder %v3900, 0.0004427343
    %v3902 = vsel %vm3901, %v3899, %v3896
    %v3903 = vsel %vm3890, %v3887, %v3902
    %3905 = vrot.lane.b32.xlu0 %v3903, 96
    %v3906 = vpop.permute.xlu0 %3905
    %v3908 = vmul.f32 %v71, %v3906
    %v3909 = vadd.f32 %v3908, %v3887
    %v3911 = vsel %vm283, %v3909, 0
    %3913 = vmatprep.subr.mxu0 0.0
    %3914 = vmatpush1.msra.mxu0 0.0
    %3915 = vmatprep.subr.mxu0 0.0
    %3916 = vmatpush1.msra.mxu0 0.0
    %3917 = vmatprep.subr.mxu0 0.0
    %3918 = vmatpush1.msra.mxu0 0.0
    %3919 = vmatprep.subr.mxu0 0.0
    %3920 = vmatpush1.msra.mxu0 0.0
    %3921 = vmatprep.subr.mxu0 0.0
    %3922 = vmatpush1.msra.mxu0 0.0
    %3923 = vmatprep.subr.mxu0 0.0
    %3924 = vmatpush1.msra.mxu0 0.0
    %3925 = vmatprep.subr.mxu0 0.0
    %3926 = vmatpush1.msra.mxu0 0.0
    %3927 = vmatprep.subr.mxu0 0.0
    %3928 = vmatpush1.msra.mxu0 0.0
    %3929 = vmatprep.subr.mxu0 0.0
    %3930 = vmatpush1.msra.mxu0 0.0
    %3931 = vmatprep.subr.mxu0 0.0
    %3932 = vmatpush1.msra.mxu0 0.0
    %3933 = vmatprep.subr.mxu0 0.0
    %3934 = vmatpush1.msra.mxu0 0.0
    %3935 = vmatprep.subr.mxu0 0.0
    %3936 = vmatpush1.msra.mxu0 0.0
    %3937 = vmatprep.subr.mxu0 0.0
    %3938 = vmatpush1.msra.mxu0 %v93
    %3939 = vmatprep.subr.mxu0 0.0
    %3940 = vmatpush1.msra.mxu0 %v92
    %3941 = vmatprep.subr.mxu0 0.0
    %3942 = vmatpush1.msra.mxu0 %v91
    %3943 = vmatprep.subr.mxu0 0.0
    %3944 = vmatpush1.msra.mxu0 %v90
    %3945 = vmatprep.subr.mxu0 0.0
    %3946 = vmatpush2.msra.mxu0 0.0
    %3947 = vmatprep.subr.mxu0 0.0
    %3948 = vmatpush2.msra.mxu0 0.0
    %3949 = vmatprep.subr.mxu0 0.0
    %3950 = vmatpush2.msra.mxu0 0.0
    %3951 = vmatprep.subr.mxu0 0.0
    %3952 = vmatpush2.msra.mxu0 0.0
    %3953 = vmatprep.subr.mxu0 0.0
    %3954 = vmatpush2.msra.mxu0 0.0
    %3955 = vmatprep.subr.mxu0 0.0
    %3956 = vmatpush2.msra.mxu0 0.0
    %3957 = vmatprep.subr.mxu0 0.0
    %3958 = vmatpush2.msra.mxu0 0.0
    %3959 = vmatprep.subr.mxu0 0.0
    %3960 = vmatpush2.msra.mxu0 0.0
    %3961 = vmatprep.subr.mxu0 0.0
    %3962 = vmatpush2.msra.mxu0 0.0
    %3963 = vmatprep.subr.mxu0 0.0
    %3964 = vmatpush2.msra.mxu0 0.0
    %3965 = vmatprep.subr.mxu0 0.0
    %3966 = vmatpush2.msra.mxu0 0.0
    %3967 = vmatprep.subr.mxu0 0.0
    %3968 = vmatpush2.msra.mxu0 0.0
    %3969 = vmatprep.subr.mxu0 0.0
    %3970 = vmatpush2.msra.mxu0 0.0
    %3971 = vmatprep.subr.mxu0 0.0
    %3972 = vmatpush2.msra.mxu0 0.0
    %3973 = vmatprep.subr.mxu0 0.0
    %3974 = vmatpush2.msra.mxu0 0.0
    %3975 = vmatprep.subr.mxu0 0.0
    %3976 = vmatpush2.msra.mxu0 0.0
    %3977 = vmatprep.mubr.f32.mxu0 0.0
    %3978 = vmatmul.mubr.f32.gmra.mxu0 %v3911
    %v3979 = vpop.f32.mrf.mxu0
    %v3980 = vadd.f32 %v125, %v3979
    %v3981 = vpop.f32.mrf.mxu0
    %3982 = vdwg.mxu0
    %v3983 = vadd.f32 %v3980, %v3728
    %v3985 = vsel %vm283, %v3983, 0
    %3987 = vmatprep.subr.mxu0 0.0
    %3988 = vmatpush1.msra.mxu0 0.0
    %3989 = vmatprep.subr.mxu0 0.0
    %3990 = vmatpush1.msra.mxu0 0.0
    %3991 = vmatprep.subr.mxu0 0.0
    %3992 = vmatpush1.msra.mxu0 0.0
    %3993 = vmatprep.subr.mxu0 0.0
    %3994 = vmatpush1.msra.mxu0 0.0
    %3995 = vmatprep.subr.mxu0 0.0
    %3996 = vmatpush1.msra.mxu0 0.0
    %3997 = vmatprep.subr.mxu0 0.0
    %3998 = vmatpush1.msra.mxu0 0.0
    %3999 = vmatprep.subr.mxu0 0.0
    %4000 = vmatpush1.msra.mxu0 0.0
    %4001 = vmatprep.subr.mxu0 0.0
    %4002 = vmatpush1.msra.mxu0 0.0
    %4003 = vmatprep.subr.mxu0 0.0
    %4004 = vmatpush1.msra.mxu0 0.0
    %4005 = vmatprep.subr.mxu0 0.0
    %4006 = vmatpush1.msra.mxu0 0.0
    %4007 = vmatprep.subr.mxu0 0.0
    %4008 = vmatpush1.msra.mxu0 0.0
    %4009 = vmatprep.subr.mxu0 0.0
    %4010 = vmatpush1.msra.mxu0 0.0
    %4011 = vmatprep.subr.mxu0 0.0
    %4012 = vmatpush1.msra.mxu0 %v89
    %4013 = vmatprep.subr.mxu0 0.0
    %4014 = vmatpush1.msra.mxu0 %v88
    %4015 = vmatprep.subr.mxu0 0.0
    %4016 = vmatpush1.msra.mxu0 %v87
    %4017 = vmatprep.subr.mxu0 0.0
    %4018 = vmatpush1.msra.mxu0 %v86
    %4019 = vmatprep.subr.mxu0 0.0
    %4020 = vmatpush2.msra.mxu0 0.0
    %4021 = vmatprep.subr.mxu0 0.0
    %4022 = vmatpush2.msra.mxu0 0.0
    %4023 = vmatprep.subr.mxu0 0.0
    %4024 = vmatpush2.msra.mxu0 0.0
    %4025 = vmatprep.subr.mxu0 0.0
    %4026 = vmatpush2.msra.mxu0 0.0
    %4027 = vmatprep.subr.mxu0 0.0
    %4028 = vmatpush2.msra.mxu0 0.0
    %4029 = vmatprep.subr.mxu0 0.0
    %4030 = vmatpush2.msra.mxu0 0.0
    %4031 = vmatprep.subr.mxu0 0.0
    %4032 = vmatpush2.msra.mxu0 0.0
    %4033 = vmatprep.subr.mxu0 0.0
    %4034 = vmatpush2.msra.mxu0 0.0
    %4035 = vmatprep.subr.mxu0 0.0
    %4036 = vmatpush2.msra.mxu0 0.0
    %4037 = vmatprep.subr.mxu0 0.0
    %4038 = vmatpush2.msra.mxu0 0.0
    %4039 = vmatprep.subr.mxu0 0.0
    %4040 = vmatpush2.msra.mxu0 0.0
    %4041 = vmatprep.subr.mxu0 0.0
    %4042 = vmatpush2.msra.mxu0 0.0
    %4043 = vmatprep.subr.mxu0 0.0
    %4044 = vmatpush2.msra.mxu0 0.0
    %4045 = vmatprep.subr.mxu0 0.0
    %4046 = vmatpush2.msra.mxu0 0.0
    %4047 = vmatprep.subr.mxu0 0.0
    %4048 = vmatpush2.msra.mxu0 0.0
    %4049 = vmatprep.subr.mxu0 0.0
    %4050 = vmatpush2.msra.mxu0 0.0
    %4051 = vmatprep.mubr.f32.mxu0 0.0
    %4052 = vmatmul.mubr.f32.gmra.mxu0 %v3985
    %v4053 = vpop.f32.mrf.mxu0
    %v4054 = vadd.f32 %v118, %v4053
    %v4055 = vpop.f32.mrf.mxu0
    %4056 = vdwg.mxu0
    %vm4057 = vcmp.gt.f32.partialorder %v4054, 20.0
    %v4058 = vmin.f32 %v4054, 20.0
    %v4059 = vmul.f32 %v4058, 1.442695
    %v4060 = vpow.pop %v4059
    %v4061 = vadd.f32 %v4060, 1.0
    %v4062 = vlog2.pop %v4061
    %v4063 = vmul.f32 %v4062, 0.6931472
    %v4064 = vmul.f32 -0.5, %v4060
    %v4065 = vadd.f32 %v4064, 1.0
    %v4066 = vmul.f32 %v4065, %v4060
    %v4067 = vand.u32 2147483647, %v4060
    %vm4068 = vcmp.lt.f32.partialorder %v4067, 0.0004427343
    %v4069 = vsel %vm4068, %v4066, %v4063
    %v4070 = vsel %vm4057, %v4054, %v4069
    %4072 = vrot.lane.b32.xlu0 %v4070, 112
    %v4073 = vpop.permute.xlu0 %4072
    %v4075 = vmul.f32 %v79, %v4073
    %v4076 = vadd.f32 %v4075, %v4054
    %v4077 = vsub.f32 %v4076, %v63
    %v4078 = vmul.f32 %v4077, %v4077
    %v4079 = vadd.f32 %v3687, %v4078
    %v4080 = vlog2.pop %v3903
    %v4081 = vmul.f32 %v4080, 0.6931472
    %v4082 = vmul.f32 %v4081, 2.0
    %v4083 = vlog2.pop %v3814
    %v4084 = vmul.f32 %v4083, 0.6931472
    %v4085 = vmul.f32 %v4084, 2.0
    %v4086 = vsub.f32 %v4082, %v4085
    %v4087 = vmul.f32 %v3814, %v3814
    %v4088 = vsub.f32 %v3798, %v3887
    %v4089 = vmul.f32 %v4088, %v4088
    %4091 = vrot.lane.b32.xlu0 %v4089, 32
    %v4092 = vpop.permute.xlu0 %4091
    %v4094 = vadd.f32 %v4087, %v4092
    %v4095 = vmul.f32 %v3903, %v3903
    %v4096 = vrcp.pop %v4095
    %v4097 = vmul.f32 %v4094, %v4096
    %v4098 = vadd.f32 %v4086, %v4097
    %v4099 = vsub.f32 %v4098, 1.0
    %v4100 = vadd.f32 %v3708, %v4099
    %v4101 = vlog2.pop %v4070
    %v4102 = vmul.f32 %v4101, 0.6931472
    %v4103 = vmul.f32 %v4102, 2.0
    %v4104 = vsub.f32 %v4103, %v3711
    %v4105 = vsub.f32 %v3561, %v4054
    %v4106 = vmul.f32 %v4105, %v4105
    %4108 = vrot.lane.b32.xlu0 %v4106, 16
    %v4109 = vpop.permute.xlu0 %4108
    %v4111 = vadd.f32 %v3720, %v4109
    %v4112 = vmul.f32 %v4070, %v4070
    %v4113 = vrcp.pop %v4112
    %v4114 = vmul.f32 %v4111, %v4113
    %v4115 = vadd.f32 %v4104, %v4114
    %v4116 = vsub.f32 %v4115, 1.0
    %v4117 = vadd.f32 %v3725, %v4116
    %4119 = vrot.lane.b32.xlu0 %v1109, 16
    %v4120 = vpop.permute.xlu0 %4119
    %4123 = vrot.lane.b32.xlu0 %v1607, 32
    %v4124 = vpop.permute.xlu0 %4123
    %4127 = vrot.lane.b32.xlu0 %v2101, 48
    %v4128 = vpop.permute.xlu0 %4127
    %4131 = vrot.lane.b32.xlu0 %v2595, 64
    %v4132 = vpop.permute.xlu0 %4131
    %4135 = vrot.lane.b32.xlu0 %v3089, 80
    %v4136 = vpop.permute.xlu0 %4135
    %4139 = vrot.lane.b32.xlu0 %v3583, 96
    %v4140 = vpop.permute.xlu0 %4139
    %4143 = vrot.lane.b32.xlu0 %v4076, 112
    %v4144 = vpop.permute.xlu0 %4143
    %v4146 = vsel %vm153, %v632, %v4120
    %v4147 = vsel %vm283, %v4146, %v4124
    %vm4148 = vcmask 392192
    %v4149 = vsel %vm4148, %v4147, %v4128
    %vm4150 = vcmask 523264
    %v4151 = vsel %vm4150, %v4149, %v4132
    %vm4152 = vcmask 654336
    %v4153 = vsel %vm4152, %v4151, %v4136
    %vm4154 = vcmask 785408
    %v4155 = vsel %vm4154, %v4153, %v4140
    %vm4156 = vcmask 916480
    %v4157 = vsel %vm4156, %v4155, %v4144
    %4158 = vst [vmem:[%s15] sm:$0xff] %v4157
    %v4159 = vlaneseq
    %v4160 = vshrl.u32 %v4159, 7
    %vm4161 = vcmp.lt.s32.totalorder %v4160, 2
    %v4162 = vsel %vm4161, 1, 0
    %v4163 = vcvt.s32.f32 %v4162
    %v4164 = vmul.f32 %v4079, %v4163
    %v4165 = vsel %vm153, %v4164, 0.0
    %4166 = vadd.xlane.f32.xlu0 %v4165
    %v4167 = vpop.xlane.xlu0 %4166
    %v4168 = vrot.slane %v4167, 4
    %v4169 = vadd.f32 %v4167, %v4168
    %v4170 = vrot.slane %v4169, 2
    %v4171 = vadd.f32 %v4169, %v4170
    %v4172 = vrot.slane %v4171, 1
    %v4173 = vadd.f32 %v4171, %v4172
    %s4174 = vtos %v4173
    %v4175 = vrcp.pop 256.0
    %s4176 = vtos %v4175
    %s4177 = smul.f32 %s4174, %s4176
    %s4178 = scalar_lea.smem [#allocation2], 0
    %4179 = sst [smem:[%s4178]] %s4177
    %v4180 = vmul.f32 %v4100, %v4163
    %4182 = vrot.lane.b32.xlu0 %v4180, 96
    %v4183 = vpop.permute.xlu0 %4182
    %v4185 = vsel %vm283, %v4183, 0.0
    %4186 = vadd.xlane.f32.xlu0 %v4185
    %v4187 = vpop.xlane.xlu0 %4186
    %v4188 = vrot.slane %v4187, 4
    %v4189 = vadd.f32 %v4187, %v4188
    %v4190 = vrot.slane %v4189, 2
    %v4191 = vadd.f32 %v4189, %v4190
    %v4192 = vrot.slane %v4191, 1
    %v4193 = vadd.f32 %v4191, %v4192
    %s4194 = vtos %v4193
    %s4195 = smul.f32 %s4194, 0.5
    %s4196 = scalar_lea.smem [#allocation4], 0
    %4197 = sst [smem:[%s4196]] %s4195
    %v4198 = vmul.f32 %v4117, %v4163
    %4200 = vrot.lane.b32.xlu0 %v4198, 112
    %v4201 = vpop.permute.xlu0 %4200
    %v4203 = vsel %vm153, %v4201, 0.0
    %4204 = vadd.xlane.f32.xlu0 %v4203
    %v4205 = vpop.xlane.xlu0 %4204
    %v4206 = vrot.slane %v4205, 4
    %v4207 = vadd.f32 %v4205, %v4206
    %v4208 = vrot.slane %v4207, 2
    %v4209 = vadd.f32 %v4207, %v4208
    %v4210 = vrot.slane %v4209, 1
    %v4211 = vadd.f32 %v4209, %v4210
    %s4212 = vtos %v4211
    %s4213 = smul.f32 %s4212, 0.5
    %s4214 = scalar_lea.smem [#allocation6], 0
    %4215 = sst [smem:[%s4214]] %s4213
    // Predicated region
    $region62: #{sisvae_forward.1} parent=1 // pred_check
      _
    $region63: #{sisvae_forward.1} parent=1 // pred_check_branch
      %4217 = sbr.rel (0) target = $region65
    $region64: #{sisvae_forward.1} parent=1 // pred_region
      _
    $region65: #{sisvae_forward.1} parent=1 // pred_fallthru
      _
    // Predicated region
    $region66: #{sisvae_forward.1} parent=1 // pred_check
      _
    $region67: #{sisvae_forward.1} parent=1 // pred_check_branch
      %4219 = sbr.rel (0) target = $region69
    $region68: #{sisvae_forward.1} parent=1 // pred_region
      %s4221 = ssub.s32 16, 16
      %4222 = vsyncadd [#allocation3], %s4221
      %4225 = dma.smem_to_hbm [#allocation2], 16, %s16, [#allocation3]
    $region69: #{sisvae_forward.1} parent=1 // pred_fallthru
      _
    // Predicated region
    $region70: #{sisvae_forward.1} parent=1 // pred_check
      _
    $region71: #{sisvae_forward.1} parent=1 // pred_check_branch
      %4227 = sbr.rel (0) target = $region73
    $region72: #{sisvae_forward.1} parent=1 // pred_region
      %s4229 = ssub.s32 16, 16
      %4230 = vsyncadd [#allocation5], %s4229
      %4233 = dma.smem_to_hbm [#allocation4], 16, %s17, [#allocation5]
    $region73: #{sisvae_forward.1} parent=1 // pred_fallthru
      _
    // Predicated region
    $region74: #{sisvae_forward.1} parent=1 // pred_check
      _
    $region75: #{sisvae_forward.1} parent=1 // pred_check_branch
      %4235 = sbr.rel (0) target = $region77
    $region76: #{sisvae_forward.1} parent=1 // pred_region
      %s4237 = ssub.s32 16, 16
      %4238 = vsyncadd [#allocation5], %s4237
      %4241 = dma.smem_to_hbm [#allocation6], 16, %s18, [#allocation5]
    $region77: #{sisvae_forward.1} parent=1 // pred_fallthru
      _
    // Predicated region
    $region78: #{sisvae_forward.1} parent=1 // pred_check
      _
    $region79: #{sisvae_forward.1} parent=1 // pred_check_branch
      %4243 = sbr.rel (0) target = $region81
    $region80: #{sisvae_forward.1} parent=1 // pred_region
      _
    $region81: #{sisvae_forward.1} parent=1 // pred_fallthru
      _
    // Predicated region
    $region82: #{sisvae_forward.1} parent=1 // pred_check
      _
    $region83: #{sisvae_forward.1} parent=1 // pred_check_branch
      %4245 = sbr.rel (0) target = $region85
    $region84: #{sisvae_forward.1} parent=1 // pred_region
      %4246 = dma.done [#allocation3], 16
    $region85: #{sisvae_forward.1} parent=1 // pred_fallthru
      _
    // Predicated region
    $region86: #{sisvae_forward.1} parent=1 // pred_check
      _
    $region87: #{sisvae_forward.1} parent=1 // pred_check_branch
      %4248 = sbr.rel (0) target = $region89
    $region88: #{sisvae_forward.1} parent=1 // pred_region
      %4249 = dma.done [#allocation5], 16
    $region89: #{sisvae_forward.1} parent=1 // pred_fallthru
      _
    // Predicated region
    $region90: #{sisvae_forward.1} parent=1 // pred_check
      _
    $region91: #{sisvae_forward.1} parent=1 // pred_check_branch
      %4251 = sbr.rel (0) target = $region93
    $region92: #{sisvae_forward.1} parent=1 // pred_region
      %4252 = dma.done [#allocation5], 16
    $region93: #{sisvae_forward.1} parent=1 // pred_fallthru
      _
    %4253 = sfence
    %4254 = vsyncpa [#allocation3], 1
    %4255 = vsyncpa [#allocation5], 1

</llo_original>
